<compile_context>
chip_gen: v5e
topology: v5e:2x2
jax: 0.10.0
libtpu: 0.0.40
codegen_flags: <defaults>
</compile_context>

<pallas_src>
import functools

import jax
import jax.numpy as jnp
from jax.experimental import pallas as pl
from jax.experimental.pallas import tpu as pltpu


# ----------------------------------------------------------------------------
# module config helpers (mirrors the PyTorch code)
# ----------------------------------------------------------------------------
def sampling_generator(N, reverse=False):
    samplings = [False, True] * (N // 2)
    if reverse:
        return list(reversed(samplings[:N]))
    return samplings[:N]


# ----------------------------------------------------------------------------
# fused ConvSC Pallas kernel
#   [x += residual] -> zero-pad (VMEM scratch) -> kxk conv (single im2col
#   matmul) -> +bias -> GroupNorm(2) -> SiLU ->
#     mode "plain"   : store (H, W, Cc) NHWC
#     mode "shuffle" : store (H, 2, W, 2C) == pixel-shuffled output (free
#                      reshape to (2H, 2W, C) in the wrapper)
#     mode "readout" : fused 1x1 readout, store lane-dense (C_out, H*W) == NCHW
# ----------------------------------------------------------------------------
def _convsc_kernel(*refs, k, has_residual, mode, c_logical, eps):
    i = 0
    x_ref = refs[i]; i += 1                       # (1, H, W, Cin)   bf16
    r_ref = None
    if has_residual:
        r_ref = refs[i]; i += 1                   # (1, H, W, Cin)   bf16
    w_ref = refs[i]; i += 1                       # (k*k*Cin, Cc)    bf16
    b_ref = refs[i]; i += 1                       # (1, Cc)          f32
    g_ref = refs[i]; i += 1                       # (1, Cc)          f32
    be_ref = refs[i]; i += 1                      # (1, Cc)          f32
    row_ref = rob_ref = None
    if mode == "readout":
        row_ref = refs[i]; i += 1                 # (Cro, Cc)        bf16
        rob_ref = refs[i]; i += 1                 # (Cro, 1)         f32
    o_ref = refs[i]; i += 1
    pad_ref = refs[i]; i += 1                     # VMEM (Hp, Wp, Cin) scratch

    _, H, W, Cin = x_ref.shape
    pad = k // 2
    Cc = w_ref.shape[1]

    x = x_ref[0]
    if has_residual:
        x = x + r_ref[0]                          # residual add (free VPU work)

    # --- zero-pad in VMEM (no HBM pad round trip). Scratch is uninitialized,
    # so zero it every step (also keeps every megacore shard correct). --------
    pad_ref[...] = jnp.zeros_like(pad_ref)
    pad_ref[pad:pad + H, pad:pad + W, :] = x
    xp = pad_ref[...]

    # --- single im2col matmul: K = k*k*Cin keeps the MXU deep -----------------
    slabs = [xp[ky:ky + H, kx:kx + W, :] for ky in range(k) for kx in range(k)]
    patch = jnp.concatenate(slabs, axis=-1).reshape(H * W, k * k * Cin)
    acc = jnp.dot(patch, w_ref[...], preferred_element_type=jnp.float32)
    acc = acc + b_ref[...]                        # (H*W, Cc), f32

    # --- GroupNorm(2, c_logical) without per-group slicing (f32 math) ---------
    # column m*c_logical + c  <->  logical output channel c  (m = shuffle slot)
    half = c_logical // 2
    npg = float(H * W * (Cc // 2))                # elements per group
    ch = jax.lax.broadcasted_iota(jnp.int32, (1, Cc), 1)
    g0 = (ch % c_logical) < half                  # group-0 column mask
    csum = jnp.sum(acc, axis=0, keepdims=True)    # per-column sums   (1, Cc)
    csq = jnp.sum(acc * acc, axis=0, keepdims=True)
    s0 = jnp.sum(jnp.where(g0, csum, 0.0)); sa = jnp.sum(csum)
    q0 = jnp.sum(jnp.where(g0, csq, 0.0)); qa = jnp.sum(csq)
    mean = jnp.where(g0, s0, sa - s0) / npg       # (1, Cc)
    ex2 = jnp.where(g0, q0, qa - q0) / npg
    inv = jax.lax.rsqrt(ex2 - mean * mean + eps)
    y = (acc - mean) * inv * g_ref[...] + be_ref[...]
    y = y * jax.nn.sigmoid(y)                     # SiLU (sigmoid on the EUP)

    if mode == "readout":
        # 1x1 readout: out[c, p] = sum_j ro_w[c, j] * y[p, j] + ro_b[c]
        # stored as (Cro, H*W) -> lane-dense, i.e. NCHW directly.
        out = jax.lax.dot_general(
            row_ref[...], y.astype(row_ref.dtype),
            dimension_numbers=(((1,), (1,)), ((), ())),
            preferred_element_type=jnp.float32)   # (Cro, H*W)
        out = out + rob_ref[...]
        o_ref[...] = out[None].astype(o_ref.dtype)
    elif mode == "shuffle":
        # columns are pre-permuted to (i, j, c); store row-parity slabs so the
        # wrapper's reshape to (2H, 2W, C) is a pure metadata reshape.
        C2 = 2 * c_logical
        o_ref[0, :, 0, :, :] = y[:, :C2].reshape(H, W, C2).astype(o_ref.dtype)
        o_ref[0, :, 1, :, :] = y[:, C2:].reshape(H, W, C2).astype(o_ref.dtype)
    else:
        o_ref[...] = y.reshape(1, H, W, Cc).astype(o_ref.dtype)


def _convsc_pallas(x, r, layer, k, *, ro_w=None, ro_b=None, out_dtype):
    """One fused ConvSC layer. x/r are UNPADDED NHWC (r optional residual)."""
    assert k % 2 == 1
    B, H, W, Cin = x.shape
    pad = k // 2
    w = layer["w_flat"]
    Cc = w.shape[1]
    c_logical = layer["c_logical"]
    has_res = r is not None
    if ro_w is not None:
        mode = "readout"
    elif layer["upsampling"]:
        mode = "shuffle"
    else:
        mode = "plain"

    inputs = [x]
    in_specs = [pl.BlockSpec((1, H, W, Cin), lambda b: (b, 0, 0, 0))]
    if has_res:
        inputs.append(r)
        in_specs.append(pl.BlockSpec((1, H, W, Cin), lambda b: (b, 0, 0, 0)))
    inputs += [w, layer["b2"], layer["g2"], layer["be2"]]
    in_specs += [
        pl.BlockSpec((k * k * Cin, Cc), lambda b: (0, 0)),
        pl.BlockSpec((1, Cc), lambda b: (0, 0)),
        pl.BlockSpec((1, Cc), lambda b: (0, 0)),
        pl.BlockSpec((1, Cc), lambda b: (0, 0)),
    ]
    ro_flops = 0
    if mode == "readout":
        Cro = ro_w.shape[0]
        inputs += [ro_w, ro_b]
        in_specs += [
            pl.BlockSpec((Cro, Cc), lambda b: (0, 0)),
            pl.BlockSpec((Cro, 1), lambda b: (0, 0)),
        ]
        out_shape = jax.ShapeDtypeStruct((B, Cro, H * W), out_dtype)
        out_spec = pl.BlockSpec((1, Cro, H * W), lambda b: (b, 0, 0))
        out_elems = Cro * H * W
        ro_flops = 2 * H * W * Cc * Cro
    elif mode == "shuffle":
        C2 = 2 * c_logical
        out_shape = jax.ShapeDtypeStruct((B, H, 2, W, C2), out_dtype)
        out_spec = pl.BlockSpec((1, H, 2, W, C2), lambda b: (b, 0, 0, 0, 0))
        out_elems = H * 2 * W * C2
    else:
        out_shape = jax.ShapeDtypeStruct((B, H, W, Cc), out_dtype)
        out_spec = pl.BlockSpec((1, H, W, Cc), lambda b: (b, 0, 0, 0))
        out_elems = H * W * Cc

    # cost estimate (scheduling hint)
    flops = B * (2 * H * W * (k * k * Cin) * Cc + 12 * H * W * Cc + ro_flops)
    out_bytes = B * out_elems * jnp.dtype(out_dtype).itemsize
    bytes_accessed = sum(int(a.size) * a.dtype.itemsize for a in inputs) + out_bytes

    # explicit VMEM budget from the block sizes (double-buffered I/O + temps)
    x_blk = H * W * Cin * x.dtype.itemsize
    w_blk = k * k * Cin * Cc * w.dtype.itemsize
    o_blk = out_elems * jnp.dtype(out_dtype).itemsize
    pad_blk = (H + 2 * pad) * (W + 2 * pad) * Cin * x.dtype.itemsize
    interm = H * W * (k * k * Cin * x.dtype.itemsize + 8 * Cc * 4)
    est = 2 * (x_blk * (2 if has_res else 1) + w_blk + o_blk) + pad_blk + interm
    vmem_limit = int(min(64 << 20, max(4 * est, 16 << 20)))

    kernel = functools.partial(_convsc_kernel, k=k, has_residual=has_res,
                               mode=mode, c_logical=c_logical, eps=1e-5)
    return pl.pallas_call(
        kernel,
        out_shape=out_shape,
        grid_spec=pltpu.PrefetchScalarGridSpec(
            num_scalar_prefetch=0,
            grid=(B,),
            in_specs=in_specs,
            out_specs=out_spec,
            scratch_shapes=[pltpu.VMEM((H + 2 * pad, W + 2 * pad, Cin), x.dtype)],
        ),
        compiler_params=pltpu.CompilerParams(
            dimension_semantics=("parallel",),
            vmem_limit_bytes=vmem_limit),
        cost_estimate=pl.CostEstimate(
            flops=int(flops),
            transcendentals=int(B * H * W * Cc),
            bytes_accessed=int(bytes_accessed)),
    )(*inputs)


# ----------------------------------------------------------------------------
# JAX glue
# ----------------------------------------------------------------------------
def prepare_decoder_params(params, k, compute_dtype=jnp.bfloat16):
    """Hoist all static weight layout work out of the forward pass."""
    dec = []
    for layer in params["dec"]:
        w_pt = layer["w"]                           # (Cc, Cin, k, k) OIHW
        Cc, Cin = int(w_pt.shape[0]), int(w_pt.shape[1])
        w_flat = jnp.transpose(w_pt, (2, 3, 1, 0)).reshape(k * k * Cin, Cc)
        b = layer["b"]
        gamma, beta = layer["gamma"], layer["beta"]
        if layer["upsampling"]:
            # Pre-permute conv output columns from PyTorch order (c, i, j) to
            # shuffle-friendly order (i, j, c):  new col m*Cl + c  <-  c*4 + m.
            # GN/affine are applied pre-shuffle inside the kernel (the shuffle
            # is a per-group channel/space permutation, so stats are identical);
            # gamma/beta are tiled to match the permuted conv channels.
            Cl = Cc // 4
            perm = jnp.concatenate([jnp.arange(Cl) * 4 + m for m in range(4)])
            w_flat = w_flat[:, perm]
            b = b[perm]
            gamma = jnp.tile(gamma, 4)
            beta = jnp.tile(beta, 4)
        else:
            Cl = Cc
        dec.append(dict(
            upsampling=bool(layer["upsampling"]),
            c_logical=int(Cl),
            w_flat=w_flat.astype(compute_dtype),
            b2=b.reshape(1, Cc).astype(jnp.float32),
            g2=gamma.reshape(1, Cc).astype(jnp.float32),
            be2=beta.reshape(1, Cc).astype(jnp.float32),
        ))
    Cout, Chid = int(params["readout_w"].shape[0]), int(params["readout_w"].shape[1])
    return dict(
        dec=dec,
        ro_w=params["readout_w"].reshape(Cout, Chid).astype(compute_dtype),
        ro_b=params["readout_b"].reshape(Cout, 1).astype(jnp.float32),
    )


def decoder_forward(prep, hid_nchw, enc1_nchw, k, compute_dtype=jnp.bfloat16):
    hid = jnp.transpose(hid_nchw, (0, 2, 3, 1)).astype(compute_dtype)
    enc1 = jnp.transpose(enc1_nchw, (0, 2, 3, 1)).astype(compute_dtype)

    for layer in prep["dec"][:-1]:
        y = _convsc_pallas(hid, None, layer, k, out_dtype=compute_dtype)
        if layer["upsampling"]:
            # (B, H, 2, W, 2C) -> (B, 2H, 2W, C): contiguous, free reshape
            B_, Hh, _, Ww, C2 = y.shape
            y = y.reshape(B_, 2 * Hh, 2 * Ww, C2 // 2)
        hid = y

    last = prep["dec"][-1]
    # sampling_generator(..., reverse=True) always ends with upsampling=False,
    # so the fused readout path (which assumes no shuffle after GN) is valid.
    assert not last["upsampling"]
    out = _convsc_pallas(hid, enc1, last, k, ro_w=prep["ro_w"], ro_b=prep["ro_b"],
                         out_dtype=jnp.float32)        # (B, C_out, H*W), NCHW
    B, Co = out.shape[0], out.shape[1]
    Ho, Wo = hid.shape[1], hid.shape[2]
    return out.reshape(B, Co, Ho, Wo)


def init_decoder_params(key, C_hid, C_out, N_S, k):
    samplings = sampling_generator(N_S, reverse=True)
    dec = []
    for s in samplings:
        key, kw = jax.random.split(key)
        cout = C_hid * 4 if s else C_hid
        fan_in = C_hid * k * k
        w = jax.random.normal(kw, (cout, C_hid, k, k), jnp.float32) / jnp.sqrt(fan_in)
        dec.append(dict(
            upsampling=s,
            w=w,
            b=jnp.zeros((cout,), jnp.float32),        # Conv2d bias init to 0
            gamma=jnp.ones((C_hid,), jnp.float32),    # GroupNorm defaults
            beta=jnp.zeros((C_hid,), jnp.float32),
        ))
    key, k1, k2 = jax.random.split(key, 3)
    return dict(
        dec=dec,
        readout_w=jax.random.normal(k1, (C_out, C_hid, 1, 1), jnp.float32) / jnp.sqrt(C_hid),
        readout_b=0.01 * jax.random.normal(k2, (C_out,), jnp.float32),
    )


# ----------------------------------------------------------------------------
# pure-JAX f32 reference (for correctness check)
# ----------------------------------------------------------------------------
def _ref_forward(params, hid_nchw, enc1_nchw, k):
    def conv(x, w, b, kk):
        pad = (kk - 1) // 2
        y = jax.lax.conv_general_dilated(
            x, w, window_strides=(1, 1), padding=((pad, pad), (pad, pad)),
            dimension_numbers=("NCHW", "OIHW", "NCHW"))
        return y + b[None, :, None, None]

    def gn_silu(x, gamma, beta, groups=2, eps=1e-5):
        B, C, H, W = x.shape
        xg = x.reshape(B, groups, C // groups, H, W)
        m = xg.mean(axis=(2, 3, 4), keepdims=True)
        v = ((xg - m) ** 2).mean(axis=(2, 3, 4), keepdims=True)
        xn = ((xg - m) / jnp.sqrt(v + eps)).reshape(B, C, H, W)
        y = xn * gamma[None, :, None, None] + beta[None, :, None, None]
        return y * jax.nn.sigmoid(y)

    def pixel_shuffle(x, r):
        B, Cr2, H, W = x.shape
        C = Cr2 // (r * r)
        x = x.reshape(B, C, r, r, H, W).transpose(0, 1, 4, 2, 5, 3)
        return x.reshape(B, C, H * r, W * r)

    hid = hid_nchw
    for layer in params["dec"][:-1]:
        y = conv(hid, layer["w"], layer["b"], k)
        if layer["upsampling"]:
            y = pixel_shuffle(y, 2)
        hid = gn_silu(y, layer["gamma"], layer["beta"])
    layer = params["dec"][-1]
    y = conv(hid + enc1_nchw, layer["w"], layer["b"], k)
    if layer["upsampling"]:
        y = pixel_shuffle(y, 2)
    hid = gn_silu(y, layer["gamma"], layer["beta"])
    return conv(hid, params["readout_w"], params["readout_b"], 1)


# ----------------------------------------------------------------------------
# demo
# ----------------------------------------------------------------------------
if __name__ == "__main__":
    B, C_hid, C_out, N_S, spatio_kernel = 2, 32, 4, 2, 3
    H = W = 8  # input spatial; one upsampling layer -> enc1 / output at 2H x 2W

    key = jax.random.PRNGKey(0)
    kp, kh, ke = jax.random.split(key, 3)
    params = init_decoder_params(kp, C_hid, C_out, N_S, spatio_kernel)
    prep = prepare_decoder_params(params, spatio_kernel)   # hoisted, done once

    hid = jax.random.normal(kh, (B, C_hid, H, W), jnp.float32)           # NCHW
    enc1 = jax.random.normal(ke, (B, C_hid, 2 * H, 2 * W), jnp.float32)  # NCHW

    fwd = jax.jit(functools.partial(decoder_forward, prep, k=spatio_kernel))
    out = jax.block_until_ready(fwd(hid, enc1))

    ref = jax.block_until_ready(_ref_forward(params, hid, enc1, spatio_kernel))
    assert out.shape == (B, C_out, 2 * H, 2 * W), out.shape
    assert bool(jnp.all(jnp.isfinite(out)))
    max_err = float(jnp.max(jnp.abs(out - ref)))
    # bf16 activations/weights vs f32 reference -> relaxed tolerance
    assert bool(jnp.allclose(out, ref, rtol=5e-2, atol=5e-2)), max_err

    print("KERNEL_OK")
</pallas_src>

<mosaic_0001>
module attributes {stable_mosaic.version = 11 : i64} {
  func.func @_convsc_kernel(%arg0: i32, %arg1: memref<1x8x8x32xbf16, #tpu.memory_space<vmem>>, %arg2: memref<288x128xbf16, #tpu.memory_space<vmem>>, %arg3: memref<1x128xf32, #tpu.memory_space<vmem>>, %arg4: memref<1x128xf32, #tpu.memory_space<vmem>>, %arg5: memref<1x128xf32, #tpu.memory_space<vmem>>, %arg6: memref<1x8x2x8x64xbf16, #tpu.memory_space<vmem>>, %arg7: memref<10x10x32xbf16, #tpu.memory_space<vmem>>) attributes {dimension_semantics = [#tpu.dimension_semantics<parallel>], iteration_bounds = array<i64: 2>, scalar_prefetch = 0 : i64, scratch_operands = 1 : i64, tpu.core_type = #tpu.core_type<tc>, window_params = [{transform_indices = @transform_0, window_bounds = array<i64: 1, 8, 8, 32>}, {pipeline_mode = #tpu.pipeline_mode<synchronous>, transform_indices = @transform_1, window_bounds = array<i64: 288, 128>}, {pipeline_mode = #tpu.pipeline_mode<synchronous>, transform_indices = @transform_2, window_bounds = array<i64: 1, 128>}, {pipeline_mode = #tpu.pipeline_mode<synchronous>, transform_indices = @transform_3, window_bounds = array<i64: 1, 128>}, {pipeline_mode = #tpu.pipeline_mode<synchronous>, transform_indices = @transform_4, window_bounds = array<i64: 1, 128>}, {transform_indices = @transform_5, window_bounds = array<i64: 1, 8, 2, 8, 64>}]} {
    %c0 = arith.constant 0 : index
    %c0_0 = arith.constant 0 : index
    %c0_1 = arith.constant 0 : index
    %c0_2 = arith.constant 0 : index
    %0 = vector.load %arg1[%c0, %c0_0, %c0_1, %c0_2] : memref<1x8x8x32xbf16, #tpu.memory_space<vmem>>, vector<1x8x8x32xbf16>
    %1 = vector.shape_cast %0 : vector<1x8x8x32xbf16> to vector<8x8x32xbf16>
    %cst = arith.constant 0.000000e+00 : bf16
    %2 = vector.broadcast %cst : bf16 to vector<10x10x32xbf16>
    %c0_3 = arith.constant 0 : index
    %c0_4 = arith.constant 0 : index
    %c0_5 = arith.constant 0 : index
    %3 = vector.load %arg7[%c0_3, %c0_4, %c0_5] : memref<10x10x32xbf16, #tpu.memory_space<vmem>>, vector<10x10x32xbf16>
    tpu.vector_store %arg7[%c0_3, %c0_4, %c0_5], %2 {strides = array<i32>} : memref<10x10x32xbf16, #tpu.memory_space<vmem>>, vector<10x10x32xbf16>,
    %c1 = arith.constant 1 : index
    %c1_6 = arith.constant 1 : index
    %c0_7 = arith.constant 0 : index
    %4 = vector.load %arg7[%c1, %c1_6, %c0_7] : memref<10x10x32xbf16, #tpu.memory_space<vmem>>, vector<8x8x32xbf16>
    tpu.vector_store %arg7[%c1, %c1_6, %c0_7], %1 {strides = array<i32>} : memref<10x10x32xbf16, #tpu.memory_space<vmem>>, vector<8x8x32xbf16>,
    %c0_8 = arith.constant 0 : index
    %c0_9 = arith.constant 0 : index
    %c0_10 = arith.constant 0 : index
    %5 = vector.load %arg7[%c0_8, %c0_9, %c0_10] : memref<10x10x32xbf16, #tpu.memory_space<vmem>>, vector<10x10x32xbf16>
    %6 = vector.extract_strided_slice %5 {offsets = [0, 0, 0], sizes = [8, 8, 32], strides = [1, 1, 1]} : vector<10x10x32xbf16> to vector<8x8x32xbf16>
    %7 = vector.extract_strided_slice %5 {offsets = [0, 1, 0], sizes = [8, 8, 32], strides = [1, 1, 1]} : vector<10x10x32xbf16> to vector<8x8x32xbf16>
    %8 = vector.extract_strided_slice %5 {offsets = [0, 2, 0], sizes = [8, 8, 32], strides = [1, 1, 1]} : vector<10x10x32xbf16> to vector<8x8x32xbf16>
    %9 = vector.extract_strided_slice %5 {offsets = [1, 0, 0], sizes = [8, 8, 32], strides = [1, 1, 1]} : vector<10x10x32xbf16> to vector<8x8x32xbf16>
    %10 = vector.extract_strided_slice %5 {offsets = [1, 1, 0], sizes = [8, 8, 32], strides = [1, 1, 1]} : vector<10x10x32xbf16> to vector<8x8x32xbf16>
    %11 = vector.extract_strided_slice %5 {offsets = [1, 2, 0], sizes = [8, 8, 32], strides = [1, 1, 1]} : vector<10x10x32xbf16> to vector<8x8x32xbf16>
    %12 = vector.extract_strided_slice %5 {offsets = [2, 0, 0], sizes = [8, 8, 32], strides = [1, 1, 1]} : vector<10x10x32xbf16> to vector<8x8x32xbf16>
    %13 = vector.extract_strided_slice %5 {offsets = [2, 1, 0], sizes = [8, 8, 32], strides = [1, 1, 1]} : vector<10x10x32xbf16> to vector<8x8x32xbf16>
    %14 = vector.extract_strided_slice %5 {offsets = [2, 2, 0], sizes = [8, 8, 32], strides = [1, 1, 1]} : vector<10x10x32xbf16> to vector<8x8x32xbf16>
    %15 = tpu.concatenate %6, %7, %8, %9, %10, %11, %12, %13, %14 in 2 : vector<8x8x32xbf16>, vector<8x8x32xbf16>, vector<8x8x32xbf16>, vector<8x8x32xbf16>, vector<8x8x32xbf16>, vector<8x8x32xbf16>, vector<8x8x32xbf16>, vector<8x8x32xbf16>, vector<8x8x32xbf16> -> vector<8x8x288xbf16>
    %16 = vector.shape_cast %15 : vector<8x8x288xbf16> to vector<64x288xbf16>
    %c0_11 = arith.constant 0 : index
    %c0_12 = arith.constant 0 : index
    %17 = vector.load %arg2[%c0_11, %c0_12] : memref<288x128xbf16, #tpu.memory_space<vmem>>, vector<288x128xbf16>
    %cst_13 = arith.constant dense<0.000000e+00> : vector<64x128xf32>
    %18 = tpu.matmul %16, %17, %cst_13 {dimension_numbers = #tpu.dot_dimension_numbers<[1], [0], [0], [1], [0, 0, 1, 1], [], []>} : vector<64x288xbf16>, vector<288x128xbf16>, vector<64x128xf32> -> vector<64x128xf32>
    %c0_14 = arith.constant 0 : index
    %c0_15 = arith.constant 0 : index
    %19 = vector.load %arg3[%c0_14, %c0_15] : memref<1x128xf32, #tpu.memory_space<vmem>>, vector<1x128xf32>
    %20 = vector.broadcast %19 : vector<1x128xf32> to vector<64x128xf32>
    %21 = arith.addf %18, %20 : vector<64x128xf32>
    %22 = tpu.iota {dimensions = array<i32: 1>} : vector<1x128xi32>
    %c32_i32 = arith.constant 32 : i32
    %c0_i32 = arith.constant 0 : i32
    %23 = arith.cmpi eq, %c32_i32, %c0_i32 : i32
    %c1_i32 = arith.constant 1 : i32
    %24 = arith.select %23, %c1_i32, %c32_i32 : i32
    %25 = vector.broadcast %24 : i32 to vector<1x128xi32>
    %26 = arith.remsi %22, %25 : vector<1x128xi32>
    %c0_i32_16 = arith.constant 0 : i32
    %27 = vector.broadcast %c0_i32_16 : i32 to vector<1x128xi32>
    %28 = arith.cmpi ne, %26, %27 : vector<1x128xi32>
    %c0_i32_17 = arith.constant 0 : i32
    %29 = vector.broadcast %c0_i32_17 : i32 to vector<1x128xi32>
    %30 = arith.cmpi slt, %26, %29 : vector<1x128xi32>
    %c0_i32_18 = arith.constant 0 : i32
    %31 = arith.cmpi slt, %24, %c0_i32_18 : i32
    %32 = vector.broadcast %31 : i1 to vector<1x128xi1>
    %33 = vector.broadcast %32 : vector<1x128xi1> to vector<1x128xi1>
    %34 = arith.xori %30, %33 : vector<1x128xi1>
    %35 = arith.andi %34, %28 : vector<1x128xi1>
    %36 = vector.broadcast %24 : i32 to vector<1x128xi32>
    %37 = arith.addi %26, %36 : vector<1x128xi32>
    %38 = arith.select %35, %37, %26 : vector<1x128xi1>, vector<1x128xi32>
    %c16_i32 = arith.constant 16 : i32
    %39 = vector.broadcast %c16_i32 : i32 to vector<1x128xi32>
    %40 = arith.cmpi slt, %38, %39 : vector<1x128xi32>
    %cst_19 = arith.constant dense<0.000000e+00> : vector<128xf32>
    %41 = vector.multi_reduction <add>, %21, %cst_19 [0] : vector<64x128xf32> to vector<128xf32>
    %42 = vector.shape_cast %41 : vector<128xf32> to vector<1x128xf32>
    %43 = arith.mulf %21, %21 : vector<64x128xf32>
    %cst_20 = arith.constant dense<0.000000e+00> : vector<128xf32>
    %44 = vector.multi_reduction <add>, %43, %cst_20 [0] : vector<64x128xf32> to vector<128xf32>
    %45 = vector.shape_cast %44 : vector<128xf32> to vector<1x128xf32>
    %cst_21 = arith.constant 0.000000e+00 : f32
    %46 = vector.broadcast %cst_21 : f32 to vector<1x128xf32>
    %47 = arith.select %40, %42, %46 : vector<1x128xi1>, vector<1x128xf32>
    %48 = vector.shape_cast %47 : vector<1x128xf32> to vector<1x1x128xf32>
    %cst_22 = arith.constant dense<0.000000e+00> : vector<1xf32>
    %49 = vector.multi_reduction <add>, %48, %cst_22 [1, 2] : vector<1x1x128xf32> to vector<1xf32>
    %50 = vector.shape_cast %49 : vector<1xf32> to vector<1x1x1xf32>
    %51 = vector.extract %50[0, 0, 0] : f32 from vector<1x1x1xf32>
    %52 = vector.shape_cast %42 : vector<1x128xf32> to vector<1x1x128xf32>
    %cst_23 = arith.constant dense<0.000000e+00> : vector<1xf32>
    %53 = vector.multi_reduction <add>, %52, %cst_23 [1, 2] : vector<1x1x128xf32> to vector<1xf32>
    %54 = vector.shape_cast %53 : vector<1xf32> to vector<1x1x1xf32>
    %55 = vector.extract %54[0, 0, 0] : f32 from vector<1x1x1xf32>
    %cst_24 = arith.constant 0.000000e+00 : f32
    %56 = vector.broadcast %cst_24 : f32 to vector<1x128xf32>
    %57 = arith.select %40, %45, %56 : vector<1x128xi1>, vector<1x128xf32>
    %58 = vector.shape_cast %57 : vector<1x128xf32> to vector<1x1x128xf32>
    %cst_25 = arith.constant dense<0.000000e+00> : vector<1xf32>
    %59 = vector.multi_reduction <add>, %58, %cst_25 [1, 2] : vector<1x1x128xf32> to vector<1xf32>
    %60 = vector.shape_cast %59 : vector<1xf32> to vector<1x1x1xf32>
    %61 = vector.extract %60[0, 0, 0] : f32 from vector<1x1x1xf32>
    %62 = vector.shape_cast %45 : vector<1x128xf32> to vector<1x1x128xf32>
    %cst_26 = arith.constant dense<0.000000e+00> : vector<1xf32>
    %63 = vector.multi_reduction <add>, %62, %cst_26 [1, 2] : vector<1x1x128xf32> to vector<1xf32>
    %64 = vector.shape_cast %63 : vector<1xf32> to vector<1x1x1xf32>
    %65 = vector.extract %64[0, 0, 0] : f32 from vector<1x1x1xf32>
    %66 = arith.subf %55, %51 : f32
    %67 = vector.broadcast %51 : f32 to vector<1x128xf32>
    %68 = vector.broadcast %66 : f32 to vector<1x128xf32>
    %69 = arith.select %40, %67, %68 : vector<1x128xi1>, vector<1x128xf32>
    %cst_27 = arith.constant 4.096000e+03 : f32
    %70 = vector.broadcast %cst_27 : f32 to vector<1x128xf32>
    %71 = arith.divf %69, %70 : vector<1x128xf32>
    %72 = arith.subf %65, %61 : f32
    %73 = vector.broadcast %61 : f32 to vector<1x128xf32>
    %74 = vector.broadcast %72 : f32 to vector<1x128xf32>
    %75 = arith.select %40, %73, %74 : vector<1x128xi1>, vector<1x128xf32>
    %cst_28 = arith.constant 4.096000e+03 : f32
    %76 = vector.broadcast %cst_28 : f32 to vector<1x128xf32>
    %77 = arith.divf %75, %76 : vector<1x128xf32>
    %78 = arith.mulf %71, %71 : vector<1x128xf32>
    %79 = arith.subf %77, %78 : vector<1x128xf32>
    %cst_29 = arith.constant 9.99999974E-6 : f32
    %80 = vector.broadcast %cst_29 : f32 to vector<1x128xf32>
    %81 = arith.addf %79, %80 : vector<1x128xf32>
    %82 = math.rsqrt %81 : vector<1x128xf32>
    %83 = vector.broadcast %71 : vector<1x128xf32> to vector<64x128xf32>
    %84 = arith.subf %21, %83 : vector<64x128xf32>
    %85 = vector.broadcast %82 : vector<1x128xf32> to vector<64x128xf32>
    %86 = arith.mulf %84, %85 : vector<64x128xf32>
    %c0_30 = arith.constant 0 : index
    %c0_31 = arith.constant 0 : index
    %87 = vector.load %arg4[%c0_30, %c0_31] : memref<1x128xf32, #tpu.memory_space<vmem>>, vector<1x128xf32>
    %88 = vector.broadcast %87 : vector<1x128xf32> to vector<64x128xf32>
    %89 = arith.mulf %86, %88 : vector<64x128xf32>
    %c0_32 = arith.constant 0 : index
    %c0_33 = arith.constant 0 : index
    %90 = vector.load %arg5[%c0_32, %c0_33] : memref<1x128xf32, #tpu.memory_space<vmem>>, vector<1x128xf32>
    %91 = vector.broadcast %90 : vector<1x128xf32> to vector<64x128xf32>
    %92 = arith.addf %89, %91 : vector<64x128xf32>
    %93 = arith.negf %92 : vector<64x128xf32>
    %94 = math.exp %93 : vector<64x128xf32>
    %cst_34 = arith.constant 1.000000e+00 : f32
    %95 = vector.broadcast %cst_34 : f32 to vector<64x128xf32>
    %96 = arith.addf %95, %94 : vector<64x128xf32>
    %97 = arith.divf %95, %96 : vector<64x128xf32>
    %98 = arith.mulf %92, %97 : vector<64x128xf32>
    %99 = vector.extract_strided_slice %98 {offsets = [0, 0], sizes = [64, 64], strides = [1, 1]} : vector<64x128xf32> to vector<64x64xf32>
    %100 = vector.shape_cast %99 : vector<64x64xf32> to vector<8x8x64xf32>
    %101 = arith.truncf %100 : vector<8x8x64xf32> to vector<8x8x64xbf16>
    %c0_35 = arith.constant 0 : index
    %c0_36 = arith.constant 0 : index
    %c0_37 = arith.constant 0 : index
    %c0_38 = arith.constant 0 : index
    %c0_39 = arith.constant 0 : index
    %102 = vector.load %arg6[%c0_35, %c0_36, %c0_37, %c0_38, %c0_39] : memref<1x8x2x8x64xbf16, #tpu.memory_space<vmem>>, vector<1x8x1x8x64xbf16>
    %103 = vector.shape_cast %102 : vector<1x8x1x8x64xbf16> to vector<8x8x64xbf16>
    %104 = vector.shape_cast %101 : vector<8x8x64xbf16> to vector<1x8x1x8x64xbf16>
    tpu.vector_store %arg6[%c0_35, %c0_36, %c0_37, %c0_38, %c0_39], %104 {strides = array<i32>} : memref<1x8x2x8x64xbf16, #tpu.memory_space<vmem>>, vector<1x8x1x8x64xbf16>,
    %105 = vector.extract_strided_slice %98 {offsets = [0, 64], sizes = [64, 64], strides = [1, 1]} : vector<64x128xf32> to vector<64x64xf32>
    %106 = vector.shape_cast %105 : vector<64x64xf32> to vector<8x8x64xf32>
    %107 = arith.truncf %106 : vector<8x8x64xf32> to vector<8x8x64xbf16>
    %c0_40 = arith.constant 0 : index
    %c0_41 = arith.constant 0 : index
    %c1_42 = arith.constant 1 : index
    %c0_43 = arith.constant 0 : index
    %c0_44 = arith.constant 0 : index
    %108 = vector.load %arg6[%c0_40, %c0_41, %c1_42, %c0_43, %c0_44] : memref<1x8x2x8x64xbf16, #tpu.memory_space<vmem>>, vector<1x8x1x8x64xbf16>
    %109 = vector.shape_cast %108 : vector<1x8x1x8x64xbf16> to vector<8x8x64xbf16>
    %110 = vector.shape_cast %107 : vector<8x8x64xbf16> to vector<1x8x1x8x64xbf16>
    tpu.vector_store %arg6[%c0_40, %c0_41, %c1_42, %c0_43, %c0_44], %110 {strides = array<i32>} : memref<1x8x2x8x64xbf16, #tpu.memory_space<vmem>>, vector<1x8x1x8x64xbf16>,
    return
  }
  func.func @transform_0(%arg0: i32) -> (i32, i32, i32, i32) {
    %c0_i32 = arith.constant 0 : i32
    %c0_i32_0 = arith.constant 0 : i32
    %c0_i32_1 = arith.constant 0 : i32
    %c0_i32_2 = arith.constant 0 : i32
    return %arg0, %c0_i32, %c0_i32_0, %c0_i32_1 : i32, i32, i32, i32
  }
  func.func @transform_1(%arg0: i32) -> (i32, i32) {
    %c0_i32 = arith.constant 0 : i32
    %c0_i32_0 = arith.constant 0 : i32
    %c0_i32_1 = arith.constant 0 : i32
    return %c0_i32, %c0_i32_0 : i32, i32
  }
  func.func @transform_2(%arg0: i32) -> (i32, i32) {
    %c0_i32 = arith.constant 0 : i32
    %c0_i32_0 = arith.constant 0 : i32
    %c0_i32_1 = arith.constant 0 : i32
    return %c0_i32, %c0_i32_0 : i32, i32
  }
  func.func @transform_3(%arg0: i32) -> (i32, i32) {
    %c0_i32 = arith.constant 0 : i32
    %c0_i32_0 = arith.constant 0 : i32
    %c0_i32_1 = arith.constant 0 : i32
    return %c0_i32, %c0_i32_0 : i32, i32
  }
  func.func @transform_4(%arg0: i32) -> (i32, i32) {
    %c0_i32 = arith.constant 0 : i32
    %c0_i32_0 = arith.constant 0 : i32
    %c0_i32_1 = arith.constant 0 : i32
    return %c0_i32, %c0_i32_0 : i32, i32
  }
  func.func @transform_5(%arg0: i32) -> (i32, i32, i32, i32, i32) {
    %c0_i32 = arith.constant 0 : i32
    %c0_i32_0 = arith.constant 0 : i32
    %c0_i32_1 = arith.constant 0 : i32
    %c0_i32_2 = arith.constant 0 : i32
    %c0_i32_3 = arith.constant 0 : i32
    return %arg0, %c0_i32, %c0_i32_0, %c0_i32_1, %c0_i32_2 : i32, i32, i32, i32, i32
  }
}

module attributes {stable_mosaic.version = 11 : i64} {
  func.func @_convsc_kernel(%arg0: i32, %arg1: memref<1x16x16x32xbf16, #tpu.memory_space<vmem>>, %arg2: memref<1x16x16x32xbf16, #tpu.memory_space<vmem>>, %arg3: memref<288x32xbf16, #tpu.memory_space<vmem>>, %arg4: memref<1x32xf32, #tpu.memory_space<vmem>>, %arg5: memref<1x32xf32, #tpu.memory_space<vmem>>, %arg6: memref<1x32xf32, #tpu.memory_space<vmem>>, %arg7: memref<4x32xbf16, #tpu.memory_space<vmem>>, %arg8: memref<4x1xf32, #tpu.memory_space<vmem>>, %arg9: memref<1x4x256xf32, #tpu.memory_space<vmem>>, %arg10: memref<18x18x32xbf16, #tpu.memory_space<vmem>>) attributes {dimension_semantics = [#tpu.dimension_semantics<parallel>], iteration_bounds = array<i64: 2>, scalar_prefetch = 0 : i64, scratch_operands = 1 : i64, tpu.core_type = #tpu.core_type<tc>, window_params = [{transform_indices = @transform_0, window_bounds = array<i64: 1, 16, 16, 32>}, {transform_indices = @transform_1, window_bounds = array<i64: 1, 16, 16, 32>}, {pipeline_mode = #tpu.pipeline_mode<synchronous>, transform_indices = @transform_2, window_bounds = array<i64: 288, 32>}, {pipeline_mode = #tpu.pipeline_mode<synchronous>, transform_indices = @transform_3, window_bounds = array<i64: 1, 32>}, {pipeline_mode = #tpu.pipeline_mode<synchronous>, transform_indices = @transform_4, window_bounds = array<i64: 1, 32>}, {pipeline_mode = #tpu.pipeline_mode<synchronous>, transform_indices = @transform_5, window_bounds = array<i64: 1, 32>}, {pipeline_mode = #tpu.pipeline_mode<synchronous>, transform_indices = @transform_6, window_bounds = array<i64: 4, 32>}, {pipeline_mode = #tpu.pipeline_mode<synchronous>, transform_indices = @transform_7, window_bounds = array<i64: 4, 1>}, {transform_indices = @transform_8, window_bounds = array<i64: 1, 4, 256>}]} {
    %c0 = arith.constant 0 : index
    %c0_0 = arith.constant 0 : index
    %c0_1 = arith.constant 0 : index
    %c0_2 = arith.constant 0 : index
    %0 = vector.load %arg1[%c0, %c0_0, %c0_1, %c0_2] : memref<1x16x16x32xbf16, #tpu.memory_space<vmem>>, vector<1x16x16x32xbf16>
    %1 = vector.shape_cast %0 : vector<1x16x16x32xbf16> to vector<16x16x32xbf16>
    %c0_3 = arith.constant 0 : index
    %c0_4 = arith.constant 0 : index
    %c0_5 = arith.constant 0 : index
    %c0_6 = arith.constant 0 : index
    %2 = vector.load %arg2[%c0_3, %c0_4, %c0_5, %c0_6] : memref<1x16x16x32xbf16, #tpu.memory_space<vmem>>, vector<1x16x16x32xbf16>
    %3 = vector.shape_cast %2 : vector<1x16x16x32xbf16> to vector<16x16x32xbf16>
    %4 = arith.addf %1, %3 : vector<16x16x32xbf16>
    %cst = arith.constant 0.000000e+00 : bf16
    %5 = vector.broadcast %cst : bf16 to vector<18x18x32xbf16>
    %c0_7 = arith.constant 0 : index
    %c0_8 = arith.constant 0 : index
    %c0_9 = arith.constant 0 : index
    %6 = vector.load %arg10[%c0_7, %c0_8, %c0_9] : memref<18x18x32xbf16, #tpu.memory_space<vmem>>, vector<18x18x32xbf16>
    tpu.vector_store %arg10[%c0_7, %c0_8, %c0_9], %5 {strides = array<i32>} : memref<18x18x32xbf16, #tpu.memory_space<vmem>>, vector<18x18x32xbf16>,
    %c1 = arith.constant 1 : index
    %c1_10 = arith.constant 1 : index
    %c0_11 = arith.constant 0 : index
    %7 = vector.load %arg10[%c1, %c1_10, %c0_11] : memref<18x18x32xbf16, #tpu.memory_space<vmem>>, vector<16x16x32xbf16>
    tpu.vector_store %arg10[%c1, %c1_10, %c0_11], %4 {strides = array<i32>} : memref<18x18x32xbf16, #tpu.memory_space<vmem>>, vector<16x16x32xbf16>,
    %c0_12 = arith.constant 0 : index
    %c0_13 = arith.constant 0 : index
    %c0_14 = arith.constant 0 : index
    %8 = vector.load %arg10[%c0_12, %c0_13, %c0_14] : memref<18x18x32xbf16, #tpu.memory_space<vmem>>, vector<18x18x32xbf16>
    %9 = vector.extract_strided_slice %8 {offsets = [0, 0, 0], sizes = [16, 16, 32], strides = [1, 1, 1]} : vector<18x18x32xbf16> to vector<16x16x32xbf16>
    %10 = vector.extract_strided_slice %8 {offsets = [0, 1, 0], sizes = [16, 16, 32], strides = [1, 1, 1]} : vector<18x18x32xbf16> to vector<16x16x32xbf16>
    %11 = vector.extract_strided_slice %8 {offsets = [0, 2, 0], sizes = [16, 16, 32], strides = [1, 1, 1]} : vector<18x18x32xbf16> to vector<16x16x32xbf16>
    %12 = vector.extract_strided_slice %8 {offsets = [1, 0, 0], sizes = [16, 16, 32], strides = [1, 1, 1]} : vector<18x18x32xbf16> to vector<16x16x32xbf16>
    %13 = vector.extract_strided_slice %8 {offsets = [1, 1, 0], sizes = [16, 16, 32], strides = [1, 1, 1]} : vector<18x18x32xbf16> to vector<16x16x32xbf16>
    %14 = vector.extract_strided_slice %8 {offsets = [1, 2, 0], sizes = [16, 16, 32], strides = [1, 1, 1]} : vector<18x18x32xbf16> to vector<16x16x32xbf16>
    %15 = vector.extract_strided_slice %8 {offsets = [2, 0, 0], sizes = [16, 16, 32], strides = [1, 1, 1]} : vector<18x18x32xbf16> to vector<16x16x32xbf16>
    %16 = vector.extract_strided_slice %8 {offsets = [2, 1, 0], sizes = [16, 16, 32], strides = [1, 1, 1]} : vector<18x18x32xbf16> to vector<16x16x32xbf16>
    %17 = vector.extract_strided_slice %8 {offsets = [2, 2, 0], sizes = [16, 16, 32], strides = [1, 1, 1]} : vector<18x18x32xbf16> to vector<16x16x32xbf16>
    %18 = tpu.concatenate %9, %10, %11, %12, %13, %14, %15, %16, %17 in 2 : vector<16x16x32xbf16>, vector<16x16x32xbf16>, vector<16x16x32xbf16>, vector<16x16x32xbf16>, vector<16x16x32xbf16>, vector<16x16x32xbf16>, vector<16x16x32xbf16>, vector<16x16x32xbf16>, vector<16x16x32xbf16> -> vector<16x16x288xbf16>
    %19 = vector.shape_cast %18 : vector<16x16x288xbf16> to vector<256x288xbf16>
    %c0_15 = arith.constant 0 : index
    %c0_16 = arith.constant 0 : index
    %20 = vector.load %arg3[%c0_15, %c0_16] : memref<288x32xbf16, #tpu.memory_space<vmem>>, vector<288x32xbf16>
    %cst_17 = arith.constant dense<0.000000e+00> : vector<256x32xf32>
    %21 = tpu.matmul %19, %20, %cst_17 {dimension_numbers = #tpu.dot_dimension_numbers<[1], [0], [0], [1], [0, 0, 1, 1], [], []>} : vector<256x288xbf16>, vector<288x32xbf16>, vector<256x32xf32> -> vector<256x32xf32>
    %c0_18 = arith.constant 0 : index
    %c0_19 = arith.constant 0 : index
    %22 = vector.load %arg4[%c0_18, %c0_19] : memref<1x32xf32, #tpu.memory_space<vmem>>, vector<1x32xf32>
    %23 = vector.broadcast %22 : vector<1x32xf32> to vector<256x32xf32>
    %24 = arith.addf %21, %23 : vector<256x32xf32>
    %25 = tpu.iota {dimensions = array<i32: 1>} : vector<1x32xi32>
    %c32_i32 = arith.constant 32 : i32
    %c0_i32 = arith.constant 0 : i32
    %26 = arith.cmpi eq, %c32_i32, %c0_i32 : i32
    %c1_i32 = arith.constant 1 : i32
    %27 = arith.select %26, %c1_i32, %c32_i32 : i32
    %28 = vector.broadcast %27 : i32 to vector<1x32xi32>
    %29 = arith.remsi %25, %28 : vector<1x32xi32>
    %c0_i32_20 = arith.constant 0 : i32
    %30 = vector.broadcast %c0_i32_20 : i32 to vector<1x32xi32>
    %31 = arith.cmpi ne, %29, %30 : vector<1x32xi32>
    %c0_i32_21 = arith.constant 0 : i32
    %32 = vector.broadcast %c0_i32_21 : i32 to vector<1x32xi32>
    %33 = arith.cmpi slt, %29, %32 : vector<1x32xi32>
    %c0_i32_22 = arith.constant 0 : i32
    %34 = arith.cmpi slt, %27, %c0_i32_22 : i32
    %35 = vector.broadcast %34 : i1 to vector<1x32xi1>
    %36 = vector.broadcast %35 : vector<1x32xi1> to vector<1x32xi1>
    %37 = arith.xori %33, %36 : vector<1x32xi1>
    %38 = arith.andi %37, %31 : vector<1x32xi1>
    %39 = vector.broadcast %27 : i32 to vector<1x32xi32>
    %40 = arith.addi %29, %39 : vector<1x32xi32>
    %41 = arith.select %38, %40, %29 : vector<1x32xi1>, vector<1x32xi32>
    %c16_i32 = arith.constant 16 : i32
    %42 = vector.broadcast %c16_i32 : i32 to vector<1x32xi32>
    %43 = arith.cmpi slt, %41, %42 : vector<1x32xi32>
    %cst_23 = arith.constant dense<0.000000e+00> : vector<32xf32>
    %44 = vector.multi_reduction <add>, %24, %cst_23 [0] : vector<256x32xf32> to vector<32xf32>
    %45 = vector.shape_cast %44 : vector<32xf32> to vector<1x32xf32>
    %46 = arith.mulf %24, %24 : vector<256x32xf32>
    %cst_24 = arith.constant dense<0.000000e+00> : vector<32xf32>
    %47 = vector.multi_reduction <add>, %46, %cst_24 [0] : vector<256x32xf32> to vector<32xf32>
    %48 = vector.shape_cast %47 : vector<32xf32> to vector<1x32xf32>
    %cst_25 = arith.constant 0.000000e+00 : f32
    %49 = vector.broadcast %cst_25 : f32 to vector<1x32xf32>
    %50 = arith.select %43, %45, %49 : vector<1x32xi1>, vector<1x32xf32>
    %51 = vector.shape_cast %50 : vector<1x32xf32> to vector<1x1x32xf32>
    %cst_26 = arith.constant dense<0.000000e+00> : vector<1xf32>
    %52 = vector.multi_reduction <add>, %51, %cst_26 [1, 2] : vector<1x1x32xf32> to vector<1xf32>
    %53 = vector.shape_cast %52 : vector<1xf32> to vector<1x1x1xf32>
    %54 = vector.extract %53[0, 0, 0] : f32 from vector<1x1x1xf32>
    %55 = vector.shape_cast %45 : vector<1x32xf32> to vector<1x1x32xf32>
    %cst_27 = arith.constant dense<0.000000e+00> : vector<1xf32>
    %56 = vector.multi_reduction <add>, %55, %cst_27 [1, 2] : vector<1x1x32xf32> to vector<1xf32>
    %57 = vector.shape_cast %56 : vector<1xf32> to vector<1x1x1xf32>
    %58 = vector.extract %57[0, 0, 0] : f32 from vector<1x1x1xf32>
    %cst_28 = arith.constant 0.000000e+00 : f32
    %59 = vector.broadcast %cst_28 : f32 to vector<1x32xf32>
    %60 = arith.select %43, %48, %59 : vector<1x32xi1>, vector<1x32xf32>
    %61 = vector.shape_cast %60 : vector<1x32xf32> to vector<1x1x32xf32>
    %cst_29 = arith.constant dense<0.000000e+00> : vector<1xf32>
    %62 = vector.multi_reduction <add>, %61, %cst_29 [1, 2] : vector<1x1x32xf32> to vector<1xf32>
    %63 = vector.shape_cast %62 : vector<1xf32> to vector<1x1x1xf32>
    %64 = vector.extract %63[0, 0, 0] : f32 from vector<1x1x1xf32>
    %65 = vector.shape_cast %48 : vector<1x32xf32> to vector<1x1x32xf32>
    %cst_30 = arith.constant dense<0.000000e+00> : vector<1xf32>
    %66 = vector.multi_reduction <add>, %65, %cst_30 [1, 2] : vector<1x1x32xf32> to vector<1xf32>
    %67 = vector.shape_cast %66 : vector<1xf32> to vector<1x1x1xf32>
    %68 = vector.extract %67[0, 0, 0] : f32 from vector<1x1x1xf32>
    %69 = arith.subf %58, %54 : f32
    %70 = vector.broadcast %54 : f32 to vector<1x32xf32>
    %71 = vector.broadcast %69 : f32 to vector<1x32xf32>
    %72 = arith.select %43, %70, %71 : vector<1x32xi1>, vector<1x32xf32>
    %cst_31 = arith.constant 4.096000e+03 : f32
    %73 = vector.broadcast %cst_31 : f32 to vector<1x32xf32>
    %74 = arith.divf %72, %73 : vector<1x32xf32>
    %75 = arith.subf %68, %64 : f32
    %76 = vector.broadcast %64 : f32 to vector<1x32xf32>
    %77 = vector.broadcast %75 : f32 to vector<1x32xf32>
    %78 = arith.select %43, %76, %77 : vector<1x32xi1>, vector<1x32xf32>
    %cst_32 = arith.constant 4.096000e+03 : f32
    %79 = vector.broadcast %cst_32 : f32 to vector<1x32xf32>
    %80 = arith.divf %78, %79 : vector<1x32xf32>
    %81 = arith.mulf %74, %74 : vector<1x32xf32>
    %82 = arith.subf %80, %81 : vector<1x32xf32>
    %cst_33 = arith.constant 9.99999974E-6 : f32
    %83 = vector.broadcast %cst_33 : f32 to vector<1x32xf32>
    %84 = arith.addf %82, %83 : vector<1x32xf32>
    %85 = math.rsqrt %84 : vector<1x32xf32>
    %86 = vector.broadcast %74 : vector<1x32xf32> to vector<256x32xf32>
    %87 = arith.subf %24, %86 : vector<256x32xf32>
    %88 = vector.broadcast %85 : vector<1x32xf32> to vector<256x32xf32>
    %89 = arith.mulf %87, %88 : vector<256x32xf32>
    %c0_34 = arith.constant 0 : index
    %c0_35 = arith.constant 0 : index
    %90 = vector.load %arg5[%c0_34, %c0_35] : memref<1x32xf32, #tpu.memory_space<vmem>>, vector<1x32xf32>
    %91 = vector.broadcast %90 : vector<1x32xf32> to vector<256x32xf32>
    %92 = arith.mulf %89, %91 : vector<256x32xf32>
    %c0_36 = arith.constant 0 : index
    %c0_37 = arith.constant 0 : index
    %93 = vector.load %arg6[%c0_36, %c0_37] : memref<1x32xf32, #tpu.memory_space<vmem>>, vector<1x32xf32>
    %94 = vector.broadcast %93 : vector<1x32xf32> to vector<256x32xf32>
    %95 = arith.addf %92, %94 : vector<256x32xf32>
    %96 = arith.negf %95 : vector<256x32xf32>
    %97 = math.exp %96 : vector<256x32xf32>
    %cst_38 = arith.constant 1.000000e+00 : f32
    %98 = vector.broadcast %cst_38 : f32 to vector<256x32xf32>
    %99 = arith.addf %98, %97 : vector<256x32xf32>
    %100 = arith.divf %98, %99 : vector<256x32xf32>
    %101 = arith.mulf %95, %100 : vector<256x32xf32>
    %c0_39 = arith.constant 0 : index
    %c0_40 = arith.constant 0 : index
    %102 = vector.load %arg7[%c0_39, %c0_40] : memref<4x32xbf16, #tpu.memory_space<vmem>>, vector<4x32xbf16>
    %103 = arith.truncf %101 : vector<256x32xf32> to vector<256x32xbf16>
    %cst_41 = arith.constant dense<0.000000e+00> : vector<4x256xf32>
    %104 = tpu.matmul %102, %103, %cst_41 {dimension_numbers = #tpu.dot_dimension_numbers<[1], [1], [0], [0], [0, 0, 1, 0], [], []>} : vector<4x32xbf16>, vector<256x32xbf16>, vector<4x256xf32> -> vector<4x256xf32>
    %c0_42 = arith.constant 0 : index
    %c0_43 = arith.constant 0 : index
    %105 = vector.load %arg8[%c0_42, %c0_43] : memref<4x1xf32, #tpu.memory_space<vmem>>, vector<4x1xf32>
    %106 = vector.broadcast %105 : vector<4x1xf32> to vector<4x256xf32>
    %107 = arith.addf %104, %106 : vector<4x256xf32>
    %108 = vector.shape_cast %107 : vector<4x256xf32> to vector<1x4x256xf32>
    %c0_44 = arith.constant 0 : index
    %c0_45 = arith.constant 0 : index
    %c0_46 = arith.constant 0 : index
    %109 = vector.load %arg9[%c0_44, %c0_45, %c0_46] : memref<1x4x256xf32, #tpu.memory_space<vmem>>, vector<1x4x256xf32>
    tpu.vector_store %arg9[%c0_44, %c0_45, %c0_46], %108 {strides = array<i32>} : memref<1x4x256xf32, #tpu.memory_space<vmem>>, vector<1x4x256xf32>,
    return
  }
  func.func @transform_0(%arg0: i32) -> (i32, i32, i32, i32) {
    %c0_i32 = arith.constant 0 : i32
    %c0_i32_0 = arith.constant 0 : i32
    %c0_i32_1 = arith.constant 0 : i32
    %c0_i32_2 = arith.constant 0 : i32
    return %arg0, %c0_i32, %c0_i32_0, %c0_i32_1 : i32, i32, i32, i32
  }
  func.func @transform_1(%arg0: i32) -> (i32, i32, i32, i32) {
    %c0_i32 = arith.constant 0 : i32
    %c0_i32_0 = arith.constant 0 : i32
    %c0_i32_1 = arith.constant 0 : i32
    %c0_i32_2 = arith.constant 0 : i32
    return %arg0, %c0_i32, %c0_i32_0, %c0_i32_1 : i32, i32, i32, i32
  }
  func.func @transform_2(%arg0: i32) -> (i32, i32) {
    %c0_i32 = arith.constant 0 : i32
    %c0_i32_0 = arith.constant 0 : i32
    %c0_i32_1 = arith.constant 0 : i32
    return %c0_i32, %c0_i32_0 : i32, i32
  }
  func.func @transform_3(%arg0: i32) -> (i32, i32) {
    %c0_i32 = arith.constant 0 : i32
    %c0_i32_0 = arith.constant 0 : i32
    %c0_i32_1 = arith.constant 0 : i32
    return %c0_i32, %c0_i32_0 : i32, i32
  }
  func.func @transform_4(%arg0: i32) -> (i32, i32) {
    %c0_i32 = arith.constant 0 : i32
    %c0_i32_0 = arith.constant 0 : i32
    %c0_i32_1 = arith.constant 0 : i32
    return %c0_i32, %c0_i32_0 : i32, i32
  }
  func.func @transform_5(%arg0: i32) -> (i32, i32) {
    %c0_i32 = arith.constant 0 : i32
    %c0_i32_0 = arith.constant 0 : i32
    %c0_i32_1 = arith.constant 0 : i32
    return %c0_i32, %c0_i32_0 : i32, i32
  }
  func.func @transform_6(%arg0: i32) -> (i32, i32) {
    %c0_i32 = arith.constant 0 : i32
    %c0_i32_0 = arith.constant 0 : i32
    %c0_i32_1 = arith.constant 0 : i32
    return %c0_i32, %c0_i32_0 : i32, i32
  }
  func.func @transform_7(%arg0: i32) -> (i32, i32) {
    %c0_i32 = arith.constant 0 : i32
    %c0_i32_0 = arith.constant 0 : i32
    %c0_i32_1 = arith.constant 0 : i32
    return %c0_i32, %c0_i32_0 : i32, i32
  }
  func.func @transform_8(%arg0: i32) -> (i32, i32, i32) {
    %c0_i32 = arith.constant 0 : i32
    %c0_i32_0 = arith.constant 0 : i32
    %c0_i32_1 = arith.constant 0 : i32
    return %arg0, %c0_i32, %c0_i32_0 : i32, i32, i32
  }
}

</mosaic_0001>

<llo_original>
// kernel: decoder_forward.2
$region0: #{decoder_forward.2}
  #allocation0 [shape = 'u32[]', space=smem, size = 0x4, offset = 0x4, fixed_abs, tag = 'smem constant byte address 0x4 - core index']
  #allocation1 [shape = 'u32[72,128]{1,0:T(1,128)}', space=vmem, size = 0x9000, scoped, tag = 'internal scratch']
  #allocation2 [shape = 'bf16[10,10,32]{2,1,0:T(8,128)(2,1)}', space=vmem, size = 0xa000, scoped, tag = 'scratch operand']
  %s0 = inlined_call_operand.vmem [shape: bf16[2,8,8,32], index: 0, kind: input, shape index: {}]
  %s1 = inlined_call_operand.vmem [shape: bf16[288,128], index: 1, kind: input, shape index: {}]
  %s2 = inlined_call_operand.vmem [shape: f32[1,128], index: 2, kind: input, shape index: {}, may-alias: {2,4}]
  %s3 = inlined_call_operand.vmem [shape: f32[1,128], index: 3, kind: input, shape index: {}]
  %s4 = inlined_call_operand.vmem [shape: f32[1,128], index: 4, kind: input, shape index: {}, may-alias: {2,4}]
  %s5 = inlined_call_operand.vmem [shape: bf16[2,8,2,8,64], index: 5, kind: output, shape index: {}]
  %s6 = sld [smem:[#allocation0]]
  $region53: #{decoder_forward.2} parent=0
    _
  %s8 = ssub.s32 1, %s6
  %s9 = scalar_select 0, %s8, %s6
  loop: start=0, step=1, limit=4
  $region2: #{decoder_forward.2} parent=0 // loop_pre_header
    _
  $region3: #{decoder_forward.2} parent=0 // loop_header
    %s11 = sphi 0, %s15
    %p12 = scmp.ge.s32.totalorder %s11, 4
    %s21 = sphi 0, %s23
    %s24 = sphi 0, %s21
    %s25 = sphi 0, %s24
    %s41 = sphi 0, %s25
    %s45 = sphi 0, %s45
    %s47 = sphi 0, %s45
    %s48 = sphi 0, %s47
    %s62 = sphi 0, %s48
    %s66 = sphi 0, %s66
    %s68 = sphi 0, %s66
    %s69 = sphi 0, %s68
    %s83 = sphi 0, %s69
    %s87 = sphi 0, %s87
    %s89 = sphi 0, %s87
    %s90 = sphi 0, %s89
    %s104 = sphi 0, %s90
    %s108 = sphi 0, %s108
    %s110 = sphi 0, %s108
    %s111 = sphi 0, %s110
    %s125 = sphi 0, %s111
    %s131 = sphi 0, %s133
    %s134 = sphi 0, %s131
    %s135 = sphi 0, %s134
    %s151 = sphi 0, %s135
  $region4: #{decoder_forward.2} parent=0 // loop_header_branch
    %14 = sbr.rel (%p12) target = $region8
  $region5: #{decoder_forward.2} parent=0 // loop_body
    %s16 = ssub.s32 %s11, 1
    %s17 = ssub.s32 %s11, 2
    %s18 = sadd.s32 %s11, 1
    %s19 = ssub.s32 %s11, %s18
    %p20 = scmp.eq.s32.totalorder %s19, 0
    %s22 = sadd.s32 %s21, 1
    %s23 = scalar_select %p20, %s21, %s22
    %p26 = pneg %p20
    %p27 = scmp.eq.s32.totalorder %s11, 1
    %p28 = por %p26, %p27
    %p29 = scmp.ne.s32.totalorder %s21, %s24
    %p30 = scmp.eq.s32.totalorder %s11, 0
    %p31 = por %p29, %p30
    %p32 = scmp.ne.s32.totalorder %s21, %s24
    %p33 = scmp.eq.s32.totalorder %s16, 1
    %p34 = por %p32, %p33
    %p35 = scmp.ne.s32.totalorder %s24, %s25
    %p36 = scmp.eq.s32.totalorder %s16, 0
    %p37 = por %p35, %p36
    %p38 = scmp.ne.s32.totalorder %s24, %s25
    %p39 = scmp.eq.s32.totalorder %s17, 1
    %p40 = por %p38, %p39
    %p42 = scmp.ne.s32.totalorder %s25, %s41
    %p43 = scmp.eq.s32.totalorder %s17, 0
    %p44 = por %p42, %p43
    %s46 = sadd.s32 %s45, 1
    %p49 = scmp.eq.s32.totalorder %s11, 1
    %p50 = scmp.ne.s32.totalorder %s45, %s47
    %p51 = scmp.eq.s32.totalorder %s11, 0
    %p52 = por %p50, %p51
    %p53 = scmp.ne.s32.totalorder %s45, %s47
    %p54 = scmp.eq.s32.totalorder %s16, 1
    %p55 = por %p53, %p54
    %p56 = scmp.ne.s32.totalorder %s47, %s48
    %p57 = scmp.eq.s32.totalorder %s16, 0
    %p58 = por %p56, %p57
    %p59 = scmp.ne.s32.totalorder %s47, %s48
    %p60 = scmp.eq.s32.totalorder %s17, 1
    %p61 = por %p59, %p60
    %p63 = scmp.ne.s32.totalorder %s48, %s62
    %p64 = scmp.eq.s32.totalorder %s17, 0
    %p65 = por %p63, %p64
    %s67 = sadd.s32 %s66, 1
    %p70 = scmp.eq.s32.totalorder %s11, 1
    %p71 = scmp.ne.s32.totalorder %s66, %s68
    %p72 = scmp.eq.s32.totalorder %s11, 0
    %p73 = por %p71, %p72
    %p74 = scmp.ne.s32.totalorder %s66, %s68
    %p75 = scmp.eq.s32.totalorder %s16, 1
    %p76 = por %p74, %p75
    %p77 = scmp.ne.s32.totalorder %s68, %s69
    %p78 = scmp.eq.s32.totalorder %s16, 0
    %p79 = por %p77, %p78
    %p80 = scmp.ne.s32.totalorder %s68, %s69
    %p81 = scmp.eq.s32.totalorder %s17, 1
    %p82 = por %p80, %p81
    %p84 = scmp.ne.s32.totalorder %s69, %s83
    %p85 = scmp.eq.s32.totalorder %s17, 0
    %p86 = por %p84, %p85
    %s88 = sadd.s32 %s87, 1
    %p91 = scmp.eq.s32.totalorder %s11, 1
    %p92 = scmp.ne.s32.totalorder %s87, %s89
    %p93 = scmp.eq.s32.totalorder %s11, 0
    %p94 = por %p92, %p93
    %p95 = scmp.ne.s32.totalorder %s87, %s89
    %p96 = scmp.eq.s32.totalorder %s16, 1
    %p97 = por %p95, %p96
    %p98 = scmp.ne.s32.totalorder %s89, %s90
    %p99 = scmp.eq.s32.totalorder %s16, 0
    %p100 = por %p98, %p99
    %p101 = scmp.ne.s32.totalorder %s89, %s90
    %p102 = scmp.eq.s32.totalorder %s17, 1
    %p103 = por %p101, %p102
    %p105 = scmp.ne.s32.totalorder %s90, %s104
    %p106 = scmp.eq.s32.totalorder %s17, 0
    %p107 = por %p105, %p106
    %s109 = sadd.s32 %s108, 1
    %p112 = scmp.eq.s32.totalorder %s11, 1
    %p113 = scmp.ne.s32.totalorder %s108, %s110
    %p114 = scmp.eq.s32.totalorder %s11, 0
    %p115 = por %p113, %p114
    %p116 = scmp.ne.s32.totalorder %s108, %s110
    %p117 = scmp.eq.s32.totalorder %s16, 1
    %p118 = por %p116, %p117
    %p119 = scmp.ne.s32.totalorder %s110, %s111
    %p120 = scmp.eq.s32.totalorder %s16, 0
    %p121 = por %p119, %p120
    %p122 = scmp.ne.s32.totalorder %s110, %s111
    %p123 = scmp.eq.s32.totalorder %s17, 1
    %p124 = por %p122, %p123
    %p126 = scmp.ne.s32.totalorder %s111, %s125
    %p127 = scmp.eq.s32.totalorder %s17, 0
    %p128 = por %p126, %p127
    %s129 = ssub.s32 %s11, %s18
    %p130 = scmp.eq.s32.totalorder %s129, 0
    %s132 = sadd.s32 %s131, 1
    %s133 = scalar_select %p130, %s131, %s132
    %p136 = pneg %p130
    %p137 = scmp.eq.s32.totalorder %s11, 1
    %p138 = por %p136, %p137
    %p139 = scmp.ne.s32.totalorder %s131, %s134
    %p140 = scmp.eq.s32.totalorder %s11, 0
    %p141 = por %p139, %p140
    %p142 = scmp.ne.s32.totalorder %s131, %s134
    %p143 = scmp.eq.s32.totalorder %s16, 1
    %p144 = por %p142, %p143
    %p145 = scmp.ne.s32.totalorder %s134, %s135
    %p146 = scmp.eq.s32.totalorder %s16, 0
    %p147 = por %p145, %p146
    %p148 = scmp.ne.s32.totalorder %s134, %s135
    %p149 = scmp.eq.s32.totalorder %s17, 1
    %p150 = por %p148, %p149
    %p152 = scmp.ne.s32.totalorder %s135, %s151
    %p153 = scmp.eq.s32.totalorder %s17, 0
    %p154 = por %p152, %p153
    %p155 = scmp.le.s32.totalorder 1, %s11
    %p156 = scmp.lt.s32.totalorder %s11, 3
    %p157 = pnand %p155, %p156
    %p158 = pneg %p157
    // Predicated region
    $region9: #{decoder_forward.2} parent=5 // pred_check
      _
    $region10: #{decoder_forward.2} parent=5 // pred_check_branch
      %160 = sbr.rel (%p157) target = $region12
    $region11: #{decoder_forward.2} parent=5 // pred_region
      %s161 = ssub.s32 %s11, 1
      // Predicated region
      $region13: #{decoder_forward.2} parent=11 // pred_check
        %p162 = pneg %p58
      $region14: #{decoder_forward.2} parent=11 // pred_check_branch
        %164 = sbr.rel (%p162) target = $region16
      $region15: #{decoder_forward.2} parent=11 // pred_region
        _
      $region16: #{decoder_forward.2} parent=11 // pred_fallthru
        _
      // Predicated region
      $region17: #{decoder_forward.2} parent=11 // pred_check
        %p165 = pneg %p79
      $region18: #{decoder_forward.2} parent=11 // pred_check_branch
        %167 = sbr.rel (%p165) target = $region20
      $region19: #{decoder_forward.2} parent=11 // pred_region
        _
      $region20: #{decoder_forward.2} parent=11 // pred_fallthru
        _
      // Predicated region
      $region21: #{decoder_forward.2} parent=11 // pred_check
        %p168 = pneg %p100
      $region22: #{decoder_forward.2} parent=11 // pred_check_branch
        %170 = sbr.rel (%p168) target = $region24
      $region23: #{decoder_forward.2} parent=11 // pred_region
        _
      $region24: #{decoder_forward.2} parent=11 // pred_fallthru
        _
      // Predicated region
      $region25: #{decoder_forward.2} parent=11 // pred_check
        %p171 = pneg %p121
      $region26: #{decoder_forward.2} parent=11 // pred_check_branch
        %173 = sbr.rel (%p171) target = $region28
      $region27: #{decoder_forward.2} parent=11 // pred_region
        _
      $region28: #{decoder_forward.2} parent=11 // pred_fallthru
        _
    $region12: #{decoder_forward.2} parent=5 // pred_fallthru
      _
    %p174 = scmp.lt.s32.totalorder %s11, 2
    // Predicated region
    $region29: #{decoder_forward.2} parent=5 // pred_check
      %p175 = pneg %p174
    $region30: #{decoder_forward.2} parent=5 // pred_check_branch
      %177 = sbr.rel (%p175) target = $region32
    $region31: #{decoder_forward.2} parent=5 // pred_region
      // Predicated region
      $region33: #{decoder_forward.2} parent=31 // pred_check
        %p178 = pneg %p31
      $region34: #{decoder_forward.2} parent=31 // pred_check_branch
        %180 = sbr.rel (%p178) target = $region36
      $region35: #{decoder_forward.2} parent=31 // pred_region
        %p181 = scmp.lt.s32.totalorder %s11, 1
        %s182 = scalar_select %p181, %s11, 1
        %s183 = smul.addr %s182, 8
        %s184 = smul.addr %s183, 4
        %s185 = scalar_lea.vmem %s0, %s184
      $region36: #{decoder_forward.2} parent=31 // pred_fallthru
        _
    $region32: #{decoder_forward.2} parent=5 // pred_fallthru
      _
    %p186 = scmp.le.s32.totalorder 1, %s11
    %p187 = scmp.lt.s32.totalorder %s11, 3
    %p188 = pnand %p186, %p187
    %p189 = pneg %p188
    // Predicated region
    $region37: #{decoder_forward.2} parent=5 // pred_check
      _
    $region38: #{decoder_forward.2} parent=5 // pred_check_branch
      %191 = sbr.rel (%p188) target = $region40
    $region39: #{decoder_forward.2} parent=5 // pred_region
      %s192 = ssub.s32 %s11, 1
      %p193 = scmp.lt.s32.totalorder %s16, 1
      %s194 = scalar_select %p193, %s16, 1
      %s195 = smul.addr %s194, 8
      %s196 = smul.addr %s195, 4
      %s197 = scalar_lea.vmem %s0, %s196
      %p198 = pneg %p37
      %p199 = pneg %p34
      %p200 = pneg %p58
      %p201 = pneg %p55
      %p202 = pneg %p79
      %p203 = pneg %p76
      %p204 = pneg %p100
      %p205 = pneg %p97
      %p206 = pneg %p121
      %p207 = pneg %p118
      %p208 = pneg %p147
      %p209 = pneg %p144
      %p210 = scmp.lt.s32.totalorder %s16, 1
      %s211 = scalar_select %p210, %s16, 1
      %s212 = smul.addr %s211, 16
      %s213 = smul.addr %s212, 4
      %s214 = scalar_lea.vmem %s5, %s213
      %p215 = scmp.lt.s32.totalorder %s16, 1
      %s216 = scalar_select %p215, %s16, 1
      %s217 = smul.addr %s216, 8
      %s218 = smul.addr %s217, 4
      %s219 = scalar_lea.vmem %s0, %s218
      %p220 = scmp.lt.s32.totalorder %s16, 1
      %s221 = scalar_select %p220, %s16, 1
      %s222 = smul.addr %s221, 16
      %s223 = smul.addr %s222, 4
      %s224 = scalar_lea.vmem %s5, %s223
      %v226 = vld [vmem:[%s219] sm:$0xf]
      %v227 = vld [vmem:[%s219 + $0x4] sm:$0xf]
      %v228 = vld [vmem:[%s219 + $0x8] sm:$0xf]
      %v229 = vld [vmem:[%s219 + $0xc] sm:$0xf]
      %v230 = vld [vmem:[%s219 + $0x10] sm:$0xf]
      %v231 = vld [vmem:[%s219 + $0x14] sm:$0xf]
      %v232 = vld [vmem:[%s219 + $0x18] sm:$0xf]
      %v233 = vld [vmem:[%s219 + $0x1c] sm:$0xf]
      %vm234 = vcmask 257024
      %235 = vst.msk [vmem:[#allocation2] sm:$0xf] %vm234, 0
      %vm236 = vcmask 253952
      %237 = vst.msk [vmem:[#allocation2 + $0x4] sm:$0x1] %vm236, 0
      %238 = vst.msk [vmem:[#allocation2 + $0x8] sm:$0xf] %vm234, 0
      %239 = vst.msk [vmem:[#allocation2 + $0xc] sm:$0x1] %vm236, 0
      %240 = vst.msk [vmem:[#allocation2 + $0x10] sm:$0xf] %vm234, 0
      %241 = vst.msk [vmem:[#allocation2 + $0x14] sm:$0x1] %vm236, 0
      %242 = vst.msk [vmem:[#allocation2 + $0x18] sm:$0xf] %vm234, 0
      %243 = vst.msk [vmem:[#allocation2 + $0x1c] sm:$0x1] %vm236, 0
      %244 = vst.msk [vmem:[#allocation2 + $0x20] sm:$0xf] %vm234, 0
      %245 = vst.msk [vmem:[#allocation2 + $0x24] sm:$0x1] %vm236, 0
      %246 = vst.msk [vmem:[#allocation2 + $0x28] sm:$0xf] %vm234, 0
      %247 = vst.msk [vmem:[#allocation2 + $0x2c] sm:$0x1] %vm236, 0
      %248 = vst.msk [vmem:[#allocation2 + $0x30] sm:$0xf] %vm234, 0
      %249 = vst.msk [vmem:[#allocation2 + $0x34] sm:$0x1] %vm236, 0
      %250 = vst.msk [vmem:[#allocation2 + $0x38] sm:$0xf] %vm234, 0
      %251 = vst.msk [vmem:[#allocation2 + $0x3c] sm:$0x1] %vm236, 0
      %252 = vst.msk [vmem:[#allocation2 + $0x40] sm:$0xf] %vm234, 0
      %253 = vst.msk [vmem:[#allocation2 + $0x44] sm:$0x1] %vm236, 0
      %254 = vst.msk [vmem:[#allocation2 + $0x48] sm:$0xf] %vm234, 0
      %255 = vst.msk [vmem:[#allocation2 + $0x4c] sm:$0x1] %vm236, 0
      %v257 = vshrl.u32 %v226, 16
      %v259 = vrot.slane %v257, 7
      %v260 = vshll.u32 %v226, 16
      %v262 = vor.u32 %v259, %v260
      %v263 = vrot.slane %v259, 4
      %v265 = vshrl.u32 %v227, 16
      %v267 = vrot.slane %v265, 7
      %v268 = vshll.u32 %v227, 16
      %v270 = vor.u32 %v267, %v268
      %v271 = vrot.slane %v267, 4
      %v273 = vshrl.u32 %v228, 16
      %v275 = vrot.slane %v273, 7
      %v276 = vshll.u32 %v228, 16
      %v278 = vor.u32 %v275, %v276
      %v279 = vrot.slane %v275, 4
      %v281 = vshrl.u32 %v229, 16
      %v283 = vrot.slane %v281, 7
      %v284 = vshll.u32 %v229, 16
      %v286 = vor.u32 %v283, %v284
      %v287 = vrot.slane %v283, 4
      %v289 = vshrl.u32 %v230, 16
      %v291 = vrot.slane %v289, 7
      %v292 = vshll.u32 %v230, 16
      %v294 = vor.u32 %v291, %v292
      %v295 = vrot.slane %v291, 4
      %v297 = vshrl.u32 %v231, 16
      %v299 = vrot.slane %v297, 7
      %v300 = vshll.u32 %v231, 16
      %v302 = vor.u32 %v299, %v300
      %v303 = vrot.slane %v299, 4
      %v305 = vshrl.u32 %v232, 16
      %v307 = vrot.slane %v305, 7
      %v308 = vshll.u32 %v232, 16
      %v310 = vor.u32 %v307, %v308
      %v311 = vrot.slane %v307, 4
      %v313 = vshrl.u32 %v233, 16
      %v315 = vrot.slane %v313, 7
      %v316 = vshll.u32 %v233, 16
      %v318 = vor.u32 %v315, %v316
      %v319 = vrot.slane %v315, 4
      %s336 = scalar_lea.vmem [#allocation2], 8
      %vm337 = vcmask 257024
      %vm338 = vsmask.f32 7938
      %vm339 = vmand %vm337, %vm338
      %v340 = vld [vmem:[%s336] sm:$0xf]
      %v341 = vsel %vm339, %v262, %v340
      %342 = vst [vmem:[%s336] sm:$0xf] %v341
      %vm343 = vcmask 253952
      %vm344 = vsmask.f32 256
      %vm345 = vmand %vm343, %vm344
      %v346 = vld [vmem:[%s336 + $0x4] sm:$0x1]
      %v347 = vsel %vm345, %v263, %v346
      %348 = vst [vmem:[%s336 + $0x4] sm:$0x1] %v347
      %v349 = vld [vmem:[%s336 + $0x8] sm:$0xf]
      %v350 = vsel %vm339, %v270, %v349
      %351 = vst [vmem:[%s336 + $0x8] sm:$0xf] %v350
      %v352 = vld [vmem:[%s336 + $0xc] sm:$0x1]
      %v353 = vsel %vm345, %v271, %v352
      %354 = vst [vmem:[%s336 + $0xc] sm:$0x1] %v353
      %v355 = vld [vmem:[%s336 + $0x10] sm:$0xf]
      %v356 = vsel %vm339, %v278, %v355
      %357 = vst [vmem:[%s336 + $0x10] sm:$0xf] %v356
      %v358 = vld [vmem:[%s336 + $0x14] sm:$0x1]
      %v359 = vsel %vm345, %v279, %v358
      %360 = vst [vmem:[%s336 + $0x14] sm:$0x1] %v359
      %v361 = vld [vmem:[%s336 + $0x18] sm:$0xf]
      %v362 = vsel %vm339, %v286, %v361
      %363 = vst [vmem:[%s336 + $0x18] sm:$0xf] %v362
      %v364 = vld [vmem:[%s336 + $0x1c] sm:$0x1]
      %v365 = vsel %vm345, %v287, %v364
      %366 = vst [vmem:[%s336 + $0x1c] sm:$0x1] %v365
      %v367 = vld [vmem:[%s336 + $0x20] sm:$0xf]
      %v368 = vsel %vm339, %v294, %v367
      %369 = vst [vmem:[%s336 + $0x20] sm:$0xf] %v368
      %v370 = vld [vmem:[%s336 + $0x24] sm:$0x1]
      %v371 = vsel %vm345, %v295, %v370
      %372 = vst [vmem:[%s336 + $0x24] sm:$0x1] %v371
      %v373 = vld [vmem:[%s336 + $0x28] sm:$0xf]
      %v374 = vsel %vm339, %v302, %v373
      %375 = vst [vmem:[%s336 + $0x28] sm:$0xf] %v374
      %v376 = vld [vmem:[%s336 + $0x2c] sm:$0x1]
      %v377 = vsel %vm345, %v303, %v376
      %378 = vst [vmem:[%s336 + $0x2c] sm:$0x1] %v377
      %v379 = vld [vmem:[%s336 + $0x30] sm:$0xf]
      %v380 = vsel %vm339, %v310, %v379
      %381 = vst [vmem:[%s336 + $0x30] sm:$0xf] %v380
      %v382 = vld [vmem:[%s336 + $0x34] sm:$0x1]
      %v383 = vsel %vm345, %v311, %v382
      %384 = vst [vmem:[%s336 + $0x34] sm:$0x1] %v383
      %v385 = vld [vmem:[%s336 + $0x38] sm:$0xf]
      %v386 = vsel %vm339, %v318, %v385
      %387 = vst [vmem:[%s336 + $0x38] sm:$0xf] %v386
      %v388 = vld [vmem:[%s336 + $0x3c] sm:$0x1]
      %v389 = vsel %vm345, %v319, %v388
      %390 = vst [vmem:[%s336 + $0x3c] sm:$0x1] %v389
      %v391 = vld [vmem:[#allocation2] sm:$0xf]
      %v392 = vld [vmem:[#allocation2 + $0x4] sm:$0x1]
      %v393 = vld [vmem:[#allocation2 + $0x8] sm:$0xf]
      %v394 = vld [vmem:[#allocation2 + $0xc] sm:$0x1]
      %v395 = vld [vmem:[#allocation2 + $0x10] sm:$0xf]
      %v396 = vld [vmem:[#allocation2 + $0x14] sm:$0x1]
      %v397 = vld [vmem:[#allocation2 + $0x18] sm:$0xf]
      %v398 = vld [vmem:[#allocation2 + $0x1c] sm:$0x1]
      %v399 = vld [vmem:[#allocation2 + $0x20] sm:$0xf]
      %v400 = vld [vmem:[#allocation2 + $0x24] sm:$0x1]
      %v401 = vld [vmem:[#allocation2 + $0x28] sm:$0xf]
      %v402 = vld [vmem:[#allocation2 + $0x2c] sm:$0x1]
      %v403 = vld [vmem:[#allocation2 + $0x30] sm:$0xf]
      %v404 = vld [vmem:[#allocation2 + $0x34] sm:$0x1]
      %v405 = vld [vmem:[#allocation2 + $0x38] sm:$0xf]
      %v406 = vld [vmem:[#allocation2 + $0x3c] sm:$0x1]
      %v407 = vld [vmem:[#allocation2 + $0x40] sm:$0xf]
      %v408 = vld [vmem:[#allocation2 + $0x44] sm:$0x1]
      %v409 = vld [vmem:[#allocation2 + $0x48] sm:$0xf]
      %v410 = vld [vmem:[#allocation2 + $0x4c] sm:$0x1]
      %v427 = vunpack.c.l.b16 %v391
      %v428 = vunpack.c.l.b16 %v392
      %v429 = vunpack.c.l.b16 %v393
      %v430 = vunpack.c.l.b16 %v394
      %v431 = vunpack.c.l.b16 %v395
      %v432 = vunpack.c.l.b16 %v396
      %v433 = vunpack.c.l.b16 %v397
      %v434 = vunpack.c.l.b16 %v398
      %v435 = vunpack.c.l.b16 %v399
      %v436 = vunpack.c.l.b16 %v400
      %v437 = vunpack.c.l.b16 %v401
      %v438 = vunpack.c.l.b16 %v402
      %v439 = vunpack.c.l.b16 %v403
      %v440 = vunpack.c.l.b16 %v404
      %v441 = vunpack.c.l.b16 %v405
      %v442 = vunpack.c.l.b16 %v406
      %v443 = vpack.c.b16 %v428, %v427
      %v444 = vpack.c.b16 %v430, %v429
      %v445 = vpack.c.b16 %v432, %v431
      %v446 = vpack.c.b16 %v434, %v433
      %v447 = vpack.c.b16 %v436, %v435
      %v448 = vpack.c.b16 %v438, %v437
      %v449 = vpack.c.b16 %v440, %v439
      %v450 = vpack.c.b16 %v442, %v441
      %v452 = vshrl.u32 %v443, 16
      %v454 = vshll.u32 %v443, 16
      %v456 = vrot.slane %v454, 1
      %v457 = vor.u32 %v452, %v456
      %v459 = vshrl.u32 %v444, 16
      %v461 = vshll.u32 %v444, 16
      %v463 = vrot.slane %v461, 1
      %v464 = vor.u32 %v459, %v463
      %v466 = vshrl.u32 %v445, 16
      %v468 = vshll.u32 %v445, 16
      %v470 = vrot.slane %v468, 1
      %v471 = vor.u32 %v466, %v470
      %v473 = vshrl.u32 %v446, 16
      %v475 = vshll.u32 %v446, 16
      %v477 = vrot.slane %v475, 1
      %v478 = vor.u32 %v473, %v477
      %v480 = vshrl.u32 %v447, 16
      %v482 = vshll.u32 %v447, 16
      %v484 = vrot.slane %v482, 1
      %v485 = vor.u32 %v480, %v484
      %v487 = vshrl.u32 %v448, 16
      %v489 = vshll.u32 %v448, 16
      %v491 = vrot.slane %v489, 1
      %v492 = vor.u32 %v487, %v491
      %v494 = vshrl.u32 %v449, 16
      %v496 = vshll.u32 %v449, 16
      %v498 = vrot.slane %v496, 1
      %v499 = vor.u32 %v494, %v498
      %v501 = vshrl.u32 %v450, 16
      %v503 = vshll.u32 %v450, 16
      %v505 = vrot.slane %v503, 1
      %v506 = vor.u32 %v501, %v505
      %507 = vrot.lane.b32.xlu0 %v457, 32
      %v508 = vpop.permute.xlu0 %507
      %509 = vrot.lane.b32.xlu0 %v464, 32
      %v510 = vpop.permute.xlu0 %509
      %511 = vrot.lane.b32.xlu0 %v471, 32
      %v512 = vpop.permute.xlu0 %511
      %513 = vrot.lane.b32.xlu0 %v478, 32
      %v514 = vpop.permute.xlu0 %513
      %515 = vrot.lane.b32.xlu0 %v485, 32
      %v516 = vpop.permute.xlu0 %515
      %517 = vrot.lane.b32.xlu0 %v492, 32
      %v518 = vpop.permute.xlu0 %517
      %519 = vrot.lane.b32.xlu0 %v499, 32
      %v520 = vpop.permute.xlu0 %519
      %521 = vrot.lane.b32.xlu0 %v506, 32
      %v522 = vpop.permute.xlu0 %521
      %v523 = vrot.slane %v443, 1
      %v524 = vrot.slane %v444, 1
      %v525 = vrot.slane %v445, 1
      %v526 = vrot.slane %v446, 1
      %v527 = vrot.slane %v447, 1
      %v528 = vrot.slane %v448, 1
      %v529 = vrot.slane %v449, 1
      %v530 = vrot.slane %v450, 1
      %531 = vrot.lane.b32.xlu0 %v523, 64
      %v532 = vpop.permute.xlu0 %531
      %533 = vrot.lane.b32.xlu0 %v524, 64
      %v534 = vpop.permute.xlu0 %533
      %535 = vrot.lane.b32.xlu0 %v525, 64
      %v536 = vpop.permute.xlu0 %535
      %537 = vrot.lane.b32.xlu0 %v526, 64
      %v538 = vpop.permute.xlu0 %537
      %539 = vrot.lane.b32.xlu0 %v527, 64
      %v540 = vpop.permute.xlu0 %539
      %541 = vrot.lane.b32.xlu0 %v528, 64
      %v542 = vpop.permute.xlu0 %541
      %543 = vrot.lane.b32.xlu0 %v529, 64
      %v544 = vpop.permute.xlu0 %543
      %545 = vrot.lane.b32.xlu0 %v530, 64
      %v546 = vpop.permute.xlu0 %545
      %v548 = vunpack.c.l.b16 %v407
      %v549 = vpack.c.b16 %v429, %v429
      %v550 = vpack.c.b16 %v431, %v431
      %v551 = vpack.c.b16 %v433, %v433
      %v552 = vpack.c.b16 %v435, %v435
      %v553 = vpack.c.b16 %v437, %v437
      %v554 = vpack.c.b16 %v439, %v439
      %v555 = vpack.c.b16 %v441, %v441
      %v556 = vpack.c.b16 %v548, %v548
      %557 = vrot.lane.b32.xlu0 %v549, 96
      %v558 = vpop.permute.xlu0 %557
      %559 = vrot.lane.b32.xlu0 %v550, 96
      %v560 = vpop.permute.xlu0 %559
      %561 = vrot.lane.b32.xlu0 %v551, 96
      %v562 = vpop.permute.xlu0 %561
      %563 = vrot.lane.b32.xlu0 %v552, 96
      %v564 = vpop.permute.xlu0 %563
      %565 = vrot.lane.b32.xlu0 %v553, 96
      %v566 = vpop.permute.xlu0 %565
      %567 = vrot.lane.b32.xlu0 %v554, 96
      %v568 = vpop.permute.xlu0 %567
      %569 = vrot.lane.b32.xlu0 %v555, 96
      %v570 = vpop.permute.xlu0 %569
      %571 = vrot.lane.b32.xlu0 %v556, 96
      %v572 = vpop.permute.xlu0 %571
      %v574 = vunpack.c.l.b16 %v408
      %v575 = vpack.c.b16 %v574, %v548
      %v577 = vshrl.u32 %v575, 16
      %v579 = vshll.u32 %v575, 16
      %v581 = vrot.slane %v579, 1
      %v582 = vor.u32 %v577, %v581
      %v583 = vrot.slane %v575, 1
      %584 = vrot.lane.b32.xlu0 %v524, 32
      %v585 = vpop.permute.xlu0 %584
      %586 = vrot.lane.b32.xlu0 %v525, 32
      %v587 = vpop.permute.xlu0 %586
      %588 = vrot.lane.b32.xlu0 %v526, 32
      %v589 = vpop.permute.xlu0 %588
      %590 = vrot.lane.b32.xlu0 %v527, 32
      %v591 = vpop.permute.xlu0 %590
      %592 = vrot.lane.b32.xlu0 %v528, 32
      %v593 = vpop.permute.xlu0 %592
      %594 = vrot.lane.b32.xlu0 %v529, 32
      %v595 = vpop.permute.xlu0 %594
      %596 = vrot.lane.b32.xlu0 %v530, 32
      %v597 = vpop.permute.xlu0 %596
      %598 = vrot.lane.b32.xlu0 %v583, 32
      %v599 = vpop.permute.xlu0 %598
      %v601 = vunpack.c.l.b16 %v409
      %v602 = vpack.c.b16 %v601, %v601
      %603 = vrot.lane.b32.xlu0 %v550, 64
      %v604 = vpop.permute.xlu0 %603
      %605 = vrot.lane.b32.xlu0 %v551, 64
      %v606 = vpop.permute.xlu0 %605
      %607 = vrot.lane.b32.xlu0 %v552, 64
      %v608 = vpop.permute.xlu0 %607
      %609 = vrot.lane.b32.xlu0 %v553, 64
      %v610 = vpop.permute.xlu0 %609
      %611 = vrot.lane.b32.xlu0 %v554, 64
      %v612 = vpop.permute.xlu0 %611
      %613 = vrot.lane.b32.xlu0 %v555, 64
      %v614 = vpop.permute.xlu0 %613
      %615 = vrot.lane.b32.xlu0 %v556, 64
      %v616 = vpop.permute.xlu0 %615
      %617 = vrot.lane.b32.xlu0 %v602, 64
      %v618 = vpop.permute.xlu0 %617
      %v620 = vunpack.c.l.b16 %v410
      %v621 = vpack.c.b16 %v620, %v601
      %v623 = vshrl.u32 %v621, 16
      %v625 = vshll.u32 %v621, 16
      %v627 = vrot.slane %v625, 1
      %v628 = vor.u32 %v623, %v627
      %629 = vrot.lane.b32.xlu0 %v471, 96
      %v630 = vpop.permute.xlu0 %629
      %631 = vrot.lane.b32.xlu0 %v478, 96
      %v632 = vpop.permute.xlu0 %631
      %633 = vrot.lane.b32.xlu0 %v485, 96
      %v634 = vpop.permute.xlu0 %633
      %635 = vrot.lane.b32.xlu0 %v492, 96
      %v636 = vpop.permute.xlu0 %635
      %637 = vrot.lane.b32.xlu0 %v499, 96
      %v638 = vpop.permute.xlu0 %637
      %639 = vrot.lane.b32.xlu0 %v506, 96
      %v640 = vpop.permute.xlu0 %639
      %641 = vrot.lane.b32.xlu0 %v582, 96
      %v642 = vpop.permute.xlu0 %641
      %643 = vrot.lane.b32.xlu0 %v628, 96
      %v644 = vpop.permute.xlu0 %643
      %v645 = vrot.slane %v621, 1
      %vm646 = vcmask 261120
      %v649 = vsel %vm646, %v391, %v508
      %v652 = vsel %vm646, %v393, %v510
      %v655 = vsel %vm646, %v395, %v512
      %v658 = vsel %vm646, %v397, %v514
      %v661 = vsel %vm646, %v399, %v516
      %v664 = vsel %vm646, %v401, %v518
      %v667 = vsel %vm646, %v403, %v520
      %v670 = vsel %vm646, %v405, %v522
      %vm671 = vcmask 523264
      %v673 = vsel %vm671, %v649, %v532
      %v675 = vsel %vm671, %v652, %v534
      %v677 = vsel %vm671, %v655, %v536
      %v679 = vsel %vm671, %v658, %v538
      %v681 = vsel %vm671, %v661, %v540
      %v683 = vsel %vm671, %v664, %v542
      %v685 = vsel %vm671, %v667, %v544
      %v687 = vsel %vm671, %v670, %v546
      %vm688 = vcmask 785408
      %v690 = vsel %vm688, %v673, %v558
      %v692 = vsel %vm688, %v675, %v560
      %v694 = vsel %vm688, %v677, %v562
      %v696 = vsel %vm688, %v679, %v564
      %v698 = vsel %vm688, %v681, %v566
      %v700 = vsel %vm688, %v683, %v568
      %v702 = vsel %vm688, %v685, %v570
      %v704 = vsel %vm688, %v687, %v572
      %v707 = vsel %vm646, %v464, %v585
      %v710 = vsel %vm646, %v471, %v587
      %v713 = vsel %vm646, %v478, %v589
      %v716 = vsel %vm646, %v485, %v591
      %v719 = vsel %vm646, %v492, %v593
      %v722 = vsel %vm646, %v499, %v595
      %v725 = vsel %vm646, %v506, %v597
      %v728 = vsel %vm646, %v582, %v599
      %v730 = vsel %vm671, %v707, %v604
      %v732 = vsel %vm671, %v710, %v606
      %v734 = vsel %vm671, %v713, %v608
      %v736 = vsel %vm671, %v716, %v610
      %v738 = vsel %vm671, %v719, %v612
      %v740 = vsel %vm671, %v722, %v614
      %v742 = vsel %vm671, %v725, %v616
      %v744 = vsel %vm671, %v728, %v618
      %v746 = vsel %vm688, %v730, %v630
      %v748 = vsel %vm688, %v732, %v632
      %v750 = vsel %vm688, %v734, %v634
      %v752 = vsel %vm688, %v736, %v636
      %v754 = vsel %vm688, %v738, %v638
      %v756 = vsel %vm688, %v740, %v640
      %v758 = vsel %vm688, %v742, %v642
      %v760 = vsel %vm688, %v744, %v644
      %v777 = vunpack.c.l.b16 %v690
      %v778 = vunpack.c.l.b16 %v746
      %v779 = vunpack.c.l.b16 %v525
      %v780 = vunpack.c.l.b16 %v692
      %v781 = vunpack.c.l.b16 %v748
      %v782 = vunpack.c.l.b16 %v526
      %v783 = vunpack.c.l.b16 %v694
      %v784 = vunpack.c.l.b16 %v750
      %v785 = vunpack.c.l.b16 %v527
      %v786 = vunpack.c.l.b16 %v696
      %v787 = vunpack.c.l.b16 %v752
      %v788 = vunpack.c.l.b16 %v528
      %v789 = vunpack.c.l.b16 %v698
      %v790 = vunpack.c.l.b16 %v754
      %v791 = vunpack.c.l.b16 %v529
      %v792 = vunpack.c.l.b16 %v700
      %v793 = vunpack.c.l.b16 %v756
      %v794 = vunpack.c.l.b16 %v530
      %v795 = vunpack.c.l.b16 %v702
      %v796 = vunpack.c.l.b16 %v758
      %v797 = vunpack.c.l.b16 %v583
      %v798 = vunpack.c.l.b16 %v704
      %v799 = vunpack.c.l.b16 %v760
      %v800 = vunpack.c.l.b16 %v645
      %v801 = vld [vmem:[%s1] sm:$0xf]
      %v802 = vld [vmem:[%s1 + $0x4] sm:$0xf]
      %v803 = vld [vmem:[%s1 + $0x8] sm:$0xf]
      %v804 = vld [vmem:[%s1 + $0xc] sm:$0xf]
      %v805 = vld [vmem:[%s1 + $0x10] sm:$0xf]
      %v806 = vld [vmem:[%s1 + $0x14] sm:$0xf]
      %v807 = vld [vmem:[%s1 + $0x18] sm:$0xf]
      %v808 = vld [vmem:[%s1 + $0x1c] sm:$0xf]
      %v809 = vld [vmem:[%s1 + $0x20] sm:$0xf]
      %v810 = vld [vmem:[%s1 + $0x24] sm:$0xf]
      %v811 = vld [vmem:[%s1 + $0x28] sm:$0xf]
      %v812 = vld [vmem:[%s1 + $0x2c] sm:$0xf]
      %v813 = vld [vmem:[%s1 + $0x30] sm:$0xf]
      %v814 = vld [vmem:[%s1 + $0x34] sm:$0xf]
      %v815 = vld [vmem:[%s1 + $0x38] sm:$0xf]
      %v816 = vld [vmem:[%s1 + $0x3c] sm:$0xf]
      %v817 = vld [vmem:[%s1 + $0x40] sm:$0xf]
      %v818 = vld [vmem:[%s1 + $0x44] sm:$0xf]
      %v819 = vld [vmem:[%s1 + $0x48] sm:$0xf]
      %v820 = vld [vmem:[%s1 + $0x4c] sm:$0xf]
      %v821 = vld [vmem:[%s1 + $0x50] sm:$0xf]
      %v822 = vld [vmem:[%s1 + $0x54] sm:$0xf]
      %v823 = vld [vmem:[%s1 + $0x58] sm:$0xf]
      %v824 = vld [vmem:[%s1 + $0x5c] sm:$0xf]
      %v825 = vld [vmem:[%s1 + $0x60] sm:$0xf]
      %v826 = vld [vmem:[%s1 + $0x64] sm:$0xf]
      %v827 = vld [vmem:[%s1 + $0x68] sm:$0xf]
      %v828 = vld [vmem:[%s1 + $0x6c] sm:$0xf]
      %v829 = vld [vmem:[%s1 + $0x70] sm:$0xf]
      %v830 = vld [vmem:[%s1 + $0x74] sm:$0xf]
      %v831 = vld [vmem:[%s1 + $0x78] sm:$0xf]
      %v832 = vld [vmem:[%s1 + $0x7c] sm:$0xf]
      %v833 = vld [vmem:[%s1 + $0x80] sm:$0xf]
      %v834 = vld [vmem:[%s1 + $0x84] sm:$0xf]
      %v835 = vld [vmem:[%s1 + $0x88] sm:$0xf]
      %v836 = vld [vmem:[%s1 + $0x8c] sm:$0xf]
      %v837 = vld [vmem:[%s2] sm:$0x1]
      %v839 = vperm.slane %v837, 0
      %v841 = vpack.c.b16 %v780, %v777
      %v842 = vpack.c.b16 %v781, %v778
      %v843 = vpack.c.b16 %v782, %v779
      %v844 = vpack.c.b16 %v786, %v783
      %v845 = vpack.c.b16 %v787, %v784
      %v846 = vpack.c.b16 %v788, %v785
      %v847 = vpack.c.b16 %v792, %v789
      %v848 = vpack.c.b16 %v793, %v790
      %v849 = vpack.c.b16 %v794, %v791
      %v850 = vpack.c.b16 %v798, %v795
      %v851 = vpack.c.b16 %v799, %v796
      %v852 = vpack.c.b16 %v800, %v797
      %v897 = vunpack.c.l.b16 %v801
      %v898 = vunpack.c.l.b16 %v802
      %v899 = vunpack.c.l.b16 %v803
      %v900 = vunpack.c.l.b16 %v804
      %v901 = vunpack.c.l.b16 %v805
      %v902 = vunpack.c.l.b16 %v806
      %v903 = vunpack.c.l.b16 %v807
      %v904 = vunpack.c.l.b16 %v808
      %v905 = vunpack.c.l.b16 %v809
      %v906 = vunpack.c.l.b16 %v810
      %v907 = vunpack.c.l.b16 %v811
      %v908 = vunpack.c.l.b16 %v812
      %v909 = vunpack.c.l.b16 %v813
      %v910 = vunpack.c.l.b16 %v814
      %v911 = vunpack.c.l.b16 %v815
      %v912 = vunpack.c.l.b16 %v816
      %v913 = vunpack.c.l.b16 %v817
      %v914 = vunpack.c.l.b16 %v818
      %v915 = vunpack.c.l.b16 %v819
      %v916 = vunpack.c.l.b16 %v820
      %v917 = vunpack.c.l.b16 %v821
      %v918 = vunpack.c.l.b16 %v822
      %v919 = vunpack.c.l.b16 %v823
      %v920 = vunpack.c.l.b16 %v824
      %v921 = vunpack.c.l.b16 %v825
      %v922 = vunpack.c.l.b16 %v826
      %v923 = vunpack.c.l.b16 %v827
      %v924 = vunpack.c.l.b16 %v828
      %v925 = vunpack.c.l.b16 %v829
      %v926 = vunpack.c.l.b16 %v830
      %v927 = vunpack.c.l.b16 %v831
      %v928 = vunpack.c.l.b16 %v832
      %v929 = vunpack.c.l.b16 %v833
      %v930 = vunpack.c.l.b16 %v834
      %v931 = vunpack.c.l.b16 %v835
      %v932 = vunpack.c.l.b16 %v836
      %v933 = vpack.c.b16 %v898, %v897
      %v934 = vpack.c.b16 %v900, %v899
      %v935 = vpack.c.b16 %v902, %v901
      %v936 = vpack.c.b16 %v904, %v903
      %v937 = vpack.c.b16 %v906, %v905
      %v938 = vpack.c.b16 %v908, %v907
      %v939 = vpack.c.b16 %v910, %v909
      %v940 = vpack.c.b16 %v912, %v911
      %v941 = vpack.c.b16 %v914, %v913
      %v942 = vpack.c.b16 %v916, %v915
      %v943 = vpack.c.b16 %v918, %v917
      %v944 = vpack.c.b16 %v920, %v919
      %v945 = vpack.c.b16 %v922, %v921
      %v946 = vpack.c.b16 %v924, %v923
      %v947 = vpack.c.b16 %v926, %v925
      %v948 = vpack.c.b16 %v928, %v927
      %v949 = vpack.c.b16 %v930, %v929
      %v950 = vpack.c.b16 %v932, %v931
      %v970 = vsel %vm646, %v843, 0
      %v973 = vsel %vm646, %v846, 0
      %v976 = vsel %vm646, %v849, 0
      %v979 = vsel %vm646, %v852, 0
      %981 = vmatpush.bf16.msra.mxu0 %v940
      %982 = vmatpush.bf16.msra.mxu0 %v939
      %983 = vmatpush.bf16.msra.mxu0 %v938
      %984 = vmatpush.bf16.msra.mxu0 %v937
      %985 = vmatpush.bf16.msra.mxu0 %v936
      %986 = vmatpush.bf16.msra.mxu0 %v935
      %987 = vmatpush.bf16.msra.mxu0 %v934
      %988 = vmatpush.bf16.msra.mxu0 %v933
      %989 = vmatmul.bf16.gmra.mxu0 %v841
      %v990 = vpop.f32.mrf.mxu0
      %v991 = vadd.f32 %v839, %v990
      %v992 = vpop.f32.mrf.mxu0
      %v993 = vadd.f32 %v839, %v992
      %994 = vmatmul.bf16.gmra.mxu0 %v844
      %v995 = vpop.f32.mrf.mxu0
      %v996 = vadd.f32 %v839, %v995
      %v997 = vpop.f32.mrf.mxu0
      %v998 = vadd.f32 %v839, %v997
      %999 = vmatmul.bf16.gmra.mxu0 %v847
      %v1000 = vpop.f32.mrf.mxu0
      %v1001 = vadd.f32 %v839, %v1000
      %v1002 = vpop.f32.mrf.mxu0
      %v1003 = vadd.f32 %v839, %v1002
      %1004 = vmatmul.bf16.gmra.mxu0 %v850
      %v1005 = vpop.f32.mrf.mxu0
      %v1006 = vadd.f32 %v839, %v1005
      %v1007 = vpop.f32.mrf.mxu0
      %v1008 = vadd.f32 %v839, %v1007
      %1009 = vdwg.mxu0
      %1010 = vmatpush.bf16.msra.mxu0 %v948
      %1011 = vmatpush.bf16.msra.mxu0 %v947
      %1012 = vmatpush.bf16.msra.mxu0 %v946
      %1013 = vmatpush.bf16.msra.mxu0 %v945
      %1014 = vmatpush.bf16.msra.mxu0 %v944
      %1015 = vmatpush.bf16.msra.mxu0 %v943
      %1016 = vmatpush.bf16.msra.mxu0 %v942
      %1017 = vmatpush.bf16.msra.mxu0 %v941
      %1018 = vmatmul.bf16.gmra.mxu0 %v842
      %v1019 = vpop.f32.mrf.mxu0
      %v1020 = vadd.f32 %v991, %v1019
      %v1021 = vpop.f32.mrf.mxu0
      %v1022 = vadd.f32 %v993, %v1021
      %1023 = vmatmul.bf16.gmra.mxu0 %v845
      %v1024 = vpop.f32.mrf.mxu0
      %v1025 = vadd.f32 %v996, %v1024
      %v1026 = vpop.f32.mrf.mxu0
      %v1027 = vadd.f32 %v998, %v1026
      %1028 = vmatmul.bf16.gmra.mxu0 %v848
      %v1029 = vpop.f32.mrf.mxu0
      %v1030 = vadd.f32 %v1001, %v1029
      %v1031 = vpop.f32.mrf.mxu0
      %v1032 = vadd.f32 %v1003, %v1031
      %1033 = vmatmul.bf16.gmra.mxu0 %v851
      %v1034 = vpop.f32.mrf.mxu0
      %v1035 = vadd.f32 %v1006, %v1034
      %v1036 = vpop.f32.mrf.mxu0
      %v1037 = vadd.f32 %v1008, %v1036
      %1038 = vdwg.mxu0
      %1039 = vmatpush.bf16.msra.mxu0 0
      %1040 = vmatpush.bf16.msra.mxu0 0
      %1041 = vmatpush.bf16.msra.mxu0 0
      %1042 = vmatpush.bf16.msra.mxu0 0
      %1043 = vmatpush.bf16.msra.mxu0 0
      %1044 = vmatpush.bf16.msra.mxu0 0
      %1045 = vmatpush.bf16.msra.mxu0 %v950
      %1046 = vmatpush.bf16.msra.mxu0 %v949
      %1047 = vmatmul.bf16.gmra.mxu0 %v970
      %v1048 = vpop.f32.mrf.mxu0
      %v1049 = vadd.f32 %v1020, %v1048
      %v1050 = vpop.f32.mrf.mxu0
      %v1051 = vadd.f32 %v1022, %v1050
      %1052 = vmatmul.bf16.gmra.mxu0 %v973
      %v1053 = vpop.f32.mrf.mxu0
      %v1054 = vadd.f32 %v1025, %v1053
      %v1055 = vpop.f32.mrf.mxu0
      %v1056 = vadd.f32 %v1027, %v1055
      %1057 = vmatmul.bf16.gmra.mxu0 %v976
      %v1058 = vpop.f32.mrf.mxu0
      %v1059 = vadd.f32 %v1030, %v1058
      %v1060 = vpop.f32.mrf.mxu0
      %v1061 = vadd.f32 %v1032, %v1060
      %1062 = vmatmul.bf16.gmra.mxu0 %v979
      %v1063 = vpop.f32.mrf.mxu0
      %v1064 = vadd.f32 %v1035, %v1063
      %v1065 = vpop.f32.mrf.mxu0
      %v1066 = vadd.f32 %v1037, %v1065
      %1067 = vdwg.mxu0
      %v1068 = vlaneseq
      %v1069 = vand.u32 %v1068, 127
      %vm1070 = vcmp.lt.s32.totalorder %v1069, 0
      %v1071 = vsub.s32 0, %v1069
      %v1072 = vsel %vm1070, %v1071, %v1069
      %v1073 = vshrl.u32 %v1072, 5
      %v1074 = vand.u32 %v1072, 31
      %v1075 = vsub.s32 0, %v1074
      %v1076 = vsel %vm1070, %v1075, %v1074
      %vm1077 = vcmp.ne.s32.totalorder %v1076, 0
      %vm1078 = vcmp.lt.s32.totalorder %v1076, 0
      %vm1079 = vmand %vm1078, %vm1077
      %v1080 = vadd.s32 %v1076, 32
      %v1081 = vsel %vm1079, %v1080, %v1076
      %vm1082 = vcmp.lt.s32.totalorder %v1081, 16
      %v1083 = vadd.f32 %v1049, %v1051
      %v1084 = vadd.f32 %v1083, %v1054
      %v1085 = vadd.f32 %v1084, %v1056
      %v1086 = vadd.f32 %v1085, %v1059
      %v1087 = vadd.f32 %v1086, %v1061
      %v1088 = vadd.f32 %v1087, %v1064
      %v1089 = vadd.f32 %v1088, %v1066
      %v1090 = vrot.slane %v1089, 4
      %v1091 = vadd.f32 %v1089, %v1090
      %v1092 = vrot.slane %v1091, 2
      %v1093 = vadd.f32 %v1091, %v1092
      %v1094 = vrot.slane %v1093, 1
      %v1095 = vadd.f32 %v1093, %v1094
      %v1096 = vmul.f32 %v1049, %v1049
      %v1097 = vmul.f32 %v1051, %v1051
      %v1098 = vmul.f32 %v1054, %v1054
      %v1099 = vmul.f32 %v1056, %v1056
      %v1100 = vmul.f32 %v1059, %v1059
      %v1101 = vmul.f32 %v1061, %v1061
      %v1102 = vmul.f32 %v1064, %v1064
      %v1103 = vmul.f32 %v1066, %v1066
      %v1104 = vadd.f32 %v1096, %v1097
      %v1105 = vadd.f32 %v1104, %v1098
      %v1106 = vadd.f32 %v1105, %v1099
      %v1107 = vadd.f32 %v1106, %v1100
      %v1108 = vadd.f32 %v1107, %v1101
      %v1109 = vadd.f32 %v1108, %v1102
      %v1110 = vadd.f32 %v1109, %v1103
      %v1111 = vrot.slane %v1110, 4
      %v1112 = vadd.f32 %v1110, %v1111
      %v1113 = vrot.slane %v1112, 2
      %v1114 = vadd.f32 %v1112, %v1113
      %v1115 = vrot.slane %v1114, 1
      %v1116 = vadd.f32 %v1114, %v1115
      %v1117 = vsel %vm1082, %v1095, 0.0
      %vm1118 = vcmask 1040384
      %v1119 = vsel %vm1118, %v1117, 0.0
      %1120 = vadd.xlane.f32.xlu0 %v1119
      %v1121 = vpop.xlane.xlu0 %1120
      %v1122 = vrot.slane %v1121, 4
      %v1123 = vadd.f32 %v1121, %v1122
      %v1124 = vrot.slane %v1123, 2
      %v1125 = vadd.f32 %v1123, %v1124
      %v1126 = vrot.slane %v1125, 1
      %v1127 = vadd.f32 %v1125, %v1126
      %s1128 = vtos %v1127
      %v1129 = vsel %vm1118, %v1095, 0.0
      %1130 = vadd.xlane.f32.xlu0 %v1129
      %v1131 = vpop.xlane.xlu0 %1130
      %v1132 = vrot.slane %v1131, 4
      %v1133 = vadd.f32 %v1131, %v1132
      %v1134 = vrot.slane %v1133, 2
      %v1135 = vadd.f32 %v1133, %v1134
      %v1136 = vrot.slane %v1135, 1
      %v1137 = vadd.f32 %v1135, %v1136
      %s1138 = vtos %v1137
      %v1139 = vsel %vm1082, %v1116, 0.0
      %v1140 = vsel %vm1118, %v1139, 0.0
      %1141 = vadd.xlane.f32.xlu0 %v1140
      %v1142 = vpop.xlane.xlu0 %1141
      %v1143 = vrot.slane %v1142, 4
      %v1144 = vadd.f32 %v1142, %v1143
      %v1145 = vrot.slane %v1144, 2
      %v1146 = vadd.f32 %v1144, %v1145
      %v1147 = vrot.slane %v1146, 1
      %v1148 = vadd.f32 %v1146, %v1147
      %s1149 = vtos %v1148
      %v1150 = vsel %vm1118, %v1116, 0.0
      %1151 = vadd.xlane.f32.xlu0 %v1150
      %v1152 = vpop.xlane.xlu0 %1151
      %v1153 = vrot.slane %v1152, 4
      %v1154 = vadd.f32 %v1152, %v1153
      %v1155 = vrot.slane %v1154, 2
      %v1156 = vadd.f32 %v1154, %v1155
      %v1157 = vrot.slane %v1156, 1
      %v1158 = vadd.f32 %v1156, %v1157
      %s1159 = vtos %v1158
      %s1160 = ssub.f32 %s1138, %s1128
      %v1161 = vstv %s1128
      %v1162 = vstv %s1160
      %v1163 = vsel %vm1082, %v1161, %v1162
      %v1164 = vrcp.pop 4096.0
      %v1165 = vmul.f32 4096.0, %v1164
      %v1166 = vsub.f32 1.0, %v1165
      %v1167 = vmul.f32 %v1164, %v1166
      %v1168 = vadd.f32 %v1164, %v1167
      %vm1169 = vweird.f32 %v1164
      %v1170 = vsel %vm1169, %v1164, %v1168
      %v1171 = vmul.f32 %v1163, %v1170
      %s1172 = ssub.f32 %s1159, %s1149
      %v1173 = vstv %s1149
      %v1174 = vstv %s1172
      %v1175 = vsel %vm1082, %v1173, %v1174
      %v1176 = vmul.f32 %v1175, %v1170
      %v1177 = vmul.f32 %v1171, %v1171
      %v1178 = vsub.f32 %v1176, %v1177
      %v1179 = vadd.f32 %v1178, 1e-05
      %v1180 = vrsqrt.pop %v1179
      %v1181 = vmul.f32 %v1180, %v1179
      %v1182 = vmul.f32 %v1181, %v1180
      %v1183 = vmul.f32 0.5, %v1182
      %v1184 = vsub.f32 1.5, %v1183
      %v1185 = vmul.f32 %v1180, %v1184
      %vm1186 = vweird.f32 %v1179
      %vm1187 = vweird.f32 %v1180
      %vm1188 = vmor %vm1186, %vm1187
      %v1189 = vsel %vm1188, %v1180, %v1185
      %v1190 = vsub.f32 %v1049, %v1171
      %v1191 = vsub.f32 %v1051, %v1171
      %v1192 = vsub.f32 %v1054, %v1171
      %v1193 = vsub.f32 %v1056, %v1171
      %v1194 = vsub.f32 %v1059, %v1171
      %v1195 = vsub.f32 %v1061, %v1171
      %v1196 = vsub.f32 %v1064, %v1171
      %v1197 = vsub.f32 %v1066, %v1171
      %v1198 = vmul.f32 %v1190, %v1189
      %v1199 = vmul.f32 %v1191, %v1189
      %v1200 = vmul.f32 %v1192, %v1189
      %v1201 = vmul.f32 %v1193, %v1189
      %v1202 = vmul.f32 %v1194, %v1189
      %v1203 = vmul.f32 %v1195, %v1189
      %v1204 = vmul.f32 %v1196, %v1189
      %v1205 = vmul.f32 %v1197, %v1189
      %v1206 = vld [vmem:[%s3] sm:$0x1]
      %v1208 = vperm.slane %v1206, 0
      %v1210 = vmul.f32 %v1198, %v1208
      %v1211 = vmul.f32 %v1199, %v1208
      %v1212 = vmul.f32 %v1200, %v1208
      %v1213 = vmul.f32 %v1201, %v1208
      %v1214 = vmul.f32 %v1202, %v1208
      %v1215 = vmul.f32 %v1203, %v1208
      %v1216 = vmul.f32 %v1204, %v1208
      %v1217 = vmul.f32 %v1205, %v1208
      %v1218 = vld [vmem:[%s4] sm:$0x1]
      %v1220 = vperm.slane %v1218, 0
      %v1222 = vadd.f32 %v1210, %v1220
      %v1223 = vadd.f32 %v1211, %v1220
      %v1224 = vadd.f32 %v1212, %v1220
      %v1225 = vadd.f32 %v1213, %v1220
      %v1226 = vadd.f32 %v1214, %v1220
      %v1227 = vadd.f32 %v1215, %v1220
      %v1228 = vadd.f32 %v1216, %v1220
      %v1229 = vadd.f32 %v1217, %v1220
      %v1230 = vxor.u32 %v1222, 2147483648
      %v1231 = vxor.u32 %v1223, 2147483648
      %v1232 = vxor.u32 %v1224, 2147483648
      %v1233 = vxor.u32 %v1225, 2147483648
      %v1234 = vxor.u32 %v1226, 2147483648
      %v1235 = vxor.u32 %v1227, 2147483648
      %v1236 = vxor.u32 %v1228, 2147483648
      %v1237 = vxor.u32 %v1229, 2147483648
      %v1238 = vmul.f32 %v1230, 1.442695
      %v1239 = vpow.pop %v1238
      %v1240 = vmul.f32 %v1231, 1.442695
      %v1241 = vpow.pop %v1240
      %v1242 = vmul.f32 %v1232, 1.442695
      %v1243 = vpow.pop %v1242
      %v1244 = vmul.f32 %v1233, 1.442695
      %v1245 = vpow.pop %v1244
      %v1246 = vmul.f32 %v1234, 1.442695
      %v1247 = vpow.pop %v1246
      %v1248 = vmul.f32 %v1235, 1.442695
      %v1249 = vpow.pop %v1248
      %v1250 = vmul.f32 %v1236, 1.442695
      %v1251 = vpow.pop %v1250
      %v1252 = vmul.f32 %v1237, 1.442695
      %v1253 = vpow.pop %v1252
      %v1254 = vadd.f32 %v1239, 1.0
      %v1255 = vadd.f32 %v1241, 1.0
      %v1256 = vadd.f32 %v1243, 1.0
      %v1257 = vadd.f32 %v1245, 1.0
      %v1258 = vadd.f32 %v1247, 1.0
      %v1259 = vadd.f32 %v1249, 1.0
      %v1260 = vadd.f32 %v1251, 1.0
      %v1261 = vadd.f32 %v1253, 1.0
      %v1262 = vrcp.pop %v1254
      %v1263 = vmul.f32 %v1254, %v1262
      %v1264 = vsub.f32 1.0, %v1263
      %v1265 = vmul.f32 %v1262, %v1264
      %v1266 = vadd.f32 %v1262, %v1265
      %vm1267 = vweird.f32 %v1254
      %vm1268 = vweird.f32 %v1262
      %vm1269 = vmor %vm1267, %vm1268
      %v1270 = vsel %vm1269, %v1262, %v1266
      %v1271 = vand.u32 2147483647, %v1254
      %vm1272 = vcmp.eq.f32.partialorder %v1271, 8.507059e+37
      %v1273 = vand.u32 %v1254, 2147483648
      %v1274 = vor.u32 1.1754944e-38, %v1273
      %v1275 = vsel %vm1272, %v1274, %v1270
      %v1276 = vmul.f32 1.0, %v1275
      %v1277 = vrcp.pop %v1255
      %v1278 = vmul.f32 %v1255, %v1277
      %v1279 = vsub.f32 1.0, %v1278
      %v1280 = vmul.f32 %v1277, %v1279
      %v1281 = vadd.f32 %v1277, %v1280
      %vm1282 = vweird.f32 %v1255
      %vm1283 = vweird.f32 %v1277
      %vm1284 = vmor %vm1282, %vm1283
      %v1285 = vsel %vm1284, %v1277, %v1281
      %v1286 = vand.u32 2147483647, %v1255
      %vm1287 = vcmp.eq.f32.partialorder %v1286, 8.507059e+37
      %v1288 = vand.u32 %v1255, 2147483648
      %v1289 = vor.u32 1.1754944e-38, %v1288
      %v1290 = vsel %vm1287, %v1289, %v1285
      %v1291 = vmul.f32 1.0, %v1290
      %v1292 = vrcp.pop %v1256
      %v1293 = vmul.f32 %v1256, %v1292
      %v1294 = vsub.f32 1.0, %v1293
      %v1295 = vmul.f32 %v1292, %v1294
      %v1296 = vadd.f32 %v1292, %v1295
      %vm1297 = vweird.f32 %v1256
      %vm1298 = vweird.f32 %v1292
      %vm1299 = vmor %vm1297, %vm1298
      %v1300 = vsel %vm1299, %v1292, %v1296
      %v1301 = vand.u32 2147483647, %v1256
      %vm1302 = vcmp.eq.f32.partialorder %v1301, 8.507059e+37
      %v1303 = vand.u32 %v1256, 2147483648
      %v1304 = vor.u32 1.1754944e-38, %v1303
      %v1305 = vsel %vm1302, %v1304, %v1300
      %v1306 = vmul.f32 1.0, %v1305
      %v1307 = vrcp.pop %v1257
      %v1308 = vmul.f32 %v1257, %v1307
      %v1309 = vsub.f32 1.0, %v1308
      %v1310 = vmul.f32 %v1307, %v1309
      %v1311 = vadd.f32 %v1307, %v1310
      %vm1312 = vweird.f32 %v1257
      %vm1313 = vweird.f32 %v1307
      %vm1314 = vmor %vm1312, %vm1313
      %v1315 = vsel %vm1314, %v1307, %v1311
      %v1316 = vand.u32 2147483647, %v1257
      %vm1317 = vcmp.eq.f32.partialorder %v1316, 8.507059e+37
      %v1318 = vand.u32 %v1257, 2147483648
      %v1319 = vor.u32 1.1754944e-38, %v1318
      %v1320 = vsel %vm1317, %v1319, %v1315
      %v1321 = vmul.f32 1.0, %v1320
      %v1322 = vrcp.pop %v1258
      %v1323 = vmul.f32 %v1258, %v1322
      %v1324 = vsub.f32 1.0, %v1323
      %v1325 = vmul.f32 %v1322, %v1324
      %v1326 = vadd.f32 %v1322, %v1325
      %vm1327 = vweird.f32 %v1258
      %vm1328 = vweird.f32 %v1322
      %vm1329 = vmor %vm1327, %vm1328
      %v1330 = vsel %vm1329, %v1322, %v1326
      %v1331 = vand.u32 2147483647, %v1258
      %vm1332 = vcmp.eq.f32.partialorder %v1331, 8.507059e+37
      %v1333 = vand.u32 %v1258, 2147483648
      %v1334 = vor.u32 1.1754944e-38, %v1333
      %v1335 = vsel %vm1332, %v1334, %v1330
      %v1336 = vmul.f32 1.0, %v1335
      %v1337 = vrcp.pop %v1259
      %v1338 = vmul.f32 %v1259, %v1337
      %v1339 = vsub.f32 1.0, %v1338
      %v1340 = vmul.f32 %v1337, %v1339
      %v1341 = vadd.f32 %v1337, %v1340
      %vm1342 = vweird.f32 %v1259
      %vm1343 = vweird.f32 %v1337
      %vm1344 = vmor %vm1342, %vm1343
      %v1345 = vsel %vm1344, %v1337, %v1341
      %v1346 = vand.u32 2147483647, %v1259
      %vm1347 = vcmp.eq.f32.partialorder %v1346, 8.507059e+37
      %v1348 = vand.u32 %v1259, 2147483648
      %v1349 = vor.u32 1.1754944e-38, %v1348
      %v1350 = vsel %vm1347, %v1349, %v1345
      %v1351 = vmul.f32 1.0, %v1350
      %v1352 = vrcp.pop %v1260
      %v1353 = vmul.f32 %v1260, %v1352
      %v1354 = vsub.f32 1.0, %v1353
      %v1355 = vmul.f32 %v1352, %v1354
      %v1356 = vadd.f32 %v1352, %v1355
      %vm1357 = vweird.f32 %v1260
      %vm1358 = vweird.f32 %v1352
      %vm1359 = vmor %vm1357, %vm1358
      %v1360 = vsel %vm1359, %v1352, %v1356
      %v1361 = vand.u32 2147483647, %v1260
      %vm1362 = vcmp.eq.f32.partialorder %v1361, 8.507059e+37
      %v1363 = vand.u32 %v1260, 2147483648
      %v1364 = vor.u32 1.1754944e-38, %v1363
      %v1365 = vsel %vm1362, %v1364, %v1360
      %v1366 = vmul.f32 1.0, %v1365
      %v1367 = vrcp.pop %v1261
      %v1368 = vmul.f32 %v1261, %v1367
      %v1369 = vsub.f32 1.0, %v1368
      %v1370 = vmul.f32 %v1367, %v1369
      %v1371 = vadd.f32 %v1367, %v1370
      %vm1372 = vweird.f32 %v1261
      %vm1373 = vweird.f32 %v1367
      %vm1374 = vmor %vm1372, %vm1373
      %v1375 = vsel %vm1374, %v1367, %v1371
      %v1376 = vand.u32 2147483647, %v1261
      %vm1377 = vcmp.eq.f32.partialorder %v1376, 8.507059e+37
      %v1378 = vand.u32 %v1261, 2147483648
      %v1379 = vor.u32 1.1754944e-38, %v1378
      %v1380 = vsel %vm1377, %v1379, %v1375
      %v1381 = vmul.f32 1.0, %v1380
      %v1382 = vmul.f32 %v1222, %v1276
      %v1383 = vmul.f32 %v1223, %v1291
      %v1384 = vmul.f32 %v1224, %v1306
      %v1385 = vmul.f32 %v1225, %v1321
      %v1386 = vmul.f32 %v1226, %v1336
      %v1387 = vmul.f32 %v1227, %v1351
      %v1388 = vmul.f32 %v1228, %v1366
      %v1389 = vmul.f32 %v1229, %v1381
      %v1390 = vpack.c.bf16 %v1382, %v1382
      %v1391 = vpack.c.bf16 %v1383, %v1383
      %v1392 = vpack.c.bf16 %v1384, %v1384
      %v1393 = vpack.c.bf16 %v1385, %v1385
      %v1394 = vpack.c.bf16 %v1386, %v1386
      %v1395 = vpack.c.bf16 %v1387, %v1387
      %v1396 = vpack.c.bf16 %v1388, %v1388
      %v1397 = vpack.c.bf16 %v1389, %v1389
      %vm1398 = vcmask 519168
      %1399 = vst.msk [vmem:[%s224] sm:$0xf] %vm1398, %v1390
      %1400 = vst.msk [vmem:[%s224 + $0x8] sm:$0xf] %vm1398, %v1391
      %1401 = vst.msk [vmem:[%s224 + $0x10] sm:$0xf] %vm1398, %v1392
      %1402 = vst.msk [vmem:[%s224 + $0x18] sm:$0xf] %vm1398, %v1393
      %1403 = vst.msk [vmem:[%s224 + $0x20] sm:$0xf] %vm1398, %v1394
      %1404 = vst.msk [vmem:[%s224 + $0x28] sm:$0xf] %vm1398, %v1395
      %1405 = vst.msk [vmem:[%s224 + $0x30] sm:$0xf] %vm1398, %v1396
      %1406 = vst.msk [vmem:[%s224 + $0x38] sm:$0xf] %vm1398, %v1397
      %1415 = vrot.lane.b32.xlu0 %v1390, 64
      %v1416 = vpop.permute.xlu0 %1415
      %1417 = vrot.lane.b32.xlu0 %v1391, 64
      %v1418 = vpop.permute.xlu0 %1417
      %1419 = vrot.lane.b32.xlu0 %v1392, 64
      %v1420 = vpop.permute.xlu0 %1419
      %1421 = vrot.lane.b32.xlu0 %v1393, 64
      %v1422 = vpop.permute.xlu0 %1421
      %1423 = vrot.lane.b32.xlu0 %v1394, 64
      %v1424 = vpop.permute.xlu0 %1423
      %1425 = vrot.lane.b32.xlu0 %v1395, 64
      %v1426 = vpop.permute.xlu0 %1425
      %1427 = vrot.lane.b32.xlu0 %v1396, 64
      %v1428 = vpop.permute.xlu0 %1427
      %1429 = vrot.lane.b32.xlu0 %v1397, 64
      %v1430 = vpop.permute.xlu0 %1429
      %s1439 = scalar_lea.vmem %s224, 4
      %1440 = vst.msk [vmem:[%s1439] sm:$0xf] %vm1398, %v1416
      %1441 = vst.msk [vmem:[%s1439 + $0x8] sm:$0xf] %vm1398, %v1418
      %1442 = vst.msk [vmem:[%s1439 + $0x10] sm:$0xf] %vm1398, %v1420
      %1443 = vst.msk [vmem:[%s1439 + $0x18] sm:$0xf] %vm1398, %v1422
      %1444 = vst.msk [vmem:[%s1439 + $0x20] sm:$0xf] %vm1398, %v1424
      %1445 = vst.msk [vmem:[%s1439 + $0x28] sm:$0xf] %vm1398, %v1426
      %1446 = vst.msk [vmem:[%s1439 + $0x30] sm:$0xf] %vm1398, %v1428
      %1447 = vst.msk [vmem:[%s1439 + $0x38] sm:$0xf] %vm1398, %v1430
      %p1448 = scmp.lt.s32.totalorder %s16, 1
      %s1449 = scalar_select %p1448, %s16, 1
      %s1450 = smul.addr %s1449, 16
      %s1451 = smul.addr %s1450, 4
      %s1452 = scalar_lea.vmem %s5, %s1451
      // Predicated region
      $region41: #{decoder_forward.2} parent=39 // pred_check
        %p1453 = pneg %p144
      $region42: #{decoder_forward.2} parent=39 // pred_check_branch
        %1455 = sbr.rel (%p1453) target = $region44
      $region43: #{decoder_forward.2} parent=39 // pred_region
        _
      $region44: #{decoder_forward.2} parent=39 // pred_fallthru
        _
    $region40: #{decoder_forward.2} parent=5 // pred_fallthru
      _
    %p1456 = scmp.le.s32.totalorder 2, %s11
    // Predicated region
    $region45: #{decoder_forward.2} parent=5 // pred_check
      %p1457 = pneg %p1456
    $region46: #{decoder_forward.2} parent=5 // pred_check_branch
      %1459 = sbr.rel (%p1457) target = $region48
    $region47: #{decoder_forward.2} parent=5 // pred_region
      %s1460 = ssub.s32 %s11, 2
      // Predicated region
      $region49: #{decoder_forward.2} parent=47 // pred_check
        %p1461 = pneg %p150
      $region50: #{decoder_forward.2} parent=47 // pred_check_branch
        %1463 = sbr.rel (%p1461) target = $region52
      $region51: #{decoder_forward.2} parent=47 // pred_region
        %p1464 = scmp.lt.s32.totalorder %s17, 1
        %s1465 = scalar_select %p1464, %s17, 1
        %s1466 = smul.addr %s1465, 16
        %s1467 = smul.addr %s1466, 4
        %s1468 = scalar_lea.vmem %s5, %s1467
      $region52: #{decoder_forward.2} parent=47 // pred_fallthru
        _
    $region48: #{decoder_forward.2} parent=5 // pred_fallthru
      _
  $region6: #{decoder_forward.2} parent=0 // loop_footer
    %s15 = sadd.s32 1, %s11
  $region7: #{decoder_forward.2} parent=0 // loop_footer_branch
    %10 = sbr.rel target = $region3
  $region8: #{decoder_forward.2} parent=0 // loop_exit
    _

// kernel: decoder_forward.3
$region0: #{decoder_forward.3}
  #allocation0 [shape = 'u32[]', space=smem, size = 0x4, offset = 0x4, fixed_abs, tag = 'smem constant byte address 0x4 - core index']
  #allocation1 [shape = 'u32[72,128]{1,0:T(1,128)}', space=vmem, size = 0x9000, scoped, tag = 'internal scratch']
  #allocation2 [shape = 'bf16[18,18,32]{2,1,0:T(8,128)(2,1)}', space=vmem, size = 0x1b000, scoped, tag = 'scratch operand']
  %s0 = inlined_call_operand.vmem [shape: bf16[2,16,16,32], index: 0, kind: input, shape index: {}]
  %s1 = inlined_call_operand.vmem [shape: bf16[2,16,16,32], index: 1, kind: input, shape index: {}]
  %s2 = inlined_call_operand.vmem [shape: bf16[288,32], index: 2, kind: input, shape index: {}]
  %s3 = inlined_call_operand.vmem [shape: f32[1,32], index: 3, kind: input, shape index: {}, may-alias: {3,5}]
  %s4 = inlined_call_operand.vmem [shape: f32[1,32], index: 4, kind: input, shape index: {}]
  %s5 = inlined_call_operand.vmem [shape: f32[1,32], index: 5, kind: input, shape index: {}, may-alias: {3,5}]
  %s6 = inlined_call_operand.vmem [shape: bf16[4,32], index: 6, kind: input, shape index: {}]
  %s7 = inlined_call_operand.vmem [shape: f32[4,1], index: 7, kind: input, shape index: {}]
  %s8 = inlined_call_operand.vmem [shape: f32[2,4,256], index: 8, kind: output, shape index: {}]
  %s9 = sld [smem:[#allocation0]]
  $region65: #{decoder_forward.3} parent=0
    _
  %s11 = ssub.s32 1, %s9
  %s12 = scalar_select 0, %s11, %s9
  loop: start=0, step=1, limit=4
  $region2: #{decoder_forward.3} parent=0 // loop_pre_header
    _
  $region3: #{decoder_forward.3} parent=0 // loop_header
    %s14 = sphi 0, %s18
    %p15 = scmp.ge.s32.totalorder %s14, 4
    %s24 = sphi 0, %s26
    %s27 = sphi 0, %s24
    %s28 = sphi 0, %s27
    %s44 = sphi 0, %s28
    %s50 = sphi 0, %s52
    %s53 = sphi 0, %s50
    %s54 = sphi 0, %s53
    %s70 = sphi 0, %s54
    %s74 = sphi 0, %s74
    %s76 = sphi 0, %s74
    %s77 = sphi 0, %s76
    %s91 = sphi 0, %s77
    %s95 = sphi 0, %s95
    %s97 = sphi 0, %s95
    %s98 = sphi 0, %s97
    %s112 = sphi 0, %s98
    %s116 = sphi 0, %s116
    %s118 = sphi 0, %s116
    %s119 = sphi 0, %s118
    %s133 = sphi 0, %s119
    %s137 = sphi 0, %s137
    %s139 = sphi 0, %s137
    %s140 = sphi 0, %s139
    %s154 = sphi 0, %s140
    %s158 = sphi 0, %s158
    %s160 = sphi 0, %s158
    %s161 = sphi 0, %s160
    %s175 = sphi 0, %s161
    %s179 = sphi 0, %s179
    %s181 = sphi 0, %s179
    %s182 = sphi 0, %s181
    %s196 = sphi 0, %s182
    %s202 = sphi 0, %s204
    %s205 = sphi 0, %s202
    %s206 = sphi 0, %s205
    %s222 = sphi 0, %s206
  $region4: #{decoder_forward.3} parent=0 // loop_header_branch
    %17 = sbr.rel (%p15) target = $region8
  $region5: #{decoder_forward.3} parent=0 // loop_body
    %s19 = ssub.s32 %s14, 1
    %s20 = ssub.s32 %s14, 2
    %s21 = sadd.s32 %s14, 1
    %s22 = ssub.s32 %s14, %s21
    %p23 = scmp.eq.s32.totalorder %s22, 0
    %s25 = sadd.s32 %s24, 1
    %s26 = scalar_select %p23, %s24, %s25
    %p29 = pneg %p23
    %p30 = scmp.eq.s32.totalorder %s14, 1
    %p31 = por %p29, %p30
    %p32 = scmp.ne.s32.totalorder %s24, %s27
    %p33 = scmp.eq.s32.totalorder %s14, 0
    %p34 = por %p32, %p33
    %p35 = scmp.ne.s32.totalorder %s24, %s27
    %p36 = scmp.eq.s32.totalorder %s19, 1
    %p37 = por %p35, %p36
    %p38 = scmp.ne.s32.totalorder %s27, %s28
    %p39 = scmp.eq.s32.totalorder %s19, 0
    %p40 = por %p38, %p39
    %p41 = scmp.ne.s32.totalorder %s27, %s28
    %p42 = scmp.eq.s32.totalorder %s20, 1
    %p43 = por %p41, %p42
    %p45 = scmp.ne.s32.totalorder %s28, %s44
    %p46 = scmp.eq.s32.totalorder %s20, 0
    %p47 = por %p45, %p46
    %s48 = ssub.s32 %s14, %s21
    %p49 = scmp.eq.s32.totalorder %s48, 0
    %s51 = sadd.s32 %s50, 1
    %s52 = scalar_select %p49, %s50, %s51
    %p55 = pneg %p49
    %p56 = scmp.eq.s32.totalorder %s14, 1
    %p57 = por %p55, %p56
    %p58 = scmp.ne.s32.totalorder %s50, %s53
    %p59 = scmp.eq.s32.totalorder %s14, 0
    %p60 = por %p58, %p59
    %p61 = scmp.ne.s32.totalorder %s50, %s53
    %p62 = scmp.eq.s32.totalorder %s19, 1
    %p63 = por %p61, %p62
    %p64 = scmp.ne.s32.totalorder %s53, %s54
    %p65 = scmp.eq.s32.totalorder %s19, 0
    %p66 = por %p64, %p65
    %p67 = scmp.ne.s32.totalorder %s53, %s54
    %p68 = scmp.eq.s32.totalorder %s20, 1
    %p69 = por %p67, %p68
    %p71 = scmp.ne.s32.totalorder %s54, %s70
    %p72 = scmp.eq.s32.totalorder %s20, 0
    %p73 = por %p71, %p72
    %s75 = sadd.s32 %s74, 1
    %p78 = scmp.eq.s32.totalorder %s14, 1
    %p79 = scmp.ne.s32.totalorder %s74, %s76
    %p80 = scmp.eq.s32.totalorder %s14, 0
    %p81 = por %p79, %p80
    %p82 = scmp.ne.s32.totalorder %s74, %s76
    %p83 = scmp.eq.s32.totalorder %s19, 1
    %p84 = por %p82, %p83
    %p85 = scmp.ne.s32.totalorder %s76, %s77
    %p86 = scmp.eq.s32.totalorder %s19, 0
    %p87 = por %p85, %p86
    %p88 = scmp.ne.s32.totalorder %s76, %s77
    %p89 = scmp.eq.s32.totalorder %s20, 1
    %p90 = por %p88, %p89
    %p92 = scmp.ne.s32.totalorder %s77, %s91
    %p93 = scmp.eq.s32.totalorder %s20, 0
    %p94 = por %p92, %p93
    %s96 = sadd.s32 %s95, 1
    %p99 = scmp.eq.s32.totalorder %s14, 1
    %p100 = scmp.ne.s32.totalorder %s95, %s97
    %p101 = scmp.eq.s32.totalorder %s14, 0
    %p102 = por %p100, %p101
    %p103 = scmp.ne.s32.totalorder %s95, %s97
    %p104 = scmp.eq.s32.totalorder %s19, 1
    %p105 = por %p103, %p104
    %p106 = scmp.ne.s32.totalorder %s97, %s98
    %p107 = scmp.eq.s32.totalorder %s19, 0
    %p108 = por %p106, %p107
    %p109 = scmp.ne.s32.totalorder %s97, %s98
    %p110 = scmp.eq.s32.totalorder %s20, 1
    %p111 = por %p109, %p110
    %p113 = scmp.ne.s32.totalorder %s98, %s112
    %p114 = scmp.eq.s32.totalorder %s20, 0
    %p115 = por %p113, %p114
    %s117 = sadd.s32 %s116, 1
    %p120 = scmp.eq.s32.totalorder %s14, 1
    %p121 = scmp.ne.s32.totalorder %s116, %s118
    %p122 = scmp.eq.s32.totalorder %s14, 0
    %p123 = por %p121, %p122
    %p124 = scmp.ne.s32.totalorder %s116, %s118
    %p125 = scmp.eq.s32.totalorder %s19, 1
    %p126 = por %p124, %p125
    %p127 = scmp.ne.s32.totalorder %s118, %s119
    %p128 = scmp.eq.s32.totalorder %s19, 0
    %p129 = por %p127, %p128
    %p130 = scmp.ne.s32.totalorder %s118, %s119
    %p131 = scmp.eq.s32.totalorder %s20, 1
    %p132 = por %p130, %p131
    %p134 = scmp.ne.s32.totalorder %s119, %s133
    %p135 = scmp.eq.s32.totalorder %s20, 0
    %p136 = por %p134, %p135
    %s138 = sadd.s32 %s137, 1
    %p141 = scmp.eq.s32.totalorder %s14, 1
    %p142 = scmp.ne.s32.totalorder %s137, %s139
    %p143 = scmp.eq.s32.totalorder %s14, 0
    %p144 = por %p142, %p143
    %p145 = scmp.ne.s32.totalorder %s137, %s139
    %p146 = scmp.eq.s32.totalorder %s19, 1
    %p147 = por %p145, %p146
    %p148 = scmp.ne.s32.totalorder %s139, %s140
    %p149 = scmp.eq.s32.totalorder %s19, 0
    %p150 = por %p148, %p149
    %p151 = scmp.ne.s32.totalorder %s139, %s140
    %p152 = scmp.eq.s32.totalorder %s20, 1
    %p153 = por %p151, %p152
    %p155 = scmp.ne.s32.totalorder %s140, %s154
    %p156 = scmp.eq.s32.totalorder %s20, 0
    %p157 = por %p155, %p156
    %s159 = sadd.s32 %s158, 1
    %p162 = scmp.eq.s32.totalorder %s14, 1
    %p163 = scmp.ne.s32.totalorder %s158, %s160
    %p164 = scmp.eq.s32.totalorder %s14, 0
    %p165 = por %p163, %p164
    %p166 = scmp.ne.s32.totalorder %s158, %s160
    %p167 = scmp.eq.s32.totalorder %s19, 1
    %p168 = por %p166, %p167
    %p169 = scmp.ne.s32.totalorder %s160, %s161
    %p170 = scmp.eq.s32.totalorder %s19, 0
    %p171 = por %p169, %p170
    %p172 = scmp.ne.s32.totalorder %s160, %s161
    %p173 = scmp.eq.s32.totalorder %s20, 1
    %p174 = por %p172, %p173
    %p176 = scmp.ne.s32.totalorder %s161, %s175
    %p177 = scmp.eq.s32.totalorder %s20, 0
    %p178 = por %p176, %p177
    %s180 = sadd.s32 %s179, 1
    %p183 = scmp.eq.s32.totalorder %s14, 1
    %p184 = scmp.ne.s32.totalorder %s179, %s181
    %p185 = scmp.eq.s32.totalorder %s14, 0
    %p186 = por %p184, %p185
    %p187 = scmp.ne.s32.totalorder %s179, %s181
    %p188 = scmp.eq.s32.totalorder %s19, 1
    %p189 = por %p187, %p188
    %p190 = scmp.ne.s32.totalorder %s181, %s182
    %p191 = scmp.eq.s32.totalorder %s19, 0
    %p192 = por %p190, %p191
    %p193 = scmp.ne.s32.totalorder %s181, %s182
    %p194 = scmp.eq.s32.totalorder %s20, 1
    %p195 = por %p193, %p194
    %p197 = scmp.ne.s32.totalorder %s182, %s196
    %p198 = scmp.eq.s32.totalorder %s20, 0
    %p199 = por %p197, %p198
    %s200 = ssub.s32 %s14, %s21
    %p201 = scmp.eq.s32.totalorder %s200, 0
    %s203 = sadd.s32 %s202, 1
    %s204 = scalar_select %p201, %s202, %s203
    %p207 = pneg %p201
    %p208 = scmp.eq.s32.totalorder %s14, 1
    %p209 = por %p207, %p208
    %p210 = scmp.ne.s32.totalorder %s202, %s205
    %p211 = scmp.eq.s32.totalorder %s14, 0
    %p212 = por %p210, %p211
    %p213 = scmp.ne.s32.totalorder %s202, %s205
    %p214 = scmp.eq.s32.totalorder %s19, 1
    %p215 = por %p213, %p214
    %p216 = scmp.ne.s32.totalorder %s205, %s206
    %p217 = scmp.eq.s32.totalorder %s19, 0
    %p218 = por %p216, %p217
    %p219 = scmp.ne.s32.totalorder %s205, %s206
    %p220 = scmp.eq.s32.totalorder %s20, 1
    %p221 = por %p219, %p220
    %p223 = scmp.ne.s32.totalorder %s206, %s222
    %p224 = scmp.eq.s32.totalorder %s20, 0
    %p225 = por %p223, %p224
    %p226 = scmp.le.s32.totalorder 1, %s14
    %p227 = scmp.lt.s32.totalorder %s14, 3
    %p228 = pnand %p226, %p227
    %p229 = pneg %p228
    // Predicated region
    $region9: #{decoder_forward.3} parent=5 // pred_check
      _
    $region10: #{decoder_forward.3} parent=5 // pred_check_branch
      %231 = sbr.rel (%p228) target = $region12
    $region11: #{decoder_forward.3} parent=5 // pred_region
      %s232 = ssub.s32 %s14, 1
      // Predicated region
      $region13: #{decoder_forward.3} parent=11 // pred_check
        %p233 = pneg %p87
      $region14: #{decoder_forward.3} parent=11 // pred_check_branch
        %235 = sbr.rel (%p233) target = $region16
      $region15: #{decoder_forward.3} parent=11 // pred_region
        _
      $region16: #{decoder_forward.3} parent=11 // pred_fallthru
        _
      // Predicated region
      $region17: #{decoder_forward.3} parent=11 // pred_check
        %p236 = pneg %p108
      $region18: #{decoder_forward.3} parent=11 // pred_check_branch
        %238 = sbr.rel (%p236) target = $region20
      $region19: #{decoder_forward.3} parent=11 // pred_region
        _
      $region20: #{decoder_forward.3} parent=11 // pred_fallthru
        _
      // Predicated region
      $region21: #{decoder_forward.3} parent=11 // pred_check
        %p239 = pneg %p129
      $region22: #{decoder_forward.3} parent=11 // pred_check_branch
        %241 = sbr.rel (%p239) target = $region24
      $region23: #{decoder_forward.3} parent=11 // pred_region
        _
      $region24: #{decoder_forward.3} parent=11 // pred_fallthru
        _
      // Predicated region
      $region25: #{decoder_forward.3} parent=11 // pred_check
        %p242 = pneg %p150
      $region26: #{decoder_forward.3} parent=11 // pred_check_branch
        %244 = sbr.rel (%p242) target = $region28
      $region27: #{decoder_forward.3} parent=11 // pred_region
        _
      $region28: #{decoder_forward.3} parent=11 // pred_fallthru
        _
      // Predicated region
      $region29: #{decoder_forward.3} parent=11 // pred_check
        %p245 = pneg %p171
      $region30: #{decoder_forward.3} parent=11 // pred_check_branch
        %247 = sbr.rel (%p245) target = $region32
      $region31: #{decoder_forward.3} parent=11 // pred_region
        _
      $region32: #{decoder_forward.3} parent=11 // pred_fallthru
        _
      // Predicated region
      $region33: #{decoder_forward.3} parent=11 // pred_check
        %p248 = pneg %p192
      $region34: #{decoder_forward.3} parent=11 // pred_check_branch
        %250 = sbr.rel (%p248) target = $region36
      $region35: #{decoder_forward.3} parent=11 // pred_region
        _
      $region36: #{decoder_forward.3} parent=11 // pred_fallthru
        _
    $region12: #{decoder_forward.3} parent=5 // pred_fallthru
      _
    %p251 = scmp.lt.s32.totalorder %s14, 2
    // Predicated region
    $region37: #{decoder_forward.3} parent=5 // pred_check
      %p252 = pneg %p251
    $region38: #{decoder_forward.3} parent=5 // pred_check_branch
      %254 = sbr.rel (%p252) target = $region40
    $region39: #{decoder_forward.3} parent=5 // pred_region
      // Predicated region
      $region41: #{decoder_forward.3} parent=39 // pred_check
        %p255 = pneg %p34
      $region42: #{decoder_forward.3} parent=39 // pred_check_branch
        %257 = sbr.rel (%p255) target = $region44
      $region43: #{decoder_forward.3} parent=39 // pred_region
        %p258 = scmp.lt.s32.totalorder %s14, 1
        %s259 = scalar_select %p258, %s14, 1
        %s260 = smul.addr %s259, 32
        %s261 = smul.addr %s260, 4
        %s262 = scalar_lea.vmem %s0, %s261
      $region44: #{decoder_forward.3} parent=39 // pred_fallthru
        _
      // Predicated region
      $region45: #{decoder_forward.3} parent=39 // pred_check
        %p263 = pneg %p60
      $region46: #{decoder_forward.3} parent=39 // pred_check_branch
        %265 = sbr.rel (%p263) target = $region48
      $region47: #{decoder_forward.3} parent=39 // pred_region
        %p266 = scmp.lt.s32.totalorder %s14, 1
        %s267 = scalar_select %p266, %s14, 1
        %s268 = smul.addr %s267, 32
        %s269 = smul.addr %s268, 4
        %s270 = scalar_lea.vmem %s1, %s269
      $region48: #{decoder_forward.3} parent=39 // pred_fallthru
        _
    $region40: #{decoder_forward.3} parent=5 // pred_fallthru
      _
    %p271 = scmp.le.s32.totalorder 1, %s14
    %p272 = scmp.lt.s32.totalorder %s14, 3
    %p273 = pnand %p271, %p272
    %p274 = pneg %p273
    // Predicated region
    $region49: #{decoder_forward.3} parent=5 // pred_check
      _
    $region50: #{decoder_forward.3} parent=5 // pred_check_branch
      %276 = sbr.rel (%p273) target = $region52
    $region51: #{decoder_forward.3} parent=5 // pred_region
      %s277 = ssub.s32 %s14, 1
      %p278 = scmp.lt.s32.totalorder %s19, 1
      %s279 = scalar_select %p278, %s19, 1
      %s280 = smul.addr %s279, 32
      %s281 = smul.addr %s280, 4
      %s282 = scalar_lea.vmem %s0, %s281
      %p283 = pneg %p40
      %p284 = pneg %p37
      %p285 = scmp.lt.s32.totalorder %s19, 1
      %s286 = scalar_select %p285, %s19, 1
      %s287 = smul.addr %s286, 32
      %s288 = smul.addr %s287, 4
      %s289 = scalar_lea.vmem %s1, %s288
      %p290 = pneg %p66
      %p291 = pneg %p63
      %p292 = pneg %p87
      %p293 = pneg %p84
      %p294 = pneg %p108
      %p295 = pneg %p105
      %p296 = pneg %p129
      %p297 = pneg %p126
      %p298 = pneg %p150
      %p299 = pneg %p147
      %p300 = pneg %p171
      %p301 = pneg %p168
      %p302 = pneg %p192
      %p303 = pneg %p189
      %p304 = pneg %p218
      %p305 = pneg %p215
      %p306 = scmp.lt.s32.totalorder %s19, 1
      %s307 = scalar_select %p306, %s19, 1
      %s308 = smul.addr %s307, 2
      %s309 = smul.addr %s308, 4
      %s310 = scalar_lea.vmem %s8, %s309
      %p311 = scmp.lt.s32.totalorder %s19, 1
      %s312 = scalar_select %p311, %s19, 1
      %s313 = smul.addr %s312, 32
      %s314 = smul.addr %s313, 4
      %s315 = scalar_lea.vmem %s0, %s314
      %p316 = scmp.lt.s32.totalorder %s19, 1
      %s317 = scalar_select %p316, %s19, 1
      %s318 = smul.addr %s317, 32
      %s319 = smul.addr %s318, 4
      %s320 = scalar_lea.vmem %s1, %s319
      %p321 = scmp.lt.s32.totalorder %s19, 1
      %s322 = scalar_select %p321, %s19, 1
      %s323 = smul.addr %s322, 2
      %s324 = smul.addr %s323, 4
      %s325 = scalar_lea.vmem %s8, %s324
      %v327 = vld [vmem:[%s315] sm:$0xf]
      %v328 = vld [vmem:[%s315 + $0x4] sm:$0xf]
      %v329 = vld [vmem:[%s315 + $0x8] sm:$0xf]
      %v330 = vld [vmem:[%s315 + $0xc] sm:$0xf]
      %v331 = vld [vmem:[%s315 + $0x10] sm:$0xf]
      %v332 = vld [vmem:[%s315 + $0x14] sm:$0xf]
      %v333 = vld [vmem:[%s315 + $0x18] sm:$0xf]
      %v334 = vld [vmem:[%s315 + $0x1c] sm:$0xf]
      %v335 = vld [vmem:[%s315 + $0x20] sm:$0xf]
      %v336 = vld [vmem:[%s315 + $0x24] sm:$0xf]
      %v337 = vld [vmem:[%s315 + $0x28] sm:$0xf]
      %v338 = vld [vmem:[%s315 + $0x2c] sm:$0xf]
      %v339 = vld [vmem:[%s315 + $0x30] sm:$0xf]
      %v340 = vld [vmem:[%s315 + $0x34] sm:$0xf]
      %v341 = vld [vmem:[%s315 + $0x38] sm:$0xf]
      %v342 = vld [vmem:[%s315 + $0x3c] sm:$0xf]
      %v343 = vld [vmem:[%s315 + $0x40] sm:$0xf]
      %v344 = vld [vmem:[%s315 + $0x44] sm:$0xf]
      %v345 = vld [vmem:[%s315 + $0x48] sm:$0xf]
      %v346 = vld [vmem:[%s315 + $0x4c] sm:$0xf]
      %v347 = vld [vmem:[%s315 + $0x50] sm:$0xf]
      %v348 = vld [vmem:[%s315 + $0x54] sm:$0xf]
      %v349 = vld [vmem:[%s315 + $0x58] sm:$0xf]
      %v350 = vld [vmem:[%s315 + $0x5c] sm:$0xf]
      %v351 = vld [vmem:[%s315 + $0x60] sm:$0xf]
      %v352 = vld [vmem:[%s315 + $0x64] sm:$0xf]
      %v353 = vld [vmem:[%s315 + $0x68] sm:$0xf]
      %v354 = vld [vmem:[%s315 + $0x6c] sm:$0xf]
      %v355 = vld [vmem:[%s315 + $0x70] sm:$0xf]
      %v356 = vld [vmem:[%s315 + $0x74] sm:$0xf]
      %v357 = vld [vmem:[%s315 + $0x78] sm:$0xf]
      %v358 = vld [vmem:[%s315 + $0x7c] sm:$0xf]
      %v359 = vld [vmem:[%s320] sm:$0xf]
      %v360 = vld [vmem:[%s320 + $0x4] sm:$0xf]
      %v361 = vld [vmem:[%s320 + $0x8] sm:$0xf]
      %v362 = vld [vmem:[%s320 + $0xc] sm:$0xf]
      %v363 = vld [vmem:[%s320 + $0x10] sm:$0xf]
      %v364 = vld [vmem:[%s320 + $0x14] sm:$0xf]
      %v365 = vld [vmem:[%s320 + $0x18] sm:$0xf]
      %v366 = vld [vmem:[%s320 + $0x1c] sm:$0xf]
      %v367 = vld [vmem:[%s320 + $0x20] sm:$0xf]
      %v368 = vld [vmem:[%s320 + $0x24] sm:$0xf]
      %v369 = vld [vmem:[%s320 + $0x28] sm:$0xf]
      %v370 = vld [vmem:[%s320 + $0x2c] sm:$0xf]
      %v371 = vld [vmem:[%s320 + $0x30] sm:$0xf]
      %v372 = vld [vmem:[%s320 + $0x34] sm:$0xf]
      %v373 = vld [vmem:[%s320 + $0x38] sm:$0xf]
      %v374 = vld [vmem:[%s320 + $0x3c] sm:$0xf]
      %v375 = vld [vmem:[%s320 + $0x40] sm:$0xf]
      %v376 = vld [vmem:[%s320 + $0x44] sm:$0xf]
      %v377 = vld [vmem:[%s320 + $0x48] sm:$0xf]
      %v378 = vld [vmem:[%s320 + $0x4c] sm:$0xf]
      %v379 = vld [vmem:[%s320 + $0x50] sm:$0xf]
      %v380 = vld [vmem:[%s320 + $0x54] sm:$0xf]
      %v381 = vld [vmem:[%s320 + $0x58] sm:$0xf]
      %v382 = vld [vmem:[%s320 + $0x5c] sm:$0xf]
      %v383 = vld [vmem:[%s320 + $0x60] sm:$0xf]
      %v384 = vld [vmem:[%s320 + $0x64] sm:$0xf]
      %v385 = vld [vmem:[%s320 + $0x68] sm:$0xf]
      %v386 = vld [vmem:[%s320 + $0x6c] sm:$0xf]
      %v387 = vld [vmem:[%s320 + $0x70] sm:$0xf]
      %v388 = vld [vmem:[%s320 + $0x74] sm:$0xf]
      %v389 = vld [vmem:[%s320 + $0x78] sm:$0xf]
      %v390 = vld [vmem:[%s320 + $0x7c] sm:$0xf]
      %v391 = vunpack.c.l.bf16 %v327
      %v392 = vunpack.c.l.bf16 %v328
      %v393 = vunpack.c.l.bf16 %v329
      %v394 = vunpack.c.l.bf16 %v330
      %v395 = vunpack.c.l.bf16 %v331
      %v396 = vunpack.c.l.bf16 %v332
      %v397 = vunpack.c.l.bf16 %v333
      %v398 = vunpack.c.l.bf16 %v334
      %v399 = vunpack.c.l.bf16 %v335
      %v400 = vunpack.c.l.bf16 %v336
      %v401 = vunpack.c.l.bf16 %v337
      %v402 = vunpack.c.l.bf16 %v338
      %v403 = vunpack.c.l.bf16 %v339
      %v404 = vunpack.c.l.bf16 %v340
      %v405 = vunpack.c.l.bf16 %v341
      %v406 = vunpack.c.l.bf16 %v342
      %v407 = vunpack.c.l.bf16 %v343
      %v408 = vunpack.c.l.bf16 %v344
      %v409 = vunpack.c.l.bf16 %v345
      %v410 = vunpack.c.l.bf16 %v346
      %v411 = vunpack.c.l.bf16 %v347
      %v412 = vunpack.c.l.bf16 %v348
      %v413 = vunpack.c.l.bf16 %v349
      %v414 = vunpack.c.l.bf16 %v350
      %v415 = vunpack.c.l.bf16 %v351
      %v416 = vunpack.c.l.bf16 %v352
      %v417 = vunpack.c.l.bf16 %v353
      %v418 = vunpack.c.l.bf16 %v354
      %v419 = vunpack.c.l.bf16 %v355
      %v420 = vunpack.c.l.bf16 %v356
      %v421 = vunpack.c.l.bf16 %v357
      %v422 = vunpack.c.l.bf16 %v358
      %v423 = vunpack.c.l.bf16 %v359
      %v424 = vunpack.c.l.bf16 %v360
      %v425 = vunpack.c.l.bf16 %v361
      %v426 = vunpack.c.l.bf16 %v362
      %v427 = vunpack.c.l.bf16 %v363
      %v428 = vunpack.c.l.bf16 %v364
      %v429 = vunpack.c.l.bf16 %v365
      %v430 = vunpack.c.l.bf16 %v366
      %v431 = vunpack.c.l.bf16 %v367
      %v432 = vunpack.c.l.bf16 %v368
      %v433 = vunpack.c.l.bf16 %v369
      %v434 = vunpack.c.l.bf16 %v370
      %v435 = vunpack.c.l.bf16 %v371
      %v436 = vunpack.c.l.bf16 %v372
      %v437 = vunpack.c.l.bf16 %v373
      %v438 = vunpack.c.l.bf16 %v374
      %v439 = vunpack.c.l.bf16 %v375
      %v440 = vunpack.c.l.bf16 %v376
      %v441 = vunpack.c.l.bf16 %v377
      %v442 = vunpack.c.l.bf16 %v378
      %v443 = vunpack.c.l.bf16 %v379
      %v444 = vunpack.c.l.bf16 %v380
      %v445 = vunpack.c.l.bf16 %v381
      %v446 = vunpack.c.l.bf16 %v382
      %v447 = vunpack.c.l.bf16 %v383
      %v448 = vunpack.c.l.bf16 %v384
      %v449 = vunpack.c.l.bf16 %v385
      %v450 = vunpack.c.l.bf16 %v386
      %v451 = vunpack.c.l.bf16 %v387
      %v452 = vunpack.c.l.bf16 %v388
      %v453 = vunpack.c.l.bf16 %v389
      %v454 = vunpack.c.l.bf16 %v390
      %v455 = vadd.f32 %v391, %v423
      %v456 = vadd.f32 %v392, %v424
      %v457 = vadd.f32 %v393, %v425
      %v458 = vadd.f32 %v394, %v426
      %v459 = vadd.f32 %v395, %v427
      %v460 = vadd.f32 %v396, %v428
      %v461 = vadd.f32 %v397, %v429
      %v462 = vadd.f32 %v398, %v430
      %v463 = vadd.f32 %v399, %v431
      %v464 = vadd.f32 %v400, %v432
      %v465 = vadd.f32 %v401, %v433
      %v466 = vadd.f32 %v402, %v434
      %v467 = vadd.f32 %v403, %v435
      %v468 = vadd.f32 %v404, %v436
      %v469 = vadd.f32 %v405, %v437
      %v470 = vadd.f32 %v406, %v438
      %v471 = vadd.f32 %v407, %v439
      %v472 = vadd.f32 %v408, %v440
      %v473 = vadd.f32 %v409, %v441
      %v474 = vadd.f32 %v410, %v442
      %v475 = vadd.f32 %v411, %v443
      %v476 = vadd.f32 %v412, %v444
      %v477 = vadd.f32 %v413, %v445
      %v478 = vadd.f32 %v414, %v446
      %v479 = vadd.f32 %v415, %v447
      %v480 = vadd.f32 %v416, %v448
      %v481 = vadd.f32 %v417, %v449
      %v482 = vadd.f32 %v418, %v450
      %v483 = vadd.f32 %v419, %v451
      %v484 = vadd.f32 %v420, %v452
      %v485 = vadd.f32 %v421, %v453
      %v486 = vadd.f32 %v422, %v454
      %v487 = vpack.c.bf16 %v455, %v455
      %v488 = vpack.c.bf16 %v456, %v456
      %v489 = vpack.c.bf16 %v457, %v457
      %v490 = vpack.c.bf16 %v458, %v458
      %v491 = vpack.c.bf16 %v459, %v459
      %v492 = vpack.c.bf16 %v460, %v460
      %v493 = vpack.c.bf16 %v461, %v461
      %v494 = vpack.c.bf16 %v462, %v462
      %v495 = vpack.c.bf16 %v463, %v463
      %v496 = vpack.c.bf16 %v464, %v464
      %v497 = vpack.c.bf16 %v465, %v465
      %v498 = vpack.c.bf16 %v466, %v466
      %v499 = vpack.c.bf16 %v467, %v467
      %v500 = vpack.c.bf16 %v468, %v468
      %v501 = vpack.c.bf16 %v469, %v469
      %v502 = vpack.c.bf16 %v470, %v470
      %v503 = vpack.c.bf16 %v471, %v471
      %v504 = vpack.c.bf16 %v472, %v472
      %v505 = vpack.c.bf16 %v473, %v473
      %v506 = vpack.c.bf16 %v474, %v474
      %v507 = vpack.c.bf16 %v475, %v475
      %v508 = vpack.c.bf16 %v476, %v476
      %v509 = vpack.c.bf16 %v477, %v477
      %v510 = vpack.c.bf16 %v478, %v478
      %v511 = vpack.c.bf16 %v479, %v479
      %v512 = vpack.c.bf16 %v480, %v480
      %v513 = vpack.c.bf16 %v481, %v481
      %v514 = vpack.c.bf16 %v482, %v482
      %v515 = vpack.c.bf16 %v483, %v483
      %v516 = vpack.c.bf16 %v484, %v484
      %v517 = vpack.c.bf16 %v485, %v485
      %v518 = vpack.c.bf16 %v486, %v486
      %vm519 = vcmask 257024
      %520 = vst.msk [vmem:[#allocation2] sm:$0xf] %vm519, 0
      %521 = vst.msk [vmem:[#allocation2 + $0x4] sm:$0xf] %vm519, 0
      %vm522 = vcmask 253952
      %523 = vst.msk [vmem:[#allocation2 + $0x8] sm:$0x1] %vm522, 0
      %524 = vst.msk [vmem:[#allocation2 + $0xc] sm:$0xf] %vm519, 0
      %525 = vst.msk [vmem:[#allocation2 + $0x10] sm:$0xf] %vm519, 0
      %526 = vst.msk [vmem:[#allocation2 + $0x14] sm:$0x1] %vm522, 0
      %527 = vst.msk [vmem:[#allocation2 + $0x18] sm:$0xf] %vm519, 0
      %528 = vst.msk [vmem:[#allocation2 + $0x1c] sm:$0xf] %vm519, 0
      %529 = vst.msk [vmem:[#allocation2 + $0x20] sm:$0x1] %vm522, 0
      %530 = vst.msk [vmem:[#allocation2 + $0x24] sm:$0xf] %vm519, 0
      %531 = vst.msk [vmem:[#allocation2 + $0x28] sm:$0xf] %vm519, 0
      %532 = vst.msk [vmem:[#allocation2 + $0x2c] sm:$0x1] %vm522, 0
      %533 = vst.msk [vmem:[#allocation2 + $0x30] sm:$0xf] %vm519, 0
      %534 = vst.msk [vmem:[#allocation2 + $0x34] sm:$0xf] %vm519, 0
      %535 = vst.msk [vmem:[#allocation2 + $0x38] sm:$0x1] %vm522, 0
      %536 = vst.msk [vmem:[#allocation2 + $0x3c] sm:$0xf] %vm519, 0
      %537 = vst.msk [vmem:[#allocation2 + $0x40] sm:$0xf] %vm519, 0
      %538 = vst.msk [vmem:[#allocation2 + $0x44] sm:$0x1] %vm522, 0
      %539 = vst.msk [vmem:[#allocation2 + $0x48] sm:$0xf] %vm519, 0
      %540 = vst.msk [vmem:[#allocation2 + $0x4c] sm:$0xf] %vm519, 0
      %541 = vst.msk [vmem:[#allocation2 + $0x50] sm:$0x1] %vm522, 0
      %542 = vst.msk [vmem:[#allocation2 + $0x54] sm:$0xf] %vm519, 0
      %543 = vst.msk [vmem:[#allocation2 + $0x58] sm:$0xf] %vm519, 0
      %544 = vst.msk [vmem:[#allocation2 + $0x5c] sm:$0x1] %vm522, 0
      %545 = vst.msk [vmem:[#allocation2 + $0x60] sm:$0xf] %vm519, 0
      %546 = vst.msk [vmem:[#allocation2 + $0x64] sm:$0xf] %vm519, 0
      %547 = vst.msk [vmem:[#allocation2 + $0x68] sm:$0x1] %vm522, 0
      %548 = vst.msk [vmem:[#allocation2 + $0x6c] sm:$0xf] %vm519, 0
      %549 = vst.msk [vmem:[#allocation2 + $0x70] sm:$0xf] %vm519, 0
      %550 = vst.msk [vmem:[#allocation2 + $0x74] sm:$0x1] %vm522, 0
      %551 = vst.msk [vmem:[#allocation2 + $0x78] sm:$0xf] %vm519, 0
      %552 = vst.msk [vmem:[#allocation2 + $0x7c] sm:$0xf] %vm519, 0
      %553 = vst.msk [vmem:[#allocation2 + $0x80] sm:$0x1] %vm522, 0
      %554 = vst.msk [vmem:[#allocation2 + $0x84] sm:$0xf] %vm519, 0
      %555 = vst.msk [vmem:[#allocation2 + $0x88] sm:$0xf] %vm519, 0
      %556 = vst.msk [vmem:[#allocation2 + $0x8c] sm:$0x1] %vm522, 0
      %557 = vst.msk [vmem:[#allocation2 + $0x90] sm:$0xf] %vm519, 0
      %558 = vst.msk [vmem:[#allocation2 + $0x94] sm:$0xf] %vm519, 0
      %559 = vst.msk [vmem:[#allocation2 + $0x98] sm:$0x1] %vm522, 0
      %560 = vst.msk [vmem:[#allocation2 + $0x9c] sm:$0xf] %vm519, 0
      %561 = vst.msk [vmem:[#allocation2 + $0xa0] sm:$0xf] %vm519, 0
      %562 = vst.msk [vmem:[#allocation2 + $0xa4] sm:$0x1] %vm522, 0
      %563 = vst.msk [vmem:[#allocation2 + $0xa8] sm:$0xf] %vm519, 0
      %564 = vst.msk [vmem:[#allocation2 + $0xac] sm:$0xf] %vm519, 0
      %565 = vst.msk [vmem:[#allocation2 + $0xb0] sm:$0x1] %vm522, 0
      %566 = vst.msk [vmem:[#allocation2 + $0xb4] sm:$0xf] %vm519, 0
      %567 = vst.msk [vmem:[#allocation2 + $0xb8] sm:$0xf] %vm519, 0
      %568 = vst.msk [vmem:[#allocation2 + $0xbc] sm:$0x1] %vm522, 0
      %569 = vst.msk [vmem:[#allocation2 + $0xc0] sm:$0xf] %vm519, 0
      %570 = vst.msk [vmem:[#allocation2 + $0xc4] sm:$0xf] %vm519, 0
      %571 = vst.msk [vmem:[#allocation2 + $0xc8] sm:$0x1] %vm522, 0
      %572 = vst.msk [vmem:[#allocation2 + $0xcc] sm:$0xf] %vm519, 0
      %573 = vst.msk [vmem:[#allocation2 + $0xd0] sm:$0xf] %vm519, 0
      %574 = vst.msk [vmem:[#allocation2 + $0xd4] sm:$0x1] %vm522, 0
      %vm575 = vsmask.f32 256
      %vm576 = vsmask.f32 4368
      %vm577 = vmor %vm575, %vm576
      %v579 = vshrl.u32 %v487, 16
      %v581 = vrot.slane %v579, 7
      %v582 = vshll.u32 %v487, 16
      %v584 = vor.u32 %v581, %v582
      %v585 = vrot.slane %v581, 4
      %v587 = vshrl.u32 %v488, 16
      %v589 = vrot.slane %v587, 7
      %v590 = vshll.u32 %v488, 16
      %v592 = vor.u32 %v589, %v590
      %v593 = vsel %vm577, %v585, %v592
      %v594 = vrot.slane %v589, 4
      %v596 = vshrl.u32 %v489, 16
      %v598 = vrot.slane %v596, 7
      %v599 = vshll.u32 %v489, 16
      %v601 = vor.u32 %v598, %v599
      %v602 = vrot.slane %v598, 4
      %v604 = vshrl.u32 %v490, 16
      %v606 = vrot.slane %v604, 7
      %v607 = vshll.u32 %v490, 16
      %v609 = vor.u32 %v606, %v607
      %v610 = vsel %vm577, %v602, %v609
      %v611 = vrot.slane %v606, 4
      %v613 = vshrl.u32 %v491, 16
      %v615 = vrot.slane %v613, 7
      %v616 = vshll.u32 %v491, 16
      %v618 = vor.u32 %v615, %v616
      %v619 = vrot.slane %v615, 4
      %v621 = vshrl.u32 %v492, 16
      %v623 = vrot.slane %v621, 7
      %v624 = vshll.u32 %v492, 16
      %v626 = vor.u32 %v623, %v624
      %v627 = vsel %vm577, %v619, %v626
      %v628 = vrot.slane %v623, 4
      %v630 = vshrl.u32 %v493, 16
      %v632 = vrot.slane %v630, 7
      %v633 = vshll.u32 %v493, 16
      %v635 = vor.u32 %v632, %v633
      %v636 = vrot.slane %v632, 4
      %v638 = vshrl.u32 %v494, 16
      %v640 = vrot.slane %v638, 7
      %v641 = vshll.u32 %v494, 16
      %v643 = vor.u32 %v640, %v641
      %v644 = vsel %vm577, %v636, %v643
      %v645 = vrot.slane %v640, 4
      %v647 = vshrl.u32 %v495, 16
      %v649 = vrot.slane %v647, 7
      %v650 = vshll.u32 %v495, 16
      %v652 = vor.u32 %v649, %v650
      %v653 = vrot.slane %v649, 4
      %v655 = vshrl.u32 %v496, 16
      %v657 = vrot.slane %v655, 7
      %v658 = vshll.u32 %v496, 16
      %v660 = vor.u32 %v657, %v658
      %v661 = vsel %vm577, %v653, %v660
      %v662 = vrot.slane %v657, 4
      %v664 = vshrl.u32 %v497, 16
      %v666 = vrot.slane %v664, 7
      %v667 = vshll.u32 %v497, 16
      %v669 = vor.u32 %v666, %v667
      %v670 = vrot.slane %v666, 4
      %v672 = vshrl.u32 %v498, 16
      %v674 = vrot.slane %v672, 7
      %v675 = vshll.u32 %v498, 16
      %v677 = vor.u32 %v674, %v675
      %v678 = vsel %vm577, %v670, %v677
      %v679 = vrot.slane %v674, 4
      %v681 = vshrl.u32 %v499, 16
      %v683 = vrot.slane %v681, 7
      %v684 = vshll.u32 %v499, 16
      %v686 = vor.u32 %v683, %v684
      %v687 = vrot.slane %v683, 4
      %v689 = vshrl.u32 %v500, 16
      %v691 = vrot.slane %v689, 7
      %v692 = vshll.u32 %v500, 16
      %v694 = vor.u32 %v691, %v692
      %v695 = vsel %vm577, %v687, %v694
      %v696 = vrot.slane %v691, 4
      %v698 = vshrl.u32 %v501, 16
      %v700 = vrot.slane %v698, 7
      %v701 = vshll.u32 %v501, 16
      %v703 = vor.u32 %v700, %v701
      %v704 = vrot.slane %v700, 4
      %v706 = vshrl.u32 %v502, 16
      %v708 = vrot.slane %v706, 7
      %v709 = vshll.u32 %v502, 16
      %v711 = vor.u32 %v708, %v709
      %v712 = vsel %vm577, %v704, %v711
      %v713 = vrot.slane %v708, 4
      %v715 = vshrl.u32 %v503, 16
      %v717 = vrot.slane %v715, 7
      %v718 = vshll.u32 %v503, 16
      %v720 = vor.u32 %v717, %v718
      %v721 = vrot.slane %v717, 4
      %v723 = vshrl.u32 %v504, 16
      %v725 = vrot.slane %v723, 7
      %v726 = vshll.u32 %v504, 16
      %v728 = vor.u32 %v725, %v726
      %v729 = vsel %vm577, %v721, %v728
      %v730 = vrot.slane %v725, 4
      %v732 = vshrl.u32 %v505, 16
      %v734 = vrot.slane %v732, 7
      %v735 = vshll.u32 %v505, 16
      %v737 = vor.u32 %v734, %v735
      %v738 = vrot.slane %v734, 4
      %v740 = vshrl.u32 %v506, 16
      %v742 = vrot.slane %v740, 7
      %v743 = vshll.u32 %v506, 16
      %v745 = vor.u32 %v742, %v743
      %v746 = vsel %vm577, %v738, %v745
      %v747 = vrot.slane %v742, 4
      %v749 = vshrl.u32 %v507, 16
      %v751 = vrot.slane %v749, 7
      %v752 = vshll.u32 %v507, 16
      %v754 = vor.u32 %v751, %v752
      %v755 = vrot.slane %v751, 4
      %v757 = vshrl.u32 %v508, 16
      %v759 = vrot.slane %v757, 7
      %v760 = vshll.u32 %v508, 16
      %v762 = vor.u32 %v759, %v760
      %v763 = vsel %vm577, %v755, %v762
      %v764 = vrot.slane %v759, 4
      %v766 = vshrl.u32 %v509, 16
      %v768 = vrot.slane %v766, 7
      %v769 = vshll.u32 %v509, 16
      %v771 = vor.u32 %v768, %v769
      %v772 = vrot.slane %v768, 4
      %v774 = vshrl.u32 %v510, 16
      %v776 = vrot.slane %v774, 7
      %v777 = vshll.u32 %v510, 16
      %v779 = vor.u32 %v776, %v777
      %v780 = vsel %vm577, %v772, %v779
      %v781 = vrot.slane %v776, 4
      %v783 = vshrl.u32 %v511, 16
      %v785 = vrot.slane %v783, 7
      %v786 = vshll.u32 %v511, 16
      %v788 = vor.u32 %v785, %v786
      %v789 = vrot.slane %v785, 4
      %v791 = vshrl.u32 %v512, 16
      %v793 = vrot.slane %v791, 7
      %v794 = vshll.u32 %v512, 16
      %v796 = vor.u32 %v793, %v794
      %v797 = vsel %vm577, %v789, %v796
      %v798 = vrot.slane %v793, 4
      %v800 = vshrl.u32 %v513, 16
      %v802 = vrot.slane %v800, 7
      %v803 = vshll.u32 %v513, 16
      %v805 = vor.u32 %v802, %v803
      %v806 = vrot.slane %v802, 4
      %v808 = vshrl.u32 %v514, 16
      %v810 = vrot.slane %v808, 7
      %v811 = vshll.u32 %v514, 16
      %v813 = vor.u32 %v810, %v811
      %v814 = vsel %vm577, %v806, %v813
      %v815 = vrot.slane %v810, 4
      %v817 = vshrl.u32 %v515, 16
      %v819 = vrot.slane %v817, 7
      %v820 = vshll.u32 %v515, 16
      %v822 = vor.u32 %v819, %v820
      %v823 = vrot.slane %v819, 4
      %v825 = vshrl.u32 %v516, 16
      %v827 = vrot.slane %v825, 7
      %v828 = vshll.u32 %v516, 16
      %v830 = vor.u32 %v827, %v828
      %v831 = vsel %vm577, %v823, %v830
      %v832 = vrot.slane %v827, 4
      %v834 = vshrl.u32 %v517, 16
      %v836 = vrot.slane %v834, 7
      %v837 = vshll.u32 %v517, 16
      %v839 = vor.u32 %v836, %v837
      %v840 = vrot.slane %v836, 4
      %v842 = vshrl.u32 %v518, 16
      %v844 = vrot.slane %v842, 7
      %v845 = vshll.u32 %v518, 16
      %v847 = vor.u32 %v844, %v845
      %v848 = vsel %vm577, %v840, %v847
      %v849 = vrot.slane %v844, 4
      %s898 = scalar_lea.vmem [#allocation2], 12
      %vm899 = vcmask 257024
      %vm900 = vsmask.f32 7938
      %vm901 = vmand %vm899, %vm900
      %v902 = vld [vmem:[%s898] sm:$0xf]
      %v903 = vsel %vm901, %v584, %v902
      %904 = vst [vmem:[%s898] sm:$0xf] %v903
      %905 = vst.msk [vmem:[%s898 + $0x4] sm:$0xf] %vm519, %v593
      %vm906 = vcmask 253952
      %vm907 = vmand %vm906, %vm575
      %v908 = vld [vmem:[%s898 + $0x8] sm:$0x1]
      %v909 = vsel %vm907, %v594, %v908
      %910 = vst [vmem:[%s898 + $0x8] sm:$0x1] %v909
      %v911 = vld [vmem:[%s898 + $0xc] sm:$0xf]
      %v912 = vsel %vm901, %v601, %v911
      %913 = vst [vmem:[%s898 + $0xc] sm:$0xf] %v912
      %914 = vst.msk [vmem:[%s898 + $0x10] sm:$0xf] %vm519, %v610
      %v915 = vld [vmem:[%s898 + $0x14] sm:$0x1]
      %v916 = vsel %vm907, %v611, %v915
      %917 = vst [vmem:[%s898 + $0x14] sm:$0x1] %v916
      %v918 = vld [vmem:[%s898 + $0x18] sm:$0xf]
      %v919 = vsel %vm901, %v618, %v918
      %920 = vst [vmem:[%s898 + $0x18] sm:$0xf] %v919
      %921 = vst.msk [vmem:[%s898 + $0x1c] sm:$0xf] %vm519, %v627
      %v922 = vld [vmem:[%s898 + $0x20] sm:$0x1]
      %v923 = vsel %vm907, %v628, %v922
      %924 = vst [vmem:[%s898 + $0x20] sm:$0x1] %v923
      %v925 = vld [vmem:[%s898 + $0x24] sm:$0xf]
      %v926 = vsel %vm901, %v635, %v925
      %927 = vst [vmem:[%s898 + $0x24] sm:$0xf] %v926
      %928 = vst.msk [vmem:[%s898 + $0x28] sm:$0xf] %vm519, %v644
      %v929 = vld [vmem:[%s898 + $0x2c] sm:$0x1]
      %v930 = vsel %vm907, %v645, %v929
      %931 = vst [vmem:[%s898 + $0x2c] sm:$0x1] %v930
      %v932 = vld [vmem:[%s898 + $0x30] sm:$0xf]
      %v933 = vsel %vm901, %v652, %v932
      %934 = vst [vmem:[%s898 + $0x30] sm:$0xf] %v933
      %935 = vst.msk [vmem:[%s898 + $0x34] sm:$0xf] %vm519, %v661
      %v936 = vld [vmem:[%s898 + $0x38] sm:$0x1]
      %v937 = vsel %vm907, %v662, %v936
      %938 = vst [vmem:[%s898 + $0x38] sm:$0x1] %v937
      %v939 = vld [vmem:[%s898 + $0x3c] sm:$0xf]
      %v940 = vsel %vm901, %v669, %v939
      %941 = vst [vmem:[%s898 + $0x3c] sm:$0xf] %v940
      %942 = vst.msk [vmem:[%s898 + $0x40] sm:$0xf] %vm519, %v678
      %v943 = vld [vmem:[%s898 + $0x44] sm:$0x1]
      %v944 = vsel %vm907, %v679, %v943
      %945 = vst [vmem:[%s898 + $0x44] sm:$0x1] %v944
      %v946 = vld [vmem:[%s898 + $0x48] sm:$0xf]
      %v947 = vsel %vm901, %v686, %v946
      %948 = vst [vmem:[%s898 + $0x48] sm:$0xf] %v947
      %949 = vst.msk [vmem:[%s898 + $0x4c] sm:$0xf] %vm519, %v695
      %v950 = vld [vmem:[%s898 + $0x50] sm:$0x1]
      %v951 = vsel %vm907, %v696, %v950
      %952 = vst [vmem:[%s898 + $0x50] sm:$0x1] %v951
      %v953 = vld [vmem:[%s898 + $0x54] sm:$0xf]
      %v954 = vsel %vm901, %v703, %v953
      %955 = vst [vmem:[%s898 + $0x54] sm:$0xf] %v954
      %956 = vst.msk [vmem:[%s898 + $0x58] sm:$0xf] %vm519, %v712
      %v957 = vld [vmem:[%s898 + $0x5c] sm:$0x1]
      %v958 = vsel %vm907, %v713, %v957
      %959 = vst [vmem:[%s898 + $0x5c] sm:$0x1] %v958
      %v960 = vld [vmem:[%s898 + $0x60] sm:$0xf]
      %v961 = vsel %vm901, %v720, %v960
      %962 = vst [vmem:[%s898 + $0x60] sm:$0xf] %v961
      %963 = vst.msk [vmem:[%s898 + $0x64] sm:$0xf] %vm519, %v729
      %v964 = vld [vmem:[%s898 + $0x68] sm:$0x1]
      %v965 = vsel %vm907, %v730, %v964
      %966 = vst [vmem:[%s898 + $0x68] sm:$0x1] %v965
      %v967 = vld [vmem:[%s898 + $0x6c] sm:$0xf]
      %v968 = vsel %vm901, %v737, %v967
      %969 = vst [vmem:[%s898 + $0x6c] sm:$0xf] %v968
      %970 = vst.msk [vmem:[%s898 + $0x70] sm:$0xf] %vm519, %v746
      %v971 = vld [vmem:[%s898 + $0x74] sm:$0x1]
      %v972 = vsel %vm907, %v747, %v971
      %973 = vst [vmem:[%s898 + $0x74] sm:$0x1] %v972
      %v974 = vld [vmem:[%s898 + $0x78] sm:$0xf]
      %v975 = vsel %vm901, %v754, %v974
      %976 = vst [vmem:[%s898 + $0x78] sm:$0xf] %v975
      %977 = vst.msk [vmem:[%s898 + $0x7c] sm:$0xf] %vm519, %v763
      %v978 = vld [vmem:[%s898 + $0x80] sm:$0x1]
      %v979 = vsel %vm907, %v764, %v978
      %980 = vst [vmem:[%s898 + $0x80] sm:$0x1] %v979
      %v981 = vld [vmem:[%s898 + $0x84] sm:$0xf]
      %v982 = vsel %vm901, %v771, %v981
      %983 = vst [vmem:[%s898 + $0x84] sm:$0xf] %v982
      %984 = vst.msk [vmem:[%s898 + $0x88] sm:$0xf] %vm519, %v780
      %v985 = vld [vmem:[%s898 + $0x8c] sm:$0x1]
      %v986 = vsel %vm907, %v781, %v985
      %987 = vst [vmem:[%s898 + $0x8c] sm:$0x1] %v986
      %v988 = vld [vmem:[%s898 + $0x90] sm:$0xf]
      %v989 = vsel %vm901, %v788, %v988
      %990 = vst [vmem:[%s898 + $0x90] sm:$0xf] %v989
      %991 = vst.msk [vmem:[%s898 + $0x94] sm:$0xf] %vm519, %v797
      %v992 = vld [vmem:[%s898 + $0x98] sm:$0x1]
      %v993 = vsel %vm907, %v798, %v992
      %994 = vst [vmem:[%s898 + $0x98] sm:$0x1] %v993
      %v995 = vld [vmem:[%s898 + $0x9c] sm:$0xf]
      %v996 = vsel %vm901, %v805, %v995
      %997 = vst [vmem:[%s898 + $0x9c] sm:$0xf] %v996
      %998 = vst.msk [vmem:[%s898 + $0xa0] sm:$0xf] %vm519, %v814
      %v999 = vld [vmem:[%s898 + $0xa4] sm:$0x1]
      %v1000 = vsel %vm907, %v815, %v999
      %1001 = vst [vmem:[%s898 + $0xa4] sm:$0x1] %v1000
      %v1002 = vld [vmem:[%s898 + $0xa8] sm:$0xf]
      %v1003 = vsel %vm901, %v822, %v1002
      %1004 = vst [vmem:[%s898 + $0xa8] sm:$0xf] %v1003
      %1005 = vst.msk [vmem:[%s898 + $0xac] sm:$0xf] %vm519, %v831
      %v1006 = vld [vmem:[%s898 + $0xb0] sm:$0x1]
      %v1007 = vsel %vm907, %v832, %v1006
      %1008 = vst [vmem:[%s898 + $0xb0] sm:$0x1] %v1007
      %v1009 = vld [vmem:[%s898 + $0xb4] sm:$0xf]
      %v1010 = vsel %vm901, %v839, %v1009
      %1011 = vst [vmem:[%s898 + $0xb4] sm:$0xf] %v1010
      %1012 = vst.msk [vmem:[%s898 + $0xb8] sm:$0xf] %vm519, %v848
      %v1013 = vld [vmem:[%s898 + $0xbc] sm:$0x1]
      %v1014 = vsel %vm907, %v849, %v1013
      %1015 = vst [vmem:[%s898 + $0xbc] sm:$0x1] %v1014
      %v1016 = vld [vmem:[#allocation2] sm:$0xf]
      %v1017 = vld [vmem:[#allocation2 + $0x4] sm:$0xf]
      %v1018 = vld [vmem:[#allocation2 + $0x8] sm:$0x1]
      %v1019 = vld [vmem:[#allocation2 + $0xc] sm:$0xf]
      %v1020 = vld [vmem:[#allocation2 + $0x10] sm:$0xf]
      %v1021 = vld [vmem:[#allocation2 + $0x14] sm:$0x1]
      %v1022 = vld [vmem:[#allocation2 + $0x18] sm:$0xf]
      %v1023 = vld [vmem:[#allocation2 + $0x1c] sm:$0xf]
      %v1024 = vld [vmem:[#allocation2 + $0x20] sm:$0x1]
      %v1025 = vld [vmem:[#allocation2 + $0x24] sm:$0xf]
      %v1026 = vld [vmem:[#allocation2 + $0x28] sm:$0xf]
      %v1027 = vld [vmem:[#allocation2 + $0x2c] sm:$0x1]
      %v1028 = vld [vmem:[#allocation2 + $0x30] sm:$0xf]
      %v1029 = vld [vmem:[#allocation2 + $0x34] sm:$0xf]
      %v1030 = vld [vmem:[#allocation2 + $0x38] sm:$0x1]
      %v1031 = vld [vmem:[#allocation2 + $0x3c] sm:$0xf]
      %v1032 = vld [vmem:[#allocation2 + $0x40] sm:$0xf]
      %v1033 = vld [vmem:[#allocation2 + $0x44] sm:$0x1]
      %v1034 = vld [vmem:[#allocation2 + $0x48] sm:$0xf]
      %v1035 = vld [vmem:[#allocation2 + $0x4c] sm:$0xf]
      %v1036 = vld [vmem:[#allocation2 + $0x50] sm:$0x1]
      %v1037 = vld [vmem:[#allocation2 + $0x54] sm:$0xf]
      %v1038 = vld [vmem:[#allocation2 + $0x58] sm:$0xf]
      %v1039 = vld [vmem:[#allocation2 + $0x5c] sm:$0x1]
      %v1040 = vld [vmem:[#allocation2 + $0x60] sm:$0xf]
      %v1041 = vld [vmem:[#allocation2 + $0x64] sm:$0xf]
      %v1042 = vld [vmem:[#allocation2 + $0x68] sm:$0x1]
      %v1043 = vld [vmem:[#allocation2 + $0x6c] sm:$0xf]
      %v1044 = vld [vmem:[#allocation2 + $0x70] sm:$0xf]
      %v1045 = vld [vmem:[#allocation2 + $0x74] sm:$0x1]
      %v1046 = vld [vmem:[#allocation2 + $0x78] sm:$0xf]
      %v1047 = vld [vmem:[#allocation2 + $0x7c] sm:$0xf]
      %v1048 = vld [vmem:[#allocation2 + $0x80] sm:$0x1]
      %v1049 = vld [vmem:[#allocation2 + $0x84] sm:$0xf]
      %v1050 = vld [vmem:[#allocation2 + $0x88] sm:$0xf]
      %v1051 = vld [vmem:[#allocation2 + $0x8c] sm:$0x1]
      %v1052 = vld [vmem:[#allocation2 + $0x90] sm:$0xf]
      %v1053 = vld [vmem:[#allocation2 + $0x94] sm:$0xf]
      %v1054 = vld [vmem:[#allocation2 + $0x98] sm:$0x1]
      %v1055 = vld [vmem:[#allocation2 + $0x9c] sm:$0xf]
      %v1056 = vld [vmem:[#allocation2 + $0xa0] sm:$0xf]
      %v1057 = vld [vmem:[#allocation2 + $0xa4] sm:$0x1]
      %v1058 = vld [vmem:[#allocation2 + $0xa8] sm:$0xf]
      %v1059 = vld [vmem:[#allocation2 + $0xac] sm:$0xf]
      %v1060 = vld [vmem:[#allocation2 + $0xb0] sm:$0x1]
      %v1061 = vld [vmem:[#allocation2 + $0xb4] sm:$0xf]
      %v1062 = vld [vmem:[#allocation2 + $0xb8] sm:$0xf]
      %v1063 = vld [vmem:[#allocation2 + $0xbc] sm:$0x1]
      %v1064 = vld [vmem:[#allocation2 + $0xc0] sm:$0xf]
      %v1065 = vld [vmem:[#allocation2 + $0xc4] sm:$0xf]
      %v1066 = vld [vmem:[#allocation2 + $0xc8] sm:$0x1]
      %v1067 = vld [vmem:[#allocation2 + $0xcc] sm:$0xf]
      %v1068 = vld [vmem:[#allocation2 + $0xd0] sm:$0xf]
      %v1069 = vld [vmem:[#allocation2 + $0xd4] sm:$0x1]
      %v1102 = vunpack.c.l.b16 %v1016
      %v1103 = vunpack.c.l.b16 %v1017
      %v1104 = vunpack.c.l.b16 %v1019
      %v1105 = vunpack.c.l.b16 %v1020
      %v1106 = vunpack.c.l.b16 %v1022
      %v1107 = vunpack.c.l.b16 %v1023
      %v1108 = vunpack.c.l.b16 %v1025
      %v1109 = vunpack.c.l.b16 %v1026
      %v1110 = vunpack.c.l.b16 %v1028
      %v1111 = vunpack.c.l.b16 %v1029
      %v1112 = vunpack.c.l.b16 %v1031
      %v1113 = vunpack.c.l.b16 %v1032
      %v1114 = vunpack.c.l.b16 %v1034
      %v1115 = vunpack.c.l.b16 %v1035
      %v1116 = vunpack.c.l.b16 %v1037
      %v1117 = vunpack.c.l.b16 %v1038
      %v1118 = vunpack.c.l.b16 %v1040
      %v1119 = vunpack.c.l.b16 %v1041
      %v1120 = vunpack.c.l.b16 %v1043
      %v1121 = vunpack.c.l.b16 %v1044
      %v1122 = vunpack.c.l.b16 %v1046
      %v1123 = vunpack.c.l.b16 %v1047
      %v1124 = vunpack.c.l.b16 %v1049
      %v1125 = vunpack.c.l.b16 %v1050
      %v1126 = vunpack.c.l.b16 %v1052
      %v1127 = vunpack.c.l.b16 %v1053
      %v1128 = vunpack.c.l.b16 %v1055
      %v1129 = vunpack.c.l.b16 %v1056
      %v1130 = vunpack.c.l.b16 %v1058
      %v1131 = vunpack.c.l.b16 %v1059
      %v1132 = vunpack.c.l.b16 %v1061
      %v1133 = vunpack.c.l.b16 %v1062
      %v1134 = vpack.c.b16 %v1103, %v1102
      %v1135 = vpack.c.b16 %v1105, %v1104
      %v1136 = vpack.c.b16 %v1107, %v1106
      %v1137 = vpack.c.b16 %v1109, %v1108
      %v1138 = vpack.c.b16 %v1111, %v1110
      %v1139 = vpack.c.b16 %v1113, %v1112
      %v1140 = vpack.c.b16 %v1115, %v1114
      %v1141 = vpack.c.b16 %v1117, %v1116
      %v1142 = vpack.c.b16 %v1119, %v1118
      %v1143 = vpack.c.b16 %v1121, %v1120
      %v1144 = vpack.c.b16 %v1123, %v1122
      %v1145 = vpack.c.b16 %v1125, %v1124
      %v1146 = vpack.c.b16 %v1127, %v1126
      %v1147 = vpack.c.b16 %v1129, %v1128
      %v1148 = vpack.c.b16 %v1131, %v1130
      %v1149 = vpack.c.b16 %v1133, %v1132
      %v1166 = vunpack.c.l.b16 %v1018
      %v1167 = vunpack.c.l.b16 %v1021
      %v1168 = vunpack.c.l.b16 %v1024
      %v1169 = vunpack.c.l.b16 %v1027
      %v1170 = vunpack.c.l.b16 %v1030
      %v1171 = vunpack.c.l.b16 %v1033
      %v1172 = vunpack.c.l.b16 %v1036
      %v1173 = vunpack.c.l.b16 %v1039
      %v1174 = vunpack.c.l.b16 %v1042
      %v1175 = vunpack.c.l.b16 %v1045
      %v1176 = vunpack.c.l.b16 %v1048
      %v1177 = vunpack.c.l.b16 %v1051
      %v1178 = vunpack.c.l.b16 %v1054
      %v1179 = vunpack.c.l.b16 %v1057
      %v1180 = vunpack.c.l.b16 %v1060
      %v1181 = vunpack.c.l.b16 %v1063
      %v1182 = vpack.c.b16 %v1166, %v1166
      %v1183 = vpack.c.b16 %v1167, %v1167
      %v1184 = vpack.c.b16 %v1168, %v1168
      %v1185 = vpack.c.b16 %v1169, %v1169
      %v1186 = vpack.c.b16 %v1170, %v1170
      %v1187 = vpack.c.b16 %v1171, %v1171
      %v1188 = vpack.c.b16 %v1172, %v1172
      %v1189 = vpack.c.b16 %v1173, %v1173
      %v1190 = vpack.c.b16 %v1174, %v1174
      %v1191 = vpack.c.b16 %v1175, %v1175
      %v1192 = vpack.c.b16 %v1176, %v1176
      %v1193 = vpack.c.b16 %v1177, %v1177
      %v1194 = vpack.c.b16 %v1178, %v1178
      %v1195 = vpack.c.b16 %v1179, %v1179
      %v1196 = vpack.c.b16 %v1180, %v1180
      %v1197 = vpack.c.b16 %v1181, %v1181
      %vm1198 = vsmask.f32 7424
      %v1200 = vshrl.u32 %v1134, 16
      %v1202 = vshll.u32 %v1134, 16
      %v1204 = vrot.slane %v1202, 1
      %v1205 = vor.u32 %v1200, %v1204
      %v1207 = vshll.u32 %v1182, 16
      %v1209 = vrot.slane %v1207, 1
      %v1210 = vsel %vm1198, %v1205, %v1209
      %v1212 = vshrl.u32 %v1135, 16
      %v1214 = vshll.u32 %v1135, 16
      %v1216 = vrot.slane %v1214, 1
      %v1217 = vor.u32 %v1212, %v1216
      %v1219 = vshll.u32 %v1183, 16
      %v1221 = vrot.slane %v1219, 1
      %v1222 = vsel %vm1198, %v1217, %v1221
      %v1224 = vshrl.u32 %v1136, 16
      %v1226 = vshll.u32 %v1136, 16
      %v1228 = vrot.slane %v1226, 1
      %v1229 = vor.u32 %v1224, %v1228
      %v1231 = vshll.u32 %v1184, 16
      %v1233 = vrot.slane %v1231, 1
      %v1234 = vsel %vm1198, %v1229, %v1233
      %v1236 = vshrl.u32 %v1137, 16
      %v1238 = vshll.u32 %v1137, 16
      %v1240 = vrot.slane %v1238, 1
      %v1241 = vor.u32 %v1236, %v1240
      %v1243 = vshll.u32 %v1185, 16
      %v1245 = vrot.slane %v1243, 1
      %v1246 = vsel %vm1198, %v1241, %v1245
      %v1248 = vshrl.u32 %v1138, 16
      %v1250 = vshll.u32 %v1138, 16
      %v1252 = vrot.slane %v1250, 1
      %v1253 = vor.u32 %v1248, %v1252
      %v1255 = vshll.u32 %v1186, 16
      %v1257 = vrot.slane %v1255, 1
      %v1258 = vsel %vm1198, %v1253, %v1257
      %v1260 = vshrl.u32 %v1139, 16
      %v1262 = vshll.u32 %v1139, 16
      %v1264 = vrot.slane %v1262, 1
      %v1265 = vor.u32 %v1260, %v1264
      %v1267 = vshll.u32 %v1187, 16
      %v1269 = vrot.slane %v1267, 1
      %v1270 = vsel %vm1198, %v1265, %v1269
      %v1272 = vshrl.u32 %v1140, 16
      %v1274 = vshll.u32 %v1140, 16
      %v1276 = vrot.slane %v1274, 1
      %v1277 = vor.u32 %v1272, %v1276
      %v1279 = vshll.u32 %v1188, 16
      %v1281 = vrot.slane %v1279, 1
      %v1282 = vsel %vm1198, %v1277, %v1281
      %v1284 = vshrl.u32 %v1141, 16
      %v1286 = vshll.u32 %v1141, 16
      %v1288 = vrot.slane %v1286, 1
      %v1289 = vor.u32 %v1284, %v1288
      %v1291 = vshll.u32 %v1189, 16
      %v1293 = vrot.slane %v1291, 1
      %v1294 = vsel %vm1198, %v1289, %v1293
      %v1296 = vshrl.u32 %v1142, 16
      %v1298 = vshll.u32 %v1142, 16
      %v1300 = vrot.slane %v1298, 1
      %v1301 = vor.u32 %v1296, %v1300
      %v1303 = vshll.u32 %v1190, 16
      %v1305 = vrot.slane %v1303, 1
      %v1306 = vsel %vm1198, %v1301, %v1305
      %v1308 = vshrl.u32 %v1143, 16
      %v1310 = vshll.u32 %v1143, 16
      %v1312 = vrot.slane %v1310, 1
      %v1313 = vor.u32 %v1308, %v1312
      %v1315 = vshll.u32 %v1191, 16
      %v1317 = vrot.slane %v1315, 1
      %v1318 = vsel %vm1198, %v1313, %v1317
      %v1320 = vshrl.u32 %v1144, 16
      %v1322 = vshll.u32 %v1144, 16
      %v1324 = vrot.slane %v1322, 1
      %v1325 = vor.u32 %v1320, %v1324
      %v1327 = vshll.u32 %v1192, 16
      %v1329 = vrot.slane %v1327, 1
      %v1330 = vsel %vm1198, %v1325, %v1329
      %v1332 = vshrl.u32 %v1145, 16
      %v1334 = vshll.u32 %v1145, 16
      %v1336 = vrot.slane %v1334, 1
      %v1337 = vor.u32 %v1332, %v1336
      %v1339 = vshll.u32 %v1193, 16
      %v1341 = vrot.slane %v1339, 1
      %v1342 = vsel %vm1198, %v1337, %v1341
      %v1344 = vshrl.u32 %v1146, 16
      %v1346 = vshll.u32 %v1146, 16
      %v1348 = vrot.slane %v1346, 1
      %v1349 = vor.u32 %v1344, %v1348
      %v1351 = vshll.u32 %v1194, 16
      %v1353 = vrot.slane %v1351, 1
      %v1354 = vsel %vm1198, %v1349, %v1353
      %v1356 = vshrl.u32 %v1147, 16
      %v1358 = vshll.u32 %v1147, 16
      %v1360 = vrot.slane %v1358, 1
      %v1361 = vor.u32 %v1356, %v1360
      %v1363 = vshll.u32 %v1195, 16
      %v1365 = vrot.slane %v1363, 1
      %v1366 = vsel %vm1198, %v1361, %v1365
      %v1368 = vshrl.u32 %v1148, 16
      %v1370 = vshll.u32 %v1148, 16
      %v1372 = vrot.slane %v1370, 1
      %v1373 = vor.u32 %v1368, %v1372
      %v1375 = vshll.u32 %v1196, 16
      %v1377 = vrot.slane %v1375, 1
      %v1378 = vsel %vm1198, %v1373, %v1377
      %v1380 = vshrl.u32 %v1149, 16
      %v1382 = vshll.u32 %v1149, 16
      %v1384 = vrot.slane %v1382, 1
      %v1385 = vor.u32 %v1380, %v1384
      %v1387 = vshll.u32 %v1197, 16
      %v1389 = vrot.slane %v1387, 1
      %v1390 = vsel %vm1198, %v1385, %v1389
      %1391 = vrot.lane.b32.xlu0 %v1210, 32
      %v1392 = vpop.permute.xlu0 %1391
      %1393 = vrot.lane.b32.xlu0 %v1222, 32
      %v1394 = vpop.permute.xlu0 %1393
      %1395 = vrot.lane.b32.xlu0 %v1234, 32
      %v1396 = vpop.permute.xlu0 %1395
      %1397 = vrot.lane.b32.xlu0 %v1246, 32
      %v1398 = vpop.permute.xlu0 %1397
      %1399 = vrot.lane.b32.xlu0 %v1258, 32
      %v1400 = vpop.permute.xlu0 %1399
      %1401 = vrot.lane.b32.xlu0 %v1270, 32
      %v1402 = vpop.permute.xlu0 %1401
      %1403 = vrot.lane.b32.xlu0 %v1282, 32
      %v1404 = vpop.permute.xlu0 %1403
      %1405 = vrot.lane.b32.xlu0 %v1294, 32
      %v1406 = vpop.permute.xlu0 %1405
      %1407 = vrot.lane.b32.xlu0 %v1306, 32
      %v1408 = vpop.permute.xlu0 %1407
      %1409 = vrot.lane.b32.xlu0 %v1318, 32
      %v1410 = vpop.permute.xlu0 %1409
      %1411 = vrot.lane.b32.xlu0 %v1330, 32
      %v1412 = vpop.permute.xlu0 %1411
      %1413 = vrot.lane.b32.xlu0 %v1342, 32
      %v1414 = vpop.permute.xlu0 %1413
      %1415 = vrot.lane.b32.xlu0 %v1354, 32
      %v1416 = vpop.permute.xlu0 %1415
      %1417 = vrot.lane.b32.xlu0 %v1366, 32
      %v1418 = vpop.permute.xlu0 %1417
      %1419 = vrot.lane.b32.xlu0 %v1378, 32
      %v1420 = vpop.permute.xlu0 %1419
      %1421 = vrot.lane.b32.xlu0 %v1390, 32
      %v1422 = vpop.permute.xlu0 %1421
      %vm1423 = vcmask 1046528
      %v1424 = vrot.slane %v1134, 1
      %v1425 = vrot.slane %v1182, 1
      %v1426 = vsel %vm1423, %v1424, %v1425
      %v1427 = vrot.slane %v1135, 1
      %v1428 = vrot.slane %v1183, 1
      %v1429 = vsel %vm1423, %v1427, %v1428
      %v1430 = vrot.slane %v1136, 1
      %v1431 = vrot.slane %v1184, 1
      %v1432 = vsel %vm1423, %v1430, %v1431
      %v1433 = vrot.slane %v1137, 1
      %v1434 = vrot.slane %v1185, 1
      %v1435 = vsel %vm1423, %v1433, %v1434
      %v1436 = vrot.slane %v1138, 1
      %v1437 = vrot.slane %v1186, 1
      %v1438 = vsel %vm1423, %v1436, %v1437
      %v1439 = vrot.slane %v1139, 1
      %v1440 = vrot.slane %v1187, 1
      %v1441 = vsel %vm1423, %v1439, %v1440
      %v1442 = vrot.slane %v1140, 1
      %v1443 = vrot.slane %v1188, 1
      %v1444 = vsel %vm1423, %v1442, %v1443
      %v1445 = vrot.slane %v1141, 1
      %v1446 = vrot.slane %v1189, 1
      %v1447 = vsel %vm1423, %v1445, %v1446
      %v1448 = vrot.slane %v1142, 1
      %v1449 = vrot.slane %v1190, 1
      %v1450 = vsel %vm1423, %v1448, %v1449
      %v1451 = vrot.slane %v1143, 1
      %v1452 = vrot.slane %v1191, 1
      %v1453 = vsel %vm1423, %v1451, %v1452
      %v1454 = vrot.slane %v1144, 1
      %v1455 = vrot.slane %v1192, 1
      %v1456 = vsel %vm1423, %v1454, %v1455
      %v1457 = vrot.slane %v1145, 1
      %v1458 = vrot.slane %v1193, 1
      %v1459 = vsel %vm1423, %v1457, %v1458
      %v1460 = vrot.slane %v1146, 1
      %v1461 = vrot.slane %v1194, 1
      %v1462 = vsel %vm1423, %v1460, %v1461
      %v1463 = vrot.slane %v1147, 1
      %v1464 = vrot.slane %v1195, 1
      %v1465 = vsel %vm1423, %v1463, %v1464
      %v1466 = vrot.slane %v1148, 1
      %v1467 = vrot.slane %v1196, 1
      %v1468 = vsel %vm1423, %v1466, %v1467
      %v1469 = vrot.slane %v1149, 1
      %v1470 = vrot.slane %v1197, 1
      %v1471 = vsel %vm1423, %v1469, %v1470
      %1472 = vrot.lane.b32.xlu0 %v1426, 64
      %v1473 = vpop.permute.xlu0 %1472
      %1474 = vrot.lane.b32.xlu0 %v1429, 64
      %v1475 = vpop.permute.xlu0 %1474
      %1476 = vrot.lane.b32.xlu0 %v1432, 64
      %v1477 = vpop.permute.xlu0 %1476
      %1478 = vrot.lane.b32.xlu0 %v1435, 64
      %v1479 = vpop.permute.xlu0 %1478
      %1480 = vrot.lane.b32.xlu0 %v1438, 64
      %v1481 = vpop.permute.xlu0 %1480
      %1482 = vrot.lane.b32.xlu0 %v1441, 64
      %v1483 = vpop.permute.xlu0 %1482
      %1484 = vrot.lane.b32.xlu0 %v1444, 64
      %v1485 = vpop.permute.xlu0 %1484
      %1486 = vrot.lane.b32.xlu0 %v1447, 64
      %v1487 = vpop.permute.xlu0 %1486
      %1488 = vrot.lane.b32.xlu0 %v1450, 64
      %v1489 = vpop.permute.xlu0 %1488
      %1490 = vrot.lane.b32.xlu0 %v1453, 64
      %v1491 = vpop.permute.xlu0 %1490
      %1492 = vrot.lane.b32.xlu0 %v1456, 64
      %v1493 = vpop.permute.xlu0 %1492
      %1494 = vrot.lane.b32.xlu0 %v1459, 64
      %v1495 = vpop.permute.xlu0 %1494
      %1496 = vrot.lane.b32.xlu0 %v1462, 64
      %v1497 = vpop.permute.xlu0 %1496
      %1498 = vrot.lane.b32.xlu0 %v1465, 64
      %v1499 = vpop.permute.xlu0 %1498
      %1500 = vrot.lane.b32.xlu0 %v1468, 64
      %v1501 = vpop.permute.xlu0 %1500
      %1502 = vrot.lane.b32.xlu0 %v1471, 64
      %v1503 = vpop.permute.xlu0 %1502
      %v1506 = vunpack.c.l.b16 %v1064
      %v1507 = vunpack.c.l.b16 %v1065
      %v1508 = vpack.c.b16 %v1507, %v1506
      %1509 = vrot.lane.b32.xlu0 %v1135, 96
      %v1510 = vpop.permute.xlu0 %1509
      %1511 = vrot.lane.b32.xlu0 %v1136, 96
      %v1512 = vpop.permute.xlu0 %1511
      %1513 = vrot.lane.b32.xlu0 %v1137, 96
      %v1514 = vpop.permute.xlu0 %1513
      %1515 = vrot.lane.b32.xlu0 %v1138, 96
      %v1516 = vpop.permute.xlu0 %1515
      %1517 = vrot.lane.b32.xlu0 %v1139, 96
      %v1518 = vpop.permute.xlu0 %1517
      %1519 = vrot.lane.b32.xlu0 %v1140, 96
      %v1520 = vpop.permute.xlu0 %1519
      %1521 = vrot.lane.b32.xlu0 %v1141, 96
      %v1522 = vpop.permute.xlu0 %1521
      %1523 = vrot.lane.b32.xlu0 %v1142, 96
      %v1524 = vpop.permute.xlu0 %1523
      %1525 = vrot.lane.b32.xlu0 %v1143, 96
      %v1526 = vpop.permute.xlu0 %1525
      %1527 = vrot.lane.b32.xlu0 %v1144, 96
      %v1528 = vpop.permute.xlu0 %1527
      %1529 = vrot.lane.b32.xlu0 %v1145, 96
      %v1530 = vpop.permute.xlu0 %1529
      %1531 = vrot.lane.b32.xlu0 %v1146, 96
      %v1532 = vpop.permute.xlu0 %1531
      %1533 = vrot.lane.b32.xlu0 %v1147, 96
      %v1534 = vpop.permute.xlu0 %1533
      %1535 = vrot.lane.b32.xlu0 %v1148, 96
      %v1536 = vpop.permute.xlu0 %1535
      %1537 = vrot.lane.b32.xlu0 %v1149, 96
      %v1538 = vpop.permute.xlu0 %1537
      %1539 = vrot.lane.b32.xlu0 %v1508, 96
      %v1540 = vpop.permute.xlu0 %1539
      %v1542 = vunpack.c.l.b16 %v1066
      %v1543 = vpack.c.b16 %v1542, %v1542
      %v1545 = vshrl.u32 %v1508, 16
      %v1547 = vshll.u32 %v1508, 16
      %v1549 = vrot.slane %v1547, 1
      %v1550 = vor.u32 %v1545, %v1549
      %v1552 = vshll.u32 %v1543, 16
      %v1554 = vrot.slane %v1552, 1
      %v1555 = vsel %vm1198, %v1550, %v1554
      %v1556 = vrot.slane %v1508, 1
      %v1557 = vrot.slane %v1543, 1
      %v1558 = vsel %vm1423, %v1556, %v1557
      %1559 = vrot.lane.b32.xlu0 %v1429, 32
      %v1560 = vpop.permute.xlu0 %1559
      %1561 = vrot.lane.b32.xlu0 %v1432, 32
      %v1562 = vpop.permute.xlu0 %1561
      %1563 = vrot.lane.b32.xlu0 %v1435, 32
      %v1564 = vpop.permute.xlu0 %1563
      %1565 = vrot.lane.b32.xlu0 %v1438, 32
      %v1566 = vpop.permute.xlu0 %1565
      %1567 = vrot.lane.b32.xlu0 %v1441, 32
      %v1568 = vpop.permute.xlu0 %1567
      %1569 = vrot.lane.b32.xlu0 %v1444, 32
      %v1570 = vpop.permute.xlu0 %1569
      %1571 = vrot.lane.b32.xlu0 %v1447, 32
      %v1572 = vpop.permute.xlu0 %1571
      %1573 = vrot.lane.b32.xlu0 %v1450, 32
      %v1574 = vpop.permute.xlu0 %1573
      %1575 = vrot.lane.b32.xlu0 %v1453, 32
      %v1576 = vpop.permute.xlu0 %1575
      %1577 = vrot.lane.b32.xlu0 %v1456, 32
      %v1578 = vpop.permute.xlu0 %1577
      %1579 = vrot.lane.b32.xlu0 %v1459, 32
      %v1580 = vpop.permute.xlu0 %1579
      %1581 = vrot.lane.b32.xlu0 %v1462, 32
      %v1582 = vpop.permute.xlu0 %1581
      %1583 = vrot.lane.b32.xlu0 %v1465, 32
      %v1584 = vpop.permute.xlu0 %1583
      %1585 = vrot.lane.b32.xlu0 %v1468, 32
      %v1586 = vpop.permute.xlu0 %1585
      %1587 = vrot.lane.b32.xlu0 %v1471, 32
      %v1588 = vpop.permute.xlu0 %1587
      %1589 = vrot.lane.b32.xlu0 %v1558, 32
      %v1590 = vpop.permute.xlu0 %1589
      %v1593 = vunpack.c.l.b16 %v1067
      %v1594 = vunpack.c.l.b16 %v1068
      %v1595 = vpack.c.b16 %v1594, %v1593
      %1596 = vrot.lane.b32.xlu0 %v1136, 64
      %v1597 = vpop.permute.xlu0 %1596
      %1598 = vrot.lane.b32.xlu0 %v1137, 64
      %v1599 = vpop.permute.xlu0 %1598
      %1600 = vrot.lane.b32.xlu0 %v1138, 64
      %v1601 = vpop.permute.xlu0 %1600
      %1602 = vrot.lane.b32.xlu0 %v1139, 64
      %v1603 = vpop.permute.xlu0 %1602
      %1604 = vrot.lane.b32.xlu0 %v1140, 64
      %v1605 = vpop.permute.xlu0 %1604
      %1606 = vrot.lane.b32.xlu0 %v1141, 64
      %v1607 = vpop.permute.xlu0 %1606
      %1608 = vrot.lane.b32.xlu0 %v1142, 64
      %v1609 = vpop.permute.xlu0 %1608
      %1610 = vrot.lane.b32.xlu0 %v1143, 64
      %v1611 = vpop.permute.xlu0 %1610
      %1612 = vrot.lane.b32.xlu0 %v1144, 64
      %v1613 = vpop.permute.xlu0 %1612
      %1614 = vrot.lane.b32.xlu0 %v1145, 64
      %v1615 = vpop.permute.xlu0 %1614
      %1616 = vrot.lane.b32.xlu0 %v1146, 64
      %v1617 = vpop.permute.xlu0 %1616
      %1618 = vrot.lane.b32.xlu0 %v1147, 64
      %v1619 = vpop.permute.xlu0 %1618
      %1620 = vrot.lane.b32.xlu0 %v1148, 64
      %v1621 = vpop.permute.xlu0 %1620
      %1622 = vrot.lane.b32.xlu0 %v1149, 64
      %v1623 = vpop.permute.xlu0 %1622
      %1624 = vrot.lane.b32.xlu0 %v1508, 64
      %v1625 = vpop.permute.xlu0 %1624
      %1626 = vrot.lane.b32.xlu0 %v1595, 64
      %v1627 = vpop.permute.xlu0 %1626
      %v1629 = vunpack.c.l.b16 %v1069
      %v1630 = vpack.c.b16 %v1629, %v1629
      %v1632 = vshrl.u32 %v1595, 16
      %v1634 = vshll.u32 %v1595, 16
      %v1636 = vrot.slane %v1634, 1
      %v1637 = vor.u32 %v1632, %v1636
      %v1639 = vshll.u32 %v1630, 16
      %v1641 = vrot.slane %v1639, 1
      %v1642 = vsel %vm1198, %v1637, %v1641
      %1643 = vrot.lane.b32.xlu0 %v1234, 96
      %v1644 = vpop.permute.xlu0 %1643
      %1645 = vrot.lane.b32.xlu0 %v1246, 96
      %v1646 = vpop.permute.xlu0 %1645
      %1647 = vrot.lane.b32.xlu0 %v1258, 96
      %v1648 = vpop.permute.xlu0 %1647
      %1649 = vrot.lane.b32.xlu0 %v1270, 96
      %v1650 = vpop.permute.xlu0 %1649
      %1651 = vrot.lane.b32.xlu0 %v1282, 96
      %v1652 = vpop.permute.xlu0 %1651
      %1653 = vrot.lane.b32.xlu0 %v1294, 96
      %v1654 = vpop.permute.xlu0 %1653
      %1655 = vrot.lane.b32.xlu0 %v1306, 96
      %v1656 = vpop.permute.xlu0 %1655
      %1657 = vrot.lane.b32.xlu0 %v1318, 96
      %v1658 = vpop.permute.xlu0 %1657
      %1659 = vrot.lane.b32.xlu0 %v1330, 96
      %v1660 = vpop.permute.xlu0 %1659
      %1661 = vrot.lane.b32.xlu0 %v1342, 96
      %v1662 = vpop.permute.xlu0 %1661
      %1663 = vrot.lane.b32.xlu0 %v1354, 96
      %v1664 = vpop.permute.xlu0 %1663
      %1665 = vrot.lane.b32.xlu0 %v1366, 96
      %v1666 = vpop.permute.xlu0 %1665
      %1667 = vrot.lane.b32.xlu0 %v1378, 96
      %v1668 = vpop.permute.xlu0 %1667
      %1669 = vrot.lane.b32.xlu0 %v1390, 96
      %v1670 = vpop.permute.xlu0 %1669
      %1671 = vrot.lane.b32.xlu0 %v1555, 96
      %v1672 = vpop.permute.xlu0 %1671
      %1673 = vrot.lane.b32.xlu0 %v1642, 96
      %v1674 = vpop.permute.xlu0 %1673
      %v1675 = vrot.slane %v1595, 1
      %v1676 = vrot.slane %v1630, 1
      %v1677 = vsel %vm1423, %v1675, %v1676
      %vm1678 = vcmask 261120
      %v1680 = vsel %vm1678, %v1134, %v1392
      %v1682 = vsel %vm1678, %v1135, %v1394
      %v1684 = vsel %vm1678, %v1136, %v1396
      %v1686 = vsel %vm1678, %v1137, %v1398
      %v1688 = vsel %vm1678, %v1138, %v1400
      %v1690 = vsel %vm1678, %v1139, %v1402
      %v1692 = vsel %vm1678, %v1140, %v1404
      %v1694 = vsel %vm1678, %v1141, %v1406
      %v1696 = vsel %vm1678, %v1142, %v1408
      %v1698 = vsel %vm1678, %v1143, %v1410
      %v1700 = vsel %vm1678, %v1144, %v1412
      %v1702 = vsel %vm1678, %v1145, %v1414
      %v1704 = vsel %vm1678, %v1146, %v1416
      %v1706 = vsel %vm1678, %v1147, %v1418
      %v1708 = vsel %vm1678, %v1148, %v1420
      %v1710 = vsel %vm1678, %v1149, %v1422
      %vm1711 = vcmask 523264
      %v1713 = vsel %vm1711, %v1680, %v1473
      %v1715 = vsel %vm1711, %v1682, %v1475
      %v1717 = vsel %vm1711, %v1684, %v1477
      %v1719 = vsel %vm1711, %v1686, %v1479
      %v1721 = vsel %vm1711, %v1688, %v1481
      %v1723 = vsel %vm1711, %v1690, %v1483
      %v1725 = vsel %vm1711, %v1692, %v1485
      %v1727 = vsel %vm1711, %v1694, %v1487
      %v1729 = vsel %vm1711, %v1696, %v1489
      %v1731 = vsel %vm1711, %v1698, %v1491
      %v1733 = vsel %vm1711, %v1700, %v1493
      %v1735 = vsel %vm1711, %v1702, %v1495
      %v1737 = vsel %vm1711, %v1704, %v1497
      %v1739 = vsel %vm1711, %v1706, %v1499
      %v1741 = vsel %vm1711, %v1708, %v1501
      %v1743 = vsel %vm1711, %v1710, %v1503
      %vm1744 = vcmask 785408
      %v1746 = vsel %vm1744, %v1713, %v1510
      %v1749 = vsel %vm1744, %v1715, %v1512
      %v1752 = vsel %vm1744, %v1717, %v1514
      %v1755 = vsel %vm1744, %v1719, %v1516
      %v1758 = vsel %vm1744, %v1721, %v1518
      %v1761 = vsel %vm1744, %v1723, %v1520
      %v1764 = vsel %vm1744, %v1725, %v1522
      %v1767 = vsel %vm1744, %v1727, %v1524
      %v1770 = vsel %vm1744, %v1729, %v1526
      %v1773 = vsel %vm1744, %v1731, %v1528
      %v1776 = vsel %vm1744, %v1733, %v1530
      %v1779 = vsel %vm1744, %v1735, %v1532
      %v1782 = vsel %vm1744, %v1737, %v1534
      %v1785 = vsel %vm1744, %v1739, %v1536
      %v1788 = vsel %vm1744, %v1741, %v1538
      %v1791 = vsel %vm1744, %v1743, %v1540
      %v1795 = vsel %vm1678, %v1222, %v1560
      %v1798 = vsel %vm1678, %v1234, %v1562
      %v1801 = vsel %vm1678, %v1246, %v1564
      %v1804 = vsel %vm1678, %v1258, %v1566
      %v1807 = vsel %vm1678, %v1270, %v1568
      %v1810 = vsel %vm1678, %v1282, %v1570
      %v1813 = vsel %vm1678, %v1294, %v1572
      %v1816 = vsel %vm1678, %v1306, %v1574
      %v1819 = vsel %vm1678, %v1318, %v1576
      %v1822 = vsel %vm1678, %v1330, %v1578
      %v1825 = vsel %vm1678, %v1342, %v1580
      %v1828 = vsel %vm1678, %v1354, %v1582
      %v1831 = vsel %vm1678, %v1366, %v1584
      %v1834 = vsel %vm1678, %v1378, %v1586
      %v1837 = vsel %vm1678, %v1390, %v1588
      %v1840 = vsel %vm1678, %v1555, %v1590
      %v1842 = vsel %vm1711, %v1795, %v1597
      %v1844 = vsel %vm1711, %v1798, %v1599
      %v1846 = vsel %vm1711, %v1801, %v1601
      %v1848 = vsel %vm1711, %v1804, %v1603
      %v1850 = vsel %vm1711, %v1807, %v1605
      %v1852 = vsel %vm1711, %v1810, %v1607
      %v1854 = vsel %vm1711, %v1813, %v1609
      %v1856 = vsel %vm1711, %v1816, %v1611
      %v1858 = vsel %vm1711, %v1819, %v1613
      %v1860 = vsel %vm1711, %v1822, %v1615
      %v1862 = vsel %vm1711, %v1825, %v1617
      %v1864 = vsel %vm1711, %v1828, %v1619
      %v1866 = vsel %vm1711, %v1831, %v1621
      %v1868 = vsel %vm1711, %v1834, %v1623
      %v1870 = vsel %vm1711, %v1837, %v1625
      %v1872 = vsel %vm1711, %v1840, %v1627
      %v1874 = vsel %vm1744, %v1842, %v1644
      %v1877 = vsel %vm1744, %v1844, %v1646
      %v1880 = vsel %vm1744, %v1846, %v1648
      %v1883 = vsel %vm1744, %v1848, %v1650
      %v1886 = vsel %vm1744, %v1850, %v1652
      %v1889 = vsel %vm1744, %v1852, %v1654
      %v1892 = vsel %vm1744, %v1854, %v1656
      %v1895 = vsel %vm1744, %v1856, %v1658
      %v1898 = vsel %vm1744, %v1858, %v1660
      %v1901 = vsel %vm1744, %v1860, %v1662
      %v1904 = vsel %vm1744, %v1862, %v1664
      %v1907 = vsel %vm1744, %v1864, %v1666
      %v1910 = vsel %vm1744, %v1866, %v1668
      %v1913 = vsel %vm1744, %v1868, %v1670
      %v1916 = vsel %vm1744, %v1870, %v1672
      %v1919 = vsel %vm1744, %v1872, %v1674
      %v1921 = vld [vmem:[%s2] sm:$0xf]
      %v1922 = vld [vmem:[%s2 + $0x4] sm:$0xf]
      %v1923 = vld [vmem:[%s2 + $0x8] sm:$0xf]
      %v1924 = vld [vmem:[%s2 + $0xc] sm:$0xf]
      %v1925 = vld [vmem:[%s2 + $0x10] sm:$0xf]
      %v1926 = vld [vmem:[%s2 + $0x14] sm:$0xf]
      %v1927 = vld [vmem:[%s2 + $0x18] sm:$0xf]
      %v1928 = vld [vmem:[%s2 + $0x1c] sm:$0xf]
      %v1929 = vld [vmem:[%s2 + $0x20] sm:$0xf]
      %v1930 = vld [vmem:[%s2 + $0x24] sm:$0xf]
      %v1931 = vld [vmem:[%s2 + $0x28] sm:$0xf]
      %v1932 = vld [vmem:[%s2 + $0x2c] sm:$0xf]
      %v1933 = vld [vmem:[%s2 + $0x30] sm:$0xf]
      %v1934 = vld [vmem:[%s2 + $0x34] sm:$0xf]
      %v1935 = vld [vmem:[%s2 + $0x38] sm:$0xf]
      %v1936 = vld [vmem:[%s2 + $0x3c] sm:$0xf]
      %v1937 = vld [vmem:[%s2 + $0x40] sm:$0xf]
      %v1938 = vld [vmem:[%s2 + $0x44] sm:$0xf]
      %v1939 = vld [vmem:[%s2 + $0x48] sm:$0xf]
      %v1940 = vld [vmem:[%s2 + $0x4c] sm:$0xf]
      %v1941 = vld [vmem:[%s2 + $0x50] sm:$0xf]
      %v1942 = vld [vmem:[%s2 + $0x54] sm:$0xf]
      %v1943 = vld [vmem:[%s2 + $0x58] sm:$0xf]
      %v1944 = vld [vmem:[%s2 + $0x5c] sm:$0xf]
      %v1945 = vld [vmem:[%s2 + $0x60] sm:$0xf]
      %v1946 = vld [vmem:[%s2 + $0x64] sm:$0xf]
      %v1947 = vld [vmem:[%s2 + $0x68] sm:$0xf]
      %v1948 = vld [vmem:[%s2 + $0x6c] sm:$0xf]
      %v1949 = vld [vmem:[%s2 + $0x70] sm:$0xf]
      %v1950 = vld [vmem:[%s2 + $0x74] sm:$0xf]
      %v1951 = vld [vmem:[%s2 + $0x78] sm:$0xf]
      %v1952 = vld [vmem:[%s2 + $0x7c] sm:$0xf]
      %v1953 = vld [vmem:[%s2 + $0x80] sm:$0xf]
      %v1954 = vld [vmem:[%s2 + $0x84] sm:$0xf]
      %v1955 = vld [vmem:[%s2 + $0x88] sm:$0xf]
      %v1956 = vld [vmem:[%s2 + $0x8c] sm:$0xf]
      %v1957 = vld [vmem:[%s3] sm:$0x1]
      %v1959 = vperm.slane %v1957, 0
      %v1997 = vunpack.c.l.b16 %v1921
      %v1998 = vunpack.c.l.b16 %v1922
      %v1999 = vunpack.c.l.b16 %v1923
      %v2000 = vunpack.c.l.b16 %v1924
      %v2001 = vunpack.c.l.b16 %v1925
      %v2002 = vunpack.c.l.b16 %v1926
      %v2003 = vunpack.c.l.b16 %v1927
      %v2004 = vunpack.c.l.b16 %v1928
      %v2005 = vunpack.c.l.b16 %v1929
      %v2006 = vunpack.c.l.b16 %v1930
      %v2007 = vunpack.c.l.b16 %v1931
      %v2008 = vunpack.c.l.b16 %v1932
      %v2009 = vunpack.c.l.b16 %v1933
      %v2010 = vunpack.c.l.b16 %v1934
      %v2011 = vunpack.c.l.b16 %v1935
      %v2012 = vunpack.c.l.b16 %v1936
      %v2013 = vunpack.c.l.b16 %v1937
      %v2014 = vunpack.c.l.b16 %v1938
      %v2015 = vunpack.c.l.b16 %v1939
      %v2016 = vunpack.c.l.b16 %v1940
      %v2017 = vunpack.c.l.b16 %v1941
      %v2018 = vunpack.c.l.b16 %v1942
      %v2019 = vunpack.c.l.b16 %v1943
      %v2020 = vunpack.c.l.b16 %v1944
      %v2021 = vunpack.c.l.b16 %v1945
      %v2022 = vunpack.c.l.b16 %v1946
      %v2023 = vunpack.c.l.b16 %v1947
      %v2024 = vunpack.c.l.b16 %v1948
      %v2025 = vunpack.c.l.b16 %v1949
      %v2026 = vunpack.c.l.b16 %v1950
      %v2027 = vunpack.c.l.b16 %v1951
      %v2028 = vunpack.c.l.b16 %v1952
      %v2029 = vunpack.c.l.b16 %v1953
      %v2030 = vunpack.c.l.b16 %v1954
      %v2031 = vunpack.c.l.b16 %v1955
      %v2032 = vunpack.c.l.b16 %v1956
      %v2033 = vpack.c.b16 %v1998, %v1997
      %v2034 = vpack.c.b16 %v2000, %v1999
      %v2035 = vpack.c.b16 %v2002, %v2001
      %v2036 = vpack.c.b16 %v2004, %v2003
      %v2037 = vpack.c.b16 %v2006, %v2005
      %v2038 = vpack.c.b16 %v2008, %v2007
      %v2039 = vpack.c.b16 %v2010, %v2009
      %v2040 = vpack.c.b16 %v2012, %v2011
      %v2041 = vpack.c.b16 %v2014, %v2013
      %v2042 = vpack.c.b16 %v2016, %v2015
      %v2043 = vpack.c.b16 %v2018, %v2017
      %v2044 = vpack.c.b16 %v2020, %v2019
      %v2045 = vpack.c.b16 %v2022, %v2021
      %v2046 = vpack.c.b16 %v2024, %v2023
      %v2047 = vpack.c.b16 %v2026, %v2025
      %v2048 = vpack.c.b16 %v2028, %v2027
      %v2049 = vpack.c.b16 %v2030, %v2029
      %v2050 = vpack.c.b16 %v2032, %v2031
      %v2070 = vsel %vm1678, %v1432, 0
      %v2073 = vsel %vm1678, %v1435, 0
      %v2076 = vsel %vm1678, %v1438, 0
      %v2079 = vsel %vm1678, %v1441, 0
      %v2082 = vsel %vm1678, %v1444, 0
      %v2085 = vsel %vm1678, %v1447, 0
      %v2088 = vsel %vm1678, %v1450, 0
      %v2091 = vsel %vm1678, %v1453, 0
      %v2094 = vsel %vm1678, %v1456, 0
      %v2097 = vsel %vm1678, %v1459, 0
      %v2100 = vsel %vm1678, %v1462, 0
      %v2103 = vsel %vm1678, %v1465, 0
      %v2106 = vsel %vm1678, %v1468, 0
      %v2109 = vsel %vm1678, %v1471, 0
      %v2112 = vsel %vm1678, %v1558, 0
      %v2115 = vsel %vm1678, %v1677, 0
      %2117 = vmatpush.bf16.msra.mxu0 %v2040
      %2118 = vmatpush.bf16.msra.mxu0 %v2039
      %2119 = vmatpush.bf16.msra.mxu0 %v2038
      %2120 = vmatpush.bf16.msra.mxu0 %v2037
      %2121 = vmatpush.bf16.msra.mxu0 %v2036
      %2122 = vmatpush.bf16.msra.mxu0 %v2035
      %2123 = vmatpush.bf16.msra.mxu0 %v2034
      %2124 = vmatpush.bf16.msra.mxu0 %v2033
      %2125 = vmatmul.bf16.gmra.mxu0 %v1746
      %v2126 = vpop.f32.mrf.mxu0
      %v2127 = vadd.f32 %v1959, %v2126
      %v2128 = vpop.f32.mrf.mxu0
      %v2129 = vadd.f32 %v1959, %v2128
      %2130 = vmatmul.bf16.gmra.mxu0 %v1749
      %v2131 = vpop.f32.mrf.mxu0
      %v2132 = vadd.f32 %v1959, %v2131
      %v2133 = vpop.f32.mrf.mxu0
      %v2134 = vadd.f32 %v1959, %v2133
      %2135 = vmatmul.bf16.gmra.mxu0 %v1752
      %v2136 = vpop.f32.mrf.mxu0
      %v2137 = vadd.f32 %v1959, %v2136
      %v2138 = vpop.f32.mrf.mxu0
      %v2139 = vadd.f32 %v1959, %v2138
      %2140 = vmatmul.bf16.gmra.mxu0 %v1755
      %v2141 = vpop.f32.mrf.mxu0
      %v2142 = vadd.f32 %v1959, %v2141
      %v2143 = vpop.f32.mrf.mxu0
      %v2144 = vadd.f32 %v1959, %v2143
      %2145 = vmatmul.bf16.gmra.mxu0 %v1758
      %v2146 = vpop.f32.mrf.mxu0
      %v2147 = vadd.f32 %v1959, %v2146
      %v2148 = vpop.f32.mrf.mxu0
      %v2149 = vadd.f32 %v1959, %v2148
      %2150 = vmatmul.bf16.gmra.mxu0 %v1761
      %v2151 = vpop.f32.mrf.mxu0
      %v2152 = vadd.f32 %v1959, %v2151
      %v2153 = vpop.f32.mrf.mxu0
      %v2154 = vadd.f32 %v1959, %v2153
      %2155 = vmatmul.bf16.gmra.mxu0 %v1764
      %v2156 = vpop.f32.mrf.mxu0
      %v2157 = vadd.f32 %v1959, %v2156
      %v2158 = vpop.f32.mrf.mxu0
      %v2159 = vadd.f32 %v1959, %v2158
      %2160 = vmatmul.bf16.gmra.mxu0 %v1767
      %v2161 = vpop.f32.mrf.mxu0
      %v2162 = vadd.f32 %v1959, %v2161
      %v2163 = vpop.f32.mrf.mxu0
      %v2164 = vadd.f32 %v1959, %v2163
      %2165 = vmatmul.bf16.gmra.mxu0 %v1770
      %v2166 = vpop.f32.mrf.mxu0
      %v2167 = vadd.f32 %v1959, %v2166
      %v2168 = vpop.f32.mrf.mxu0
      %v2169 = vadd.f32 %v1959, %v2168
      %2170 = vmatmul.bf16.gmra.mxu0 %v1773
      %v2171 = vpop.f32.mrf.mxu0
      %v2172 = vadd.f32 %v1959, %v2171
      %v2173 = vpop.f32.mrf.mxu0
      %v2174 = vadd.f32 %v1959, %v2173
      %2175 = vmatmul.bf16.gmra.mxu0 %v1776
      %v2176 = vpop.f32.mrf.mxu0
      %v2177 = vadd.f32 %v1959, %v2176
      %v2178 = vpop.f32.mrf.mxu0
      %v2179 = vadd.f32 %v1959, %v2178
      %2180 = vmatmul.bf16.gmra.mxu0 %v1779
      %v2181 = vpop.f32.mrf.mxu0
      %v2182 = vadd.f32 %v1959, %v2181
      %v2183 = vpop.f32.mrf.mxu0
      %v2184 = vadd.f32 %v1959, %v2183
      %2185 = vmatmul.bf16.gmra.mxu0 %v1782
      %v2186 = vpop.f32.mrf.mxu0
      %v2187 = vadd.f32 %v1959, %v2186
      %v2188 = vpop.f32.mrf.mxu0
      %v2189 = vadd.f32 %v1959, %v2188
      %2190 = vmatmul.bf16.gmra.mxu0 %v1785
      %v2191 = vpop.f32.mrf.mxu0
      %v2192 = vadd.f32 %v1959, %v2191
      %v2193 = vpop.f32.mrf.mxu0
      %v2194 = vadd.f32 %v1959, %v2193
      %2195 = vmatmul.bf16.gmra.mxu0 %v1788
      %v2196 = vpop.f32.mrf.mxu0
      %v2197 = vadd.f32 %v1959, %v2196
      %v2198 = vpop.f32.mrf.mxu0
      %v2199 = vadd.f32 %v1959, %v2198
      %2200 = vmatmul.bf16.gmra.mxu0 %v1791
      %v2201 = vpop.f32.mrf.mxu0
      %v2202 = vadd.f32 %v1959, %v2201
      %v2203 = vpop.f32.mrf.mxu0
      %v2204 = vadd.f32 %v1959, %v2203
      %2205 = vdwg.mxu0
      %2206 = vmatpush.bf16.msra.mxu0 %v2048
      %2207 = vmatpush.bf16.msra.mxu0 %v2047
      %2208 = vmatpush.bf16.msra.mxu0 %v2046
      %2209 = vmatpush.bf16.msra.mxu0 %v2045
      %2210 = vmatpush.bf16.msra.mxu0 %v2044
      %2211 = vmatpush.bf16.msra.mxu0 %v2043
      %2212 = vmatpush.bf16.msra.mxu0 %v2042
      %2213 = vmatpush.bf16.msra.mxu0 %v2041
      %2214 = vmatmul.bf16.gmra.mxu0 %v1874
      %v2215 = vpop.f32.mrf.mxu0
      %v2216 = vadd.f32 %v2127, %v2215
      %v2217 = vpop.f32.mrf.mxu0
      %v2218 = vadd.f32 %v2129, %v2217
      %2219 = vmatmul.bf16.gmra.mxu0 %v1877
      %v2220 = vpop.f32.mrf.mxu0
      %v2221 = vadd.f32 %v2132, %v2220
      %v2222 = vpop.f32.mrf.mxu0
      %v2223 = vadd.f32 %v2134, %v2222
      %2224 = vmatmul.bf16.gmra.mxu0 %v1880
      %v2225 = vpop.f32.mrf.mxu0
      %v2226 = vadd.f32 %v2137, %v2225
      %v2227 = vpop.f32.mrf.mxu0
      %v2228 = vadd.f32 %v2139, %v2227
      %2229 = vmatmul.bf16.gmra.mxu0 %v1883
      %v2230 = vpop.f32.mrf.mxu0
      %v2231 = vadd.f32 %v2142, %v2230
      %v2232 = vpop.f32.mrf.mxu0
      %v2233 = vadd.f32 %v2144, %v2232
      %2234 = vmatmul.bf16.gmra.mxu0 %v1886
      %v2235 = vpop.f32.mrf.mxu0
      %v2236 = vadd.f32 %v2147, %v2235
      %v2237 = vpop.f32.mrf.mxu0
      %v2238 = vadd.f32 %v2149, %v2237
      %2239 = vmatmul.bf16.gmra.mxu0 %v1889
      %v2240 = vpop.f32.mrf.mxu0
      %v2241 = vadd.f32 %v2152, %v2240
      %v2242 = vpop.f32.mrf.mxu0
      %v2243 = vadd.f32 %v2154, %v2242
      %2244 = vmatmul.bf16.gmra.mxu0 %v1892
      %v2245 = vpop.f32.mrf.mxu0
      %v2246 = vadd.f32 %v2157, %v2245
      %v2247 = vpop.f32.mrf.mxu0
      %v2248 = vadd.f32 %v2159, %v2247
      %2249 = vmatmul.bf16.gmra.mxu0 %v1895
      %v2250 = vpop.f32.mrf.mxu0
      %v2251 = vadd.f32 %v2162, %v2250
      %v2252 = vpop.f32.mrf.mxu0
      %v2253 = vadd.f32 %v2164, %v2252
      %2254 = vmatmul.bf16.gmra.mxu0 %v1898
      %v2255 = vpop.f32.mrf.mxu0
      %v2256 = vadd.f32 %v2167, %v2255
      %v2257 = vpop.f32.mrf.mxu0
      %v2258 = vadd.f32 %v2169, %v2257
      %2259 = vmatmul.bf16.gmra.mxu0 %v1901
      %v2260 = vpop.f32.mrf.mxu0
      %v2261 = vadd.f32 %v2172, %v2260
      %v2262 = vpop.f32.mrf.mxu0
      %v2263 = vadd.f32 %v2174, %v2262
      %2264 = vmatmul.bf16.gmra.mxu0 %v1904
      %v2265 = vpop.f32.mrf.mxu0
      %v2266 = vadd.f32 %v2177, %v2265
      %v2267 = vpop.f32.mrf.mxu0
      %v2268 = vadd.f32 %v2179, %v2267
      %2269 = vmatmul.bf16.gmra.mxu0 %v1907
      %v2270 = vpop.f32.mrf.mxu0
      %v2271 = vadd.f32 %v2182, %v2270
      %v2272 = vpop.f32.mrf.mxu0
      %v2273 = vadd.f32 %v2184, %v2272
      %2274 = vmatmul.bf16.gmra.mxu0 %v1910
      %v2275 = vpop.f32.mrf.mxu0
      %v2276 = vadd.f32 %v2187, %v2275
      %v2277 = vpop.f32.mrf.mxu0
      %v2278 = vadd.f32 %v2189, %v2277
      %2279 = vmatmul.bf16.gmra.mxu0 %v1913
      %v2280 = vpop.f32.mrf.mxu0
      %v2281 = vadd.f32 %v2192, %v2280
      %v2282 = vpop.f32.mrf.mxu0
      %v2283 = vadd.f32 %v2194, %v2282
      %2284 = vmatmul.bf16.gmra.mxu0 %v1916
      %v2285 = vpop.f32.mrf.mxu0
      %v2286 = vadd.f32 %v2197, %v2285
      %v2287 = vpop.f32.mrf.mxu0
      %v2288 = vadd.f32 %v2199, %v2287
      %2289 = vmatmul.bf16.gmra.mxu0 %v1919
      %v2290 = vpop.f32.mrf.mxu0
      %v2291 = vadd.f32 %v2202, %v2290
      %v2292 = vpop.f32.mrf.mxu0
      %v2293 = vadd.f32 %v2204, %v2292
      %2294 = vdwg.mxu0
      %2295 = vmatpush.bf16.msra.mxu0 0
      %2296 = vmatpush.bf16.msra.mxu0 0
      %2297 = vmatpush.bf16.msra.mxu0 0
      %2298 = vmatpush.bf16.msra.mxu0 0
      %2299 = vmatpush.bf16.msra.mxu0 0
      %2300 = vmatpush.bf16.msra.mxu0 0
      %2301 = vmatpush.bf16.msra.mxu0 %v2050
      %2302 = vmatpush.bf16.msra.mxu0 %v2049
      %2303 = vmatmul.bf16.gmra.mxu0 %v2070
      %v2304 = vpop.f32.mrf.mxu0
      %v2305 = vadd.f32 %v2216, %v2304
      %v2306 = vpop.f32.mrf.mxu0
      %v2307 = vadd.f32 %v2218, %v2306
      %2308 = vmatmul.bf16.gmra.mxu0 %v2073
      %v2309 = vpop.f32.mrf.mxu0
      %v2310 = vadd.f32 %v2221, %v2309
      %v2311 = vpop.f32.mrf.mxu0
      %v2312 = vadd.f32 %v2223, %v2311
      %2313 = vmatmul.bf16.gmra.mxu0 %v2076
      %v2314 = vpop.f32.mrf.mxu0
      %v2315 = vadd.f32 %v2226, %v2314
      %v2316 = vpop.f32.mrf.mxu0
      %v2317 = vadd.f32 %v2228, %v2316
      %2318 = vmatmul.bf16.gmra.mxu0 %v2079
      %v2319 = vpop.f32.mrf.mxu0
      %v2320 = vadd.f32 %v2231, %v2319
      %v2321 = vpop.f32.mrf.mxu0
      %v2322 = vadd.f32 %v2233, %v2321
      %2323 = vmatmul.bf16.gmra.mxu0 %v2082
      %v2324 = vpop.f32.mrf.mxu0
      %v2325 = vadd.f32 %v2236, %v2324
      %v2326 = vpop.f32.mrf.mxu0
      %v2327 = vadd.f32 %v2238, %v2326
      %2328 = vmatmul.bf16.gmra.mxu0 %v2085
      %v2329 = vpop.f32.mrf.mxu0
      %v2330 = vadd.f32 %v2241, %v2329
      %v2331 = vpop.f32.mrf.mxu0
      %v2332 = vadd.f32 %v2243, %v2331
      %2333 = vmatmul.bf16.gmra.mxu0 %v2088
      %v2334 = vpop.f32.mrf.mxu0
      %v2335 = vadd.f32 %v2246, %v2334
      %v2336 = vpop.f32.mrf.mxu0
      %v2337 = vadd.f32 %v2248, %v2336
      %2338 = vmatmul.bf16.gmra.mxu0 %v2091
      %v2339 = vpop.f32.mrf.mxu0
      %v2340 = vadd.f32 %v2251, %v2339
      %v2341 = vpop.f32.mrf.mxu0
      %v2342 = vadd.f32 %v2253, %v2341
      %2343 = vmatmul.bf16.gmra.mxu0 %v2094
      %v2344 = vpop.f32.mrf.mxu0
      %v2345 = vadd.f32 %v2256, %v2344
      %v2346 = vpop.f32.mrf.mxu0
      %v2347 = vadd.f32 %v2258, %v2346
      %2348 = vmatmul.bf16.gmra.mxu0 %v2097
      %v2349 = vpop.f32.mrf.mxu0
      %v2350 = vadd.f32 %v2261, %v2349
      %v2351 = vpop.f32.mrf.mxu0
      %v2352 = vadd.f32 %v2263, %v2351
      %2353 = vmatmul.bf16.gmra.mxu0 %v2100
      %v2354 = vpop.f32.mrf.mxu0
      %v2355 = vadd.f32 %v2266, %v2354
      %v2356 = vpop.f32.mrf.mxu0
      %v2357 = vadd.f32 %v2268, %v2356
      %2358 = vmatmul.bf16.gmra.mxu0 %v2103
      %v2359 = vpop.f32.mrf.mxu0
      %v2360 = vadd.f32 %v2271, %v2359
      %v2361 = vpop.f32.mrf.mxu0
      %v2362 = vadd.f32 %v2273, %v2361
      %2363 = vmatmul.bf16.gmra.mxu0 %v2106
      %v2364 = vpop.f32.mrf.mxu0
      %v2365 = vadd.f32 %v2276, %v2364
      %v2366 = vpop.f32.mrf.mxu0
      %v2367 = vadd.f32 %v2278, %v2366
      %2368 = vmatmul.bf16.gmra.mxu0 %v2109
      %v2369 = vpop.f32.mrf.mxu0
      %v2370 = vadd.f32 %v2281, %v2369
      %v2371 = vpop.f32.mrf.mxu0
      %v2372 = vadd.f32 %v2283, %v2371
      %2373 = vmatmul.bf16.gmra.mxu0 %v2112
      %v2374 = vpop.f32.mrf.mxu0
      %v2375 = vadd.f32 %v2286, %v2374
      %v2376 = vpop.f32.mrf.mxu0
      %v2377 = vadd.f32 %v2288, %v2376
      %2378 = vmatmul.bf16.gmra.mxu0 %v2115
      %v2379 = vpop.f32.mrf.mxu0
      %v2380 = vadd.f32 %v2291, %v2379
      %v2381 = vpop.f32.mrf.mxu0
      %v2382 = vadd.f32 %v2293, %v2381
      %2383 = vdwg.mxu0
      %v2384 = vlaneseq
      %v2385 = vand.u32 %v2384, 127
      %vm2386 = vcmp.lt.s32.totalorder %v2385, 0
      %v2387 = vsub.s32 0, %v2385
      %v2388 = vsel %vm2386, %v2387, %v2385
      %v2389 = vshrl.u32 %v2388, 5
      %v2390 = vand.u32 %v2388, 31
      %v2391 = vsub.s32 0, %v2390
      %v2392 = vsel %vm2386, %v2391, %v2390
      %vm2393 = vcmp.ne.s32.totalorder %v2392, 0
      %vm2394 = vcmp.lt.s32.totalorder %v2392, 0
      %vm2395 = vmand %vm2394, %vm2393
      %v2396 = vadd.s32 %v2392, 32
      %v2397 = vsel %vm2395, %v2396, %v2392
      %vm2398 = vcmp.lt.s32.totalorder %v2397, 16
      %v2399 = vsel %vm1678, %v2305, 0.0
      %v2400 = vsel %vm1678, %v2307, 0.0
      %v2401 = vadd.f32 %v2399, %v2400
      %v2402 = vsel %vm1678, %v2310, 0.0
      %v2403 = vadd.f32 %v2401, %v2402
      %v2404 = vsel %vm1678, %v2312, 0.0
      %v2405 = vadd.f32 %v2403, %v2404
      %v2406 = vsel %vm1678, %v2315, 0.0
      %v2407 = vadd.f32 %v2405, %v2406
      %v2408 = vsel %vm1678, %v2317, 0.0
      %v2409 = vadd.f32 %v2407, %v2408
      %v2410 = vsel %vm1678, %v2320, 0.0
      %v2411 = vadd.f32 %v2409, %v2410
      %v2412 = vsel %vm1678, %v2322, 0.0
      %v2413 = vadd.f32 %v2411, %v2412
      %v2414 = vsel %vm1678, %v2325, 0.0
      %v2415 = vadd.f32 %v2413, %v2414
      %v2416 = vsel %vm1678, %v2327, 0.0
      %v2417 = vadd.f32 %v2415, %v2416
      %v2418 = vsel %vm1678, %v2330, 0.0
      %v2419 = vadd.f32 %v2417, %v2418
      %v2420 = vsel %vm1678, %v2332, 0.0
      %v2421 = vadd.f32 %v2419, %v2420
      %v2422 = vsel %vm1678, %v2335, 0.0
      %v2423 = vadd.f32 %v2421, %v2422
      %v2424 = vsel %vm1678, %v2337, 0.0
      %v2425 = vadd.f32 %v2423, %v2424
      %v2426 = vsel %vm1678, %v2340, 0.0
      %v2427 = vadd.f32 %v2425, %v2426
      %v2428 = vsel %vm1678, %v2342, 0.0
      %v2429 = vadd.f32 %v2427, %v2428
      %v2430 = vsel %vm1678, %v2345, 0.0
      %v2431 = vadd.f32 %v2429, %v2430
      %v2432 = vsel %vm1678, %v2347, 0.0
      %v2433 = vadd.f32 %v2431, %v2432
      %v2434 = vsel %vm1678, %v2350, 0.0
      %v2435 = vadd.f32 %v2433, %v2434
      %v2436 = vsel %vm1678, %v2352, 0.0
      %v2437 = vadd.f32 %v2435, %v2436
      %v2438 = vsel %vm1678, %v2355, 0.0
      %v2439 = vadd.f32 %v2437, %v2438
      %v2440 = vsel %vm1678, %v2357, 0.0
      %v2441 = vadd.f32 %v2439, %v2440
      %v2442 = vsel %vm1678, %v2360, 0.0
      %v2443 = vadd.f32 %v2441, %v2442
      %v2444 = vsel %vm1678, %v2362, 0.0
      %v2445 = vadd.f32 %v2443, %v2444
      %v2446 = vsel %vm1678, %v2365, 0.0
      %v2447 = vadd.f32 %v2445, %v2446
      %v2448 = vsel %vm1678, %v2367, 0.0
      %v2449 = vadd.f32 %v2447, %v2448
      %v2450 = vsel %vm1678, %v2370, 0.0
      %v2451 = vadd.f32 %v2449, %v2450
      %v2452 = vsel %vm1678, %v2372, 0.0
      %v2453 = vadd.f32 %v2451, %v2452
      %v2454 = vsel %vm1678, %v2375, 0.0
      %v2455 = vadd.f32 %v2453, %v2454
      %v2456 = vsel %vm1678, %v2377, 0.0
      %v2457 = vadd.f32 %v2455, %v2456
      %v2458 = vsel %vm1678, %v2380, 0.0
      %v2459 = vadd.f32 %v2457, %v2458
      %v2460 = vsel %vm1678, %v2382, 0.0
      %v2461 = vadd.f32 %v2459, %v2460
      %v2462 = vrot.slane %v2461, 4
      %v2463 = vadd.f32 %v2461, %v2462
      %v2464 = vrot.slane %v2463, 2
      %v2465 = vadd.f32 %v2463, %v2464
      %v2466 = vrot.slane %v2465, 1
      %v2467 = vadd.f32 %v2465, %v2466
      %v2468 = vmul.f32 %v2305, %v2305
      %v2469 = vmul.f32 %v2307, %v2307
      %v2470 = vmul.f32 %v2310, %v2310
      %v2471 = vmul.f32 %v2312, %v2312
      %v2472 = vmul.f32 %v2315, %v2315
      %v2473 = vmul.f32 %v2317, %v2317
      %v2474 = vmul.f32 %v2320, %v2320
      %v2475 = vmul.f32 %v2322, %v2322
      %v2476 = vmul.f32 %v2325, %v2325
      %v2477 = vmul.f32 %v2327, %v2327
      %v2478 = vmul.f32 %v2330, %v2330
      %v2479 = vmul.f32 %v2332, %v2332
      %v2480 = vmul.f32 %v2335, %v2335
      %v2481 = vmul.f32 %v2337, %v2337
      %v2482 = vmul.f32 %v2340, %v2340
      %v2483 = vmul.f32 %v2342, %v2342
      %v2484 = vmul.f32 %v2345, %v2345
      %v2485 = vmul.f32 %v2347, %v2347
      %v2486 = vmul.f32 %v2350, %v2350
      %v2487 = vmul.f32 %v2352, %v2352
      %v2488 = vmul.f32 %v2355, %v2355
      %v2489 = vmul.f32 %v2357, %v2357
      %v2490 = vmul.f32 %v2360, %v2360
      %v2491 = vmul.f32 %v2362, %v2362
      %v2492 = vmul.f32 %v2365, %v2365
      %v2493 = vmul.f32 %v2367, %v2367
      %v2494 = vmul.f32 %v2370, %v2370
      %v2495 = vmul.f32 %v2372, %v2372
      %v2496 = vmul.f32 %v2375, %v2375
      %v2497 = vmul.f32 %v2377, %v2377
      %v2498 = vmul.f32 %v2380, %v2380
      %v2499 = vmul.f32 %v2382, %v2382
      %v2500 = vsel %vm1678, %v2468, 0.0
      %v2501 = vsel %vm1678, %v2469, 0.0
      %v2502 = vadd.f32 %v2500, %v2501
      %v2503 = vsel %vm1678, %v2470, 0.0
      %v2504 = vadd.f32 %v2502, %v2503
      %v2505 = vsel %vm1678, %v2471, 0.0
      %v2506 = vadd.f32 %v2504, %v2505
      %v2507 = vsel %vm1678, %v2472, 0.0
      %v2508 = vadd.f32 %v2506, %v2507
      %v2509 = vsel %vm1678, %v2473, 0.0
      %v2510 = vadd.f32 %v2508, %v2509
      %v2511 = vsel %vm1678, %v2474, 0.0
      %v2512 = vadd.f32 %v2510, %v2511
      %v2513 = vsel %vm1678, %v2475, 0.0
      %v2514 = vadd.f32 %v2512, %v2513
      %v2515 = vsel %vm1678, %v2476, 0.0
      %v2516 = vadd.f32 %v2514, %v2515
      %v2517 = vsel %vm1678, %v2477, 0.0
      %v2518 = vadd.f32 %v2516, %v2517
      %v2519 = vsel %vm1678, %v2478, 0.0
      %v2520 = vadd.f32 %v2518, %v2519
      %v2521 = vsel %vm1678, %v2479, 0.0
      %v2522 = vadd.f32 %v2520, %v2521
      %v2523 = vsel %vm1678, %v2480, 0.0
      %v2524 = vadd.f32 %v2522, %v2523
      %v2525 = vsel %vm1678, %v2481, 0.0
      %v2526 = vadd.f32 %v2524, %v2525
      %v2527 = vsel %vm1678, %v2482, 0.0
      %v2528 = vadd.f32 %v2526, %v2527
      %v2529 = vsel %vm1678, %v2483, 0.0
      %v2530 = vadd.f32 %v2528, %v2529
      %v2531 = vsel %vm1678, %v2484, 0.0
      %v2532 = vadd.f32 %v2530, %v2531
      %v2533 = vsel %vm1678, %v2485, 0.0
      %v2534 = vadd.f32 %v2532, %v2533
      %v2535 = vsel %vm1678, %v2486, 0.0
      %v2536 = vadd.f32 %v2534, %v2535
      %v2537 = vsel %vm1678, %v2487, 0.0
      %v2538 = vadd.f32 %v2536, %v2537
      %v2539 = vsel %vm1678, %v2488, 0.0
      %v2540 = vadd.f32 %v2538, %v2539
      %v2541 = vsel %vm1678, %v2489, 0.0
      %v2542 = vadd.f32 %v2540, %v2541
      %v2543 = vsel %vm1678, %v2490, 0.0
      %v2544 = vadd.f32 %v2542, %v2543
      %v2545 = vsel %vm1678, %v2491, 0.0
      %v2546 = vadd.f32 %v2544, %v2545
      %v2547 = vsel %vm1678, %v2492, 0.0
      %v2548 = vadd.f32 %v2546, %v2547
      %v2549 = vsel %vm1678, %v2493, 0.0
      %v2550 = vadd.f32 %v2548, %v2549
      %v2551 = vsel %vm1678, %v2494, 0.0
      %v2552 = vadd.f32 %v2550, %v2551
      %v2553 = vsel %vm1678, %v2495, 0.0
      %v2554 = vadd.f32 %v2552, %v2553
      %v2555 = vsel %vm1678, %v2496, 0.0
      %v2556 = vadd.f32 %v2554, %v2555
      %v2557 = vsel %vm1678, %v2497, 0.0
      %v2558 = vadd.f32 %v2556, %v2557
      %v2559 = vsel %vm1678, %v2498, 0.0
      %v2560 = vadd.f32 %v2558, %v2559
      %v2561 = vsel %vm1678, %v2499, 0.0
      %v2562 = vadd.f32 %v2560, %v2561
      %v2563 = vrot.slane %v2562, 4
      %v2564 = vadd.f32 %v2562, %v2563
      %v2565 = vrot.slane %v2564, 2
      %v2566 = vadd.f32 %v2564, %v2565
      %v2567 = vrot.slane %v2566, 1
      %v2568 = vadd.f32 %v2566, %v2567
      %v2569 = vsel %vm2398, %v2467, 0.0
      %v2570 = vsel %vm522, %v2569, 0.0
      %2571 = vadd.xlane.f32.xlu0 %v2570
      %v2572 = vpop.xlane.xlu0 %2571
      %v2573 = vrot.slane %v2572, 4
      %v2574 = vadd.f32 %v2572, %v2573
      %v2575 = vrot.slane %v2574, 2
      %v2576 = vadd.f32 %v2574, %v2575
      %v2577 = vrot.slane %v2576, 1
      %v2578 = vadd.f32 %v2576, %v2577
      %s2579 = vtos %v2578
      %v2580 = vsel %vm522, %v2467, 0.0
      %2581 = vadd.xlane.f32.xlu0 %v2580
      %v2582 = vpop.xlane.xlu0 %2581
      %v2583 = vrot.slane %v2582, 4
      %v2584 = vadd.f32 %v2582, %v2583
      %v2585 = vrot.slane %v2584, 2
      %v2586 = vadd.f32 %v2584, %v2585
      %v2587 = vrot.slane %v2586, 1
      %v2588 = vadd.f32 %v2586, %v2587
      %s2589 = vtos %v2588
      %v2590 = vsel %vm2398, %v2568, 0.0
      %v2591 = vsel %vm522, %v2590, 0.0
      %2592 = vadd.xlane.f32.xlu0 %v2591
      %v2593 = vpop.xlane.xlu0 %2592
      %v2594 = vrot.slane %v2593, 4
      %v2595 = vadd.f32 %v2593, %v2594
      %v2596 = vrot.slane %v2595, 2
      %v2597 = vadd.f32 %v2595, %v2596
      %v2598 = vrot.slane %v2597, 1
      %v2599 = vadd.f32 %v2597, %v2598
      %s2600 = vtos %v2599
      %v2601 = vsel %vm522, %v2568, 0.0
      %2602 = vadd.xlane.f32.xlu0 %v2601
      %v2603 = vpop.xlane.xlu0 %2602
      %v2604 = vrot.slane %v2603, 4
      %v2605 = vadd.f32 %v2603, %v2604
      %v2606 = vrot.slane %v2605, 2
      %v2607 = vadd.f32 %v2605, %v2606
      %v2608 = vrot.slane %v2607, 1
      %v2609 = vadd.f32 %v2607, %v2608
      %s2610 = vtos %v2609
      %s2611 = ssub.f32 %s2589, %s2579
      %v2612 = vstv %s2579
      %v2613 = vstv %s2611
      %v2614 = vsel %vm2398, %v2612, %v2613
      %v2615 = vrcp.pop 4096.0
      %v2616 = vmul.f32 4096.0, %v2615
      %v2617 = vsub.f32 1.0, %v2616
      %v2618 = vmul.f32 %v2615, %v2617
      %v2619 = vadd.f32 %v2615, %v2618
      %vm2620 = vweird.f32 %v2615
      %v2621 = vsel %vm2620, %v2615, %v2619
      %v2622 = vmul.f32 %v2614, %v2621
      %s2623 = ssub.f32 %s2610, %s2600
      %v2624 = vstv %s2600
      %v2625 = vstv %s2623
      %v2626 = vsel %vm2398, %v2624, %v2625
      %v2627 = vmul.f32 %v2626, %v2621
      %v2628 = vmul.f32 %v2622, %v2622
      %v2629 = vsub.f32 %v2627, %v2628
      %v2630 = vadd.f32 %v2629, 1e-05
      %v2631 = vrsqrt.pop %v2630
      %v2632 = vmul.f32 %v2631, %v2630
      %v2633 = vmul.f32 %v2632, %v2631
      %v2634 = vmul.f32 0.5, %v2633
      %v2635 = vsub.f32 1.5, %v2634
      %v2636 = vmul.f32 %v2631, %v2635
      %vm2637 = vweird.f32 %v2630
      %vm2638 = vweird.f32 %v2631
      %vm2639 = vmor %vm2637, %vm2638
      %v2640 = vsel %vm2639, %v2631, %v2636
      %v2641 = vsub.f32 %v2305, %v2622
      %v2642 = vsub.f32 %v2307, %v2622
      %v2643 = vsub.f32 %v2310, %v2622
      %v2644 = vsub.f32 %v2312, %v2622
      %v2645 = vsub.f32 %v2315, %v2622
      %v2646 = vsub.f32 %v2317, %v2622
      %v2647 = vsub.f32 %v2320, %v2622
      %v2648 = vsub.f32 %v2322, %v2622
      %v2649 = vsub.f32 %v2325, %v2622
      %v2650 = vsub.f32 %v2327, %v2622
      %v2651 = vsub.f32 %v2330, %v2622
      %v2652 = vsub.f32 %v2332, %v2622
      %v2653 = vsub.f32 %v2335, %v2622
      %v2654 = vsub.f32 %v2337, %v2622
      %v2655 = vsub.f32 %v2340, %v2622
      %v2656 = vsub.f32 %v2342, %v2622
      %v2657 = vsub.f32 %v2345, %v2622
      %v2658 = vsub.f32 %v2347, %v2622
      %v2659 = vsub.f32 %v2350, %v2622
      %v2660 = vsub.f32 %v2352, %v2622
      %v2661 = vsub.f32 %v2355, %v2622
      %v2662 = vsub.f32 %v2357, %v2622
      %v2663 = vsub.f32 %v2360, %v2622
      %v2664 = vsub.f32 %v2362, %v2622
      %v2665 = vsub.f32 %v2365, %v2622
      %v2666 = vsub.f32 %v2367, %v2622
      %v2667 = vsub.f32 %v2370, %v2622
      %v2668 = vsub.f32 %v2372, %v2622
      %v2669 = vsub.f32 %v2375, %v2622
      %v2670 = vsub.f32 %v2377, %v2622
      %v2671 = vsub.f32 %v2380, %v2622
      %v2672 = vsub.f32 %v2382, %v2622
      %v2673 = vmul.f32 %v2641, %v2640
      %v2674 = vmul.f32 %v2642, %v2640
      %v2675 = vmul.f32 %v2643, %v2640
      %v2676 = vmul.f32 %v2644, %v2640
      %v2677 = vmul.f32 %v2645, %v2640
      %v2678 = vmul.f32 %v2646, %v2640
      %v2679 = vmul.f32 %v2647, %v2640
      %v2680 = vmul.f32 %v2648, %v2640
      %v2681 = vmul.f32 %v2649, %v2640
      %v2682 = vmul.f32 %v2650, %v2640
      %v2683 = vmul.f32 %v2651, %v2640
      %v2684 = vmul.f32 %v2652, %v2640
      %v2685 = vmul.f32 %v2653, %v2640
      %v2686 = vmul.f32 %v2654, %v2640
      %v2687 = vmul.f32 %v2655, %v2640
      %v2688 = vmul.f32 %v2656, %v2640
      %v2689 = vmul.f32 %v2657, %v2640
      %v2690 = vmul.f32 %v2658, %v2640
      %v2691 = vmul.f32 %v2659, %v2640
      %v2692 = vmul.f32 %v2660, %v2640
      %v2693 = vmul.f32 %v2661, %v2640
      %v2694 = vmul.f32 %v2662, %v2640
      %v2695 = vmul.f32 %v2663, %v2640
      %v2696 = vmul.f32 %v2664, %v2640
      %v2697 = vmul.f32 %v2665, %v2640
      %v2698 = vmul.f32 %v2666, %v2640
      %v2699 = vmul.f32 %v2667, %v2640
      %v2700 = vmul.f32 %v2668, %v2640
      %v2701 = vmul.f32 %v2669, %v2640
      %v2702 = vmul.f32 %v2670, %v2640
      %v2703 = vmul.f32 %v2671, %v2640
      %v2704 = vmul.f32 %v2672, %v2640
      %v2705 = vld [vmem:[%s4] sm:$0x1]
      %v2707 = vperm.slane %v2705, 0
      %v2709 = vmul.f32 %v2673, %v2707
      %v2710 = vmul.f32 %v2674, %v2707
      %v2711 = vmul.f32 %v2675, %v2707
      %v2712 = vmul.f32 %v2676, %v2707
      %v2713 = vmul.f32 %v2677, %v2707
      %v2714 = vmul.f32 %v2678, %v2707
      %v2715 = vmul.f32 %v2679, %v2707
      %v2716 = vmul.f32 %v2680, %v2707
      %v2717 = vmul.f32 %v2681, %v2707
      %v2718 = vmul.f32 %v2682, %v2707
      %v2719 = vmul.f32 %v2683, %v2707
      %v2720 = vmul.f32 %v2684, %v2707
      %v2721 = vmul.f32 %v2685, %v2707
      %v2722 = vmul.f32 %v2686, %v2707
      %v2723 = vmul.f32 %v2687, %v2707
      %v2724 = vmul.f32 %v2688, %v2707
      %v2725 = vmul.f32 %v2689, %v2707
      %v2726 = vmul.f32 %v2690, %v2707
      %v2727 = vmul.f32 %v2691, %v2707
      %v2728 = vmul.f32 %v2692, %v2707
      %v2729 = vmul.f32 %v2693, %v2707
      %v2730 = vmul.f32 %v2694, %v2707
      %v2731 = vmul.f32 %v2695, %v2707
      %v2732 = vmul.f32 %v2696, %v2707
      %v2733 = vmul.f32 %v2697, %v2707
      %v2734 = vmul.f32 %v2698, %v2707
      %v2735 = vmul.f32 %v2699, %v2707
      %v2736 = vmul.f32 %v2700, %v2707
      %v2737 = vmul.f32 %v2701, %v2707
      %v2738 = vmul.f32 %v2702, %v2707
      %v2739 = vmul.f32 %v2703, %v2707
      %v2740 = vmul.f32 %v2704, %v2707
      %v2741 = vld [vmem:[%s5] sm:$0x1]
      %v2743 = vperm.slane %v2741, 0
      %v2745 = vadd.f32 %v2709, %v2743
      %v2746 = vadd.f32 %v2710, %v2743
      %v2747 = vadd.f32 %v2711, %v2743
      %v2748 = vadd.f32 %v2712, %v2743
      %v2749 = vadd.f32 %v2713, %v2743
      %v2750 = vadd.f32 %v2714, %v2743
      %v2751 = vadd.f32 %v2715, %v2743
      %v2752 = vadd.f32 %v2716, %v2743
      %v2753 = vadd.f32 %v2717, %v2743
      %v2754 = vadd.f32 %v2718, %v2743
      %v2755 = vadd.f32 %v2719, %v2743
      %v2756 = vadd.f32 %v2720, %v2743
      %v2757 = vadd.f32 %v2721, %v2743
      %v2758 = vadd.f32 %v2722, %v2743
      %v2759 = vadd.f32 %v2723, %v2743
      %v2760 = vadd.f32 %v2724, %v2743
      %v2761 = vadd.f32 %v2725, %v2743
      %v2762 = vadd.f32 %v2726, %v2743
      %v2763 = vadd.f32 %v2727, %v2743
      %v2764 = vadd.f32 %v2728, %v2743
      %v2765 = vadd.f32 %v2729, %v2743
      %v2766 = vadd.f32 %v2730, %v2743
      %v2767 = vadd.f32 %v2731, %v2743
      %v2768 = vadd.f32 %v2732, %v2743
      %v2769 = vadd.f32 %v2733, %v2743
      %v2770 = vadd.f32 %v2734, %v2743
      %v2771 = vadd.f32 %v2735, %v2743
      %v2772 = vadd.f32 %v2736, %v2743
      %v2773 = vadd.f32 %v2737, %v2743
      %v2774 = vadd.f32 %v2738, %v2743
      %v2775 = vadd.f32 %v2739, %v2743
      %v2776 = vadd.f32 %v2740, %v2743
      %v2777 = vxor.u32 %v2745, 2147483648
      %v2778 = vxor.u32 %v2746, 2147483648
      %v2779 = vxor.u32 %v2747, 2147483648
      %v2780 = vxor.u32 %v2748, 2147483648
      %v2781 = vxor.u32 %v2749, 2147483648
      %v2782 = vxor.u32 %v2750, 2147483648
      %v2783 = vxor.u32 %v2751, 2147483648
      %v2784 = vxor.u32 %v2752, 2147483648
      %v2785 = vxor.u32 %v2753, 2147483648
      %v2786 = vxor.u32 %v2754, 2147483648
      %v2787 = vxor.u32 %v2755, 2147483648
      %v2788 = vxor.u32 %v2756, 2147483648
      %v2789 = vxor.u32 %v2757, 2147483648
      %v2790 = vxor.u32 %v2758, 2147483648
      %v2791 = vxor.u32 %v2759, 2147483648
      %v2792 = vxor.u32 %v2760, 2147483648
      %v2793 = vxor.u32 %v2761, 2147483648
      %v2794 = vxor.u32 %v2762, 2147483648
      %v2795 = vxor.u32 %v2763, 2147483648
      %v2796 = vxor.u32 %v2764, 2147483648
      %v2797 = vxor.u32 %v2765, 2147483648
      %v2798 = vxor.u32 %v2766, 2147483648
      %v2799 = vxor.u32 %v2767, 2147483648
      %v2800 = vxor.u32 %v2768, 2147483648
      %v2801 = vxor.u32 %v2769, 2147483648
      %v2802 = vxor.u32 %v2770, 2147483648
      %v2803 = vxor.u32 %v2771, 2147483648
      %v2804 = vxor.u32 %v2772, 2147483648
      %v2805 = vxor.u32 %v2773, 2147483648
      %v2806 = vxor.u32 %v2774, 2147483648
      %v2807 = vxor.u32 %v2775, 2147483648
      %v2808 = vxor.u32 %v2776, 2147483648
      %v2809 = vmul.f32 %v2777, 1.442695
      %v2810 = vpow.pop %v2809
      %v2811 = vmul.f32 %v2778, 1.442695
      %v2812 = vpow.pop %v2811
      %v2813 = vmul.f32 %v2779, 1.442695
      %v2814 = vpow.pop %v2813
      %v2815 = vmul.f32 %v2780, 1.442695
      %v2816 = vpow.pop %v2815
      %v2817 = vmul.f32 %v2781, 1.442695
      %v2818 = vpow.pop %v2817
      %v2819 = vmul.f32 %v2782, 1.442695
      %v2820 = vpow.pop %v2819
      %v2821 = vmul.f32 %v2783, 1.442695
      %v2822 = vpow.pop %v2821
      %v2823 = vmul.f32 %v2784, 1.442695
      %v2824 = vpow.pop %v2823
      %v2825 = vmul.f32 %v2785, 1.442695
      %v2826 = vpow.pop %v2825
      %v2827 = vmul.f32 %v2786, 1.442695
      %v2828 = vpow.pop %v2827
      %v2829 = vmul.f32 %v2787, 1.442695
      %v2830 = vpow.pop %v2829
      %v2831 = vmul.f32 %v2788, 1.442695
      %v2832 = vpow.pop %v2831
      %v2833 = vmul.f32 %v2789, 1.442695
      %v2834 = vpow.pop %v2833
      %v2835 = vmul.f32 %v2790, 1.442695
      %v2836 = vpow.pop %v2835
      %v2837 = vmul.f32 %v2791, 1.442695
      %v2838 = vpow.pop %v2837
      %v2839 = vmul.f32 %v2792, 1.442695
      %v2840 = vpow.pop %v2839
      %v2841 = vmul.f32 %v2793, 1.442695
      %v2842 = vpow.pop %v2841
      %v2843 = vmul.f32 %v2794, 1.442695
      %v2844 = vpow.pop %v2843
      %v2845 = vmul.f32 %v2795, 1.442695
      %v2846 = vpow.pop %v2845
      %v2847 = vmul.f32 %v2796, 1.442695
      %v2848 = vpow.pop %v2847
      %v2849 = vmul.f32 %v2797, 1.442695
      %v2850 = vpow.pop %v2849
      %v2851 = vmul.f32 %v2798, 1.442695
      %v2852 = vpow.pop %v2851
      %v2853 = vmul.f32 %v2799, 1.442695
      %v2854 = vpow.pop %v2853
      %v2855 = vmul.f32 %v2800, 1.442695
      %v2856 = vpow.pop %v2855
      %v2857 = vmul.f32 %v2801, 1.442695
      %v2858 = vpow.pop %v2857
      %v2859 = vmul.f32 %v2802, 1.442695
      %v2860 = vpow.pop %v2859
      %v2861 = vmul.f32 %v2803, 1.442695
      %v2862 = vpow.pop %v2861
      %v2863 = vmul.f32 %v2804, 1.442695
      %v2864 = vpow.pop %v2863
      %v2865 = vmul.f32 %v2805, 1.442695
      %v2866 = vpow.pop %v2865
      %v2867 = vmul.f32 %v2806, 1.442695
      %v2868 = vpow.pop %v2867
      %v2869 = vmul.f32 %v2807, 1.442695
      %v2870 = vpow.pop %v2869
      %v2871 = vmul.f32 %v2808, 1.442695
      %v2872 = vpow.pop %v2871
      %v2873 = vadd.f32 %v2810, 1.0
      %v2874 = vadd.f32 %v2812, 1.0
      %v2875 = vadd.f32 %v2814, 1.0
      %v2876 = vadd.f32 %v2816, 1.0
      %v2877 = vadd.f32 %v2818, 1.0
      %v2878 = vadd.f32 %v2820, 1.0
      %v2879 = vadd.f32 %v2822, 1.0
      %v2880 = vadd.f32 %v2824, 1.0
      %v2881 = vadd.f32 %v2826, 1.0
      %v2882 = vadd.f32 %v2828, 1.0
      %v2883 = vadd.f32 %v2830, 1.0
      %v2884 = vadd.f32 %v2832, 1.0
      %v2885 = vadd.f32 %v2834, 1.0
      %v2886 = vadd.f32 %v2836, 1.0
      %v2887 = vadd.f32 %v2838, 1.0
      %v2888 = vadd.f32 %v2840, 1.0
      %v2889 = vadd.f32 %v2842, 1.0
      %v2890 = vadd.f32 %v2844, 1.0
      %v2891 = vadd.f32 %v2846, 1.0
      %v2892 = vadd.f32 %v2848, 1.0
      %v2893 = vadd.f32 %v2850, 1.0
      %v2894 = vadd.f32 %v2852, 1.0
      %v2895 = vadd.f32 %v2854, 1.0
      %v2896 = vadd.f32 %v2856, 1.0
      %v2897 = vadd.f32 %v2858, 1.0
      %v2898 = vadd.f32 %v2860, 1.0
      %v2899 = vadd.f32 %v2862, 1.0
      %v2900 = vadd.f32 %v2864, 1.0
      %v2901 = vadd.f32 %v2866, 1.0
      %v2902 = vadd.f32 %v2868, 1.0
      %v2903 = vadd.f32 %v2870, 1.0
      %v2904 = vadd.f32 %v2872, 1.0
      %v2905 = vrcp.pop %v2873
      %v2906 = vmul.f32 %v2873, %v2905
      %v2907 = vsub.f32 1.0, %v2906
      %v2908 = vmul.f32 %v2905, %v2907
      %v2909 = vadd.f32 %v2905, %v2908
      %vm2910 = vweird.f32 %v2873
      %vm2911 = vweird.f32 %v2905
      %vm2912 = vmor %vm2910, %vm2911
      %v2913 = vsel %vm2912, %v2905, %v2909
      %v2914 = vand.u32 2147483647, %v2873
      %vm2915 = vcmp.eq.f32.partialorder %v2914, 8.507059e+37
      %v2916 = vand.u32 %v2873, 2147483648
      %v2917 = vor.u32 1.1754944e-38, %v2916
      %v2918 = vsel %vm2915, %v2917, %v2913
      %v2919 = vmul.f32 1.0, %v2918
      %v2920 = vrcp.pop %v2874
      %v2921 = vmul.f32 %v2874, %v2920
      %v2922 = vsub.f32 1.0, %v2921
      %v2923 = vmul.f32 %v2920, %v2922
      %v2924 = vadd.f32 %v2920, %v2923
      %vm2925 = vweird.f32 %v2874
      %vm2926 = vweird.f32 %v2920
      %vm2927 = vmor %vm2925, %vm2926
      %v2928 = vsel %vm2927, %v2920, %v2924
      %v2929 = vand.u32 2147483647, %v2874
      %vm2930 = vcmp.eq.f32.partialorder %v2929, 8.507059e+37
      %v2931 = vand.u32 %v2874, 2147483648
      %v2932 = vor.u32 1.1754944e-38, %v2931
      %v2933 = vsel %vm2930, %v2932, %v2928
      %v2934 = vmul.f32 1.0, %v2933
      %v2935 = vrcp.pop %v2875
      %v2936 = vmul.f32 %v2875, %v2935
      %v2937 = vsub.f32 1.0, %v2936
      %v2938 = vmul.f32 %v2935, %v2937
      %v2939 = vadd.f32 %v2935, %v2938
      %vm2940 = vweird.f32 %v2875
      %vm2941 = vweird.f32 %v2935
      %vm2942 = vmor %vm2940, %vm2941
      %v2943 = vsel %vm2942, %v2935, %v2939
      %v2944 = vand.u32 2147483647, %v2875
      %vm2945 = vcmp.eq.f32.partialorder %v2944, 8.507059e+37
      %v2946 = vand.u32 %v2875, 2147483648
      %v2947 = vor.u32 1.1754944e-38, %v2946
      %v2948 = vsel %vm2945, %v2947, %v2943
      %v2949 = vmul.f32 1.0, %v2948
      %v2950 = vrcp.pop %v2876
      %v2951 = vmul.f32 %v2876, %v2950
      %v2952 = vsub.f32 1.0, %v2951
      %v2953 = vmul.f32 %v2950, %v2952
      %v2954 = vadd.f32 %v2950, %v2953
      %vm2955 = vweird.f32 %v2876
      %vm2956 = vweird.f32 %v2950
      %vm2957 = vmor %vm2955, %vm2956
      %v2958 = vsel %vm2957, %v2950, %v2954
      %v2959 = vand.u32 2147483647, %v2876
      %vm2960 = vcmp.eq.f32.partialorder %v2959, 8.507059e+37
      %v2961 = vand.u32 %v2876, 2147483648
      %v2962 = vor.u32 1.1754944e-38, %v2961
      %v2963 = vsel %vm2960, %v2962, %v2958
      %v2964 = vmul.f32 1.0, %v2963
      %v2965 = vrcp.pop %v2877
      %v2966 = vmul.f32 %v2877, %v2965
      %v2967 = vsub.f32 1.0, %v2966
      %v2968 = vmul.f32 %v2965, %v2967
      %v2969 = vadd.f32 %v2965, %v2968
      %vm2970 = vweird.f32 %v2877
      %vm2971 = vweird.f32 %v2965
      %vm2972 = vmor %vm2970, %vm2971
      %v2973 = vsel %vm2972, %v2965, %v2969
      %v2974 = vand.u32 2147483647, %v2877
      %vm2975 = vcmp.eq.f32.partialorder %v2974, 8.507059e+37
      %v2976 = vand.u32 %v2877, 2147483648
      %v2977 = vor.u32 1.1754944e-38, %v2976
      %v2978 = vsel %vm2975, %v2977, %v2973
      %v2979 = vmul.f32 1.0, %v2978
      %v2980 = vrcp.pop %v2878
      %v2981 = vmul.f32 %v2878, %v2980
      %v2982 = vsub.f32 1.0, %v2981
      %v2983 = vmul.f32 %v2980, %v2982
      %v2984 = vadd.f32 %v2980, %v2983
      %vm2985 = vweird.f32 %v2878
      %vm2986 = vweird.f32 %v2980
      %vm2987 = vmor %vm2985, %vm2986
      %v2988 = vsel %vm2987, %v2980, %v2984
      %v2989 = vand.u32 2147483647, %v2878
      %vm2990 = vcmp.eq.f32.partialorder %v2989, 8.507059e+37
      %v2991 = vand.u32 %v2878, 2147483648
      %v2992 = vor.u32 1.1754944e-38, %v2991
      %v2993 = vsel %vm2990, %v2992, %v2988
      %v2994 = vmul.f32 1.0, %v2993
      %v2995 = vrcp.pop %v2879
      %v2996 = vmul.f32 %v2879, %v2995
      %v2997 = vsub.f32 1.0, %v2996
      %v2998 = vmul.f32 %v2995, %v2997
      %v2999 = vadd.f32 %v2995, %v2998
      %vm3000 = vweird.f32 %v2879
      %vm3001 = vweird.f32 %v2995
      %vm3002 = vmor %vm3000, %vm3001
      %v3003 = vsel %vm3002, %v2995, %v2999
      %v3004 = vand.u32 2147483647, %v2879
      %vm3005 = vcmp.eq.f32.partialorder %v3004, 8.507059e+37
      %v3006 = vand.u32 %v2879, 2147483648
      %v3007 = vor.u32 1.1754944e-38, %v3006
      %v3008 = vsel %vm3005, %v3007, %v3003
      %v3009 = vmul.f32 1.0, %v3008
      %v3010 = vrcp.pop %v2880
      %v3011 = vmul.f32 %v2880, %v3010
      %v3012 = vsub.f32 1.0, %v3011
      %v3013 = vmul.f32 %v3010, %v3012
      %v3014 = vadd.f32 %v3010, %v3013
      %vm3015 = vweird.f32 %v2880
      %vm3016 = vweird.f32 %v3010
      %vm3017 = vmor %vm3015, %vm3016
      %v3018 = vsel %vm3017, %v3010, %v3014
      %v3019 = vand.u32 2147483647, %v2880
      %vm3020 = vcmp.eq.f32.partialorder %v3019, 8.507059e+37
      %v3021 = vand.u32 %v2880, 2147483648
      %v3022 = vor.u32 1.1754944e-38, %v3021
      %v3023 = vsel %vm3020, %v3022, %v3018
      %v3024 = vmul.f32 1.0, %v3023
      %v3025 = vrcp.pop %v2881
      %v3026 = vmul.f32 %v2881, %v3025
      %v3027 = vsub.f32 1.0, %v3026
      %v3028 = vmul.f32 %v3025, %v3027
      %v3029 = vadd.f32 %v3025, %v3028
      %vm3030 = vweird.f32 %v2881
      %vm3031 = vweird.f32 %v3025
      %vm3032 = vmor %vm3030, %vm3031
      %v3033 = vsel %vm3032, %v3025, %v3029
      %v3034 = vand.u32 2147483647, %v2881
      %vm3035 = vcmp.eq.f32.partialorder %v3034, 8.507059e+37
      %v3036 = vand.u32 %v2881, 2147483648
      %v3037 = vor.u32 1.1754944e-38, %v3036
      %v3038 = vsel %vm3035, %v3037, %v3033
      %v3039 = vmul.f32 1.0, %v3038
      %v3040 = vrcp.pop %v2882
      %v3041 = vmul.f32 %v2882, %v3040
      %v3042 = vsub.f32 1.0, %v3041
      %v3043 = vmul.f32 %v3040, %v3042
      %v3044 = vadd.f32 %v3040, %v3043
      %vm3045 = vweird.f32 %v2882
      %vm3046 = vweird.f32 %v3040
      %vm3047 = vmor %vm3045, %vm3046
      %v3048 = vsel %vm3047, %v3040, %v3044
      %v3049 = vand.u32 2147483647, %v2882
      %vm3050 = vcmp.eq.f32.partialorder %v3049, 8.507059e+37
      %v3051 = vand.u32 %v2882, 2147483648
      %v3052 = vor.u32 1.1754944e-38, %v3051
      %v3053 = vsel %vm3050, %v3052, %v3048
      %v3054 = vmul.f32 1.0, %v3053
      %v3055 = vrcp.pop %v2883
      %v3056 = vmul.f32 %v2883, %v3055
      %v3057 = vsub.f32 1.0, %v3056
      %v3058 = vmul.f32 %v3055, %v3057
      %v3059 = vadd.f32 %v3055, %v3058
      %vm3060 = vweird.f32 %v2883
      %vm3061 = vweird.f32 %v3055
      %vm3062 = vmor %vm3060, %vm3061
      %v3063 = vsel %vm3062, %v3055, %v3059
      %v3064 = vand.u32 2147483647, %v2883
      %vm3065 = vcmp.eq.f32.partialorder %v3064, 8.507059e+37
      %v3066 = vand.u32 %v2883, 2147483648
      %v3067 = vor.u32 1.1754944e-38, %v3066
      %v3068 = vsel %vm3065, %v3067, %v3063
      %v3069 = vmul.f32 1.0, %v3068
      %v3070 = vrcp.pop %v2884
      %v3071 = vmul.f32 %v2884, %v3070
      %v3072 = vsub.f32 1.0, %v3071
      %v3073 = vmul.f32 %v3070, %v3072
      %v3074 = vadd.f32 %v3070, %v3073
      %vm3075 = vweird.f32 %v2884
      %vm3076 = vweird.f32 %v3070
      %vm3077 = vmor %vm3075, %vm3076
      %v3078 = vsel %vm3077, %v3070, %v3074
      %v3079 = vand.u32 2147483647, %v2884
      %vm3080 = vcmp.eq.f32.partialorder %v3079, 8.507059e+37
      %v3081 = vand.u32 %v2884, 2147483648
      %v3082 = vor.u32 1.1754944e-38, %v3081
      %v3083 = vsel %vm3080, %v3082, %v3078
      %v3084 = vmul.f32 1.0, %v3083
      %v3085 = vrcp.pop %v2885
      %v3086 = vmul.f32 %v2885, %v3085
      %v3087 = vsub.f32 1.0, %v3086
      %v3088 = vmul.f32 %v3085, %v3087
      %v3089 = vadd.f32 %v3085, %v3088
      %vm3090 = vweird.f32 %v2885
      %vm3091 = vweird.f32 %v3085
      %vm3092 = vmor %vm3090, %vm3091
      %v3093 = vsel %vm3092, %v3085, %v3089
      %v3094 = vand.u32 2147483647, %v2885
      %vm3095 = vcmp.eq.f32.partialorder %v3094, 8.507059e+37
      %v3096 = vand.u32 %v2885, 2147483648
      %v3097 = vor.u32 1.1754944e-38, %v3096
      %v3098 = vsel %vm3095, %v3097, %v3093
      %v3099 = vmul.f32 1.0, %v3098
      %v3100 = vrcp.pop %v2886
      %v3101 = vmul.f32 %v2886, %v3100
      %v3102 = vsub.f32 1.0, %v3101
      %v3103 = vmul.f32 %v3100, %v3102
      %v3104 = vadd.f32 %v3100, %v3103
      %vm3105 = vweird.f32 %v2886
      %vm3106 = vweird.f32 %v3100
      %vm3107 = vmor %vm3105, %vm3106
      %v3108 = vsel %vm3107, %v3100, %v3104
      %v3109 = vand.u32 2147483647, %v2886
      %vm3110 = vcmp.eq.f32.partialorder %v3109, 8.507059e+37
      %v3111 = vand.u32 %v2886, 2147483648
      %v3112 = vor.u32 1.1754944e-38, %v3111
      %v3113 = vsel %vm3110, %v3112, %v3108
      %v3114 = vmul.f32 1.0, %v3113
      %v3115 = vrcp.pop %v2887
      %v3116 = vmul.f32 %v2887, %v3115
      %v3117 = vsub.f32 1.0, %v3116
      %v3118 = vmul.f32 %v3115, %v3117
      %v3119 = vadd.f32 %v3115, %v3118
      %vm3120 = vweird.f32 %v2887
      %vm3121 = vweird.f32 %v3115
      %vm3122 = vmor %vm3120, %vm3121
      %v3123 = vsel %vm3122, %v3115, %v3119
      %v3124 = vand.u32 2147483647, %v2887
      %vm3125 = vcmp.eq.f32.partialorder %v3124, 8.507059e+37
      %v3126 = vand.u32 %v2887, 2147483648
      %v3127 = vor.u32 1.1754944e-38, %v3126
      %v3128 = vsel %vm3125, %v3127, %v3123
      %v3129 = vmul.f32 1.0, %v3128
      %v3130 = vrcp.pop %v2888
      %v3131 = vmul.f32 %v2888, %v3130
      %v3132 = vsub.f32 1.0, %v3131
      %v3133 = vmul.f32 %v3130, %v3132
      %v3134 = vadd.f32 %v3130, %v3133
      %vm3135 = vweird.f32 %v2888
      %vm3136 = vweird.f32 %v3130
      %vm3137 = vmor %vm3135, %vm3136
      %v3138 = vsel %vm3137, %v3130, %v3134
      %v3139 = vand.u32 2147483647, %v2888
      %vm3140 = vcmp.eq.f32.partialorder %v3139, 8.507059e+37
      %v3141 = vand.u32 %v2888, 2147483648
      %v3142 = vor.u32 1.1754944e-38, %v3141
      %v3143 = vsel %vm3140, %v3142, %v3138
      %v3144 = vmul.f32 1.0, %v3143
      %v3145 = vrcp.pop %v2889
      %v3146 = vmul.f32 %v2889, %v3145
      %v3147 = vsub.f32 1.0, %v3146
      %v3148 = vmul.f32 %v3145, %v3147
      %v3149 = vadd.f32 %v3145, %v3148
      %vm3150 = vweird.f32 %v2889
      %vm3151 = vweird.f32 %v3145
      %vm3152 = vmor %vm3150, %vm3151
      %v3153 = vsel %vm3152, %v3145, %v3149
      %v3154 = vand.u32 2147483647, %v2889
      %vm3155 = vcmp.eq.f32.partialorder %v3154, 8.507059e+37
      %v3156 = vand.u32 %v2889, 2147483648
      %v3157 = vor.u32 1.1754944e-38, %v3156
      %v3158 = vsel %vm3155, %v3157, %v3153
      %v3159 = vmul.f32 1.0, %v3158
      %v3160 = vrcp.pop %v2890
      %v3161 = vmul.f32 %v2890, %v3160
      %v3162 = vsub.f32 1.0, %v3161
      %v3163 = vmul.f32 %v3160, %v3162
      %v3164 = vadd.f32 %v3160, %v3163
      %vm3165 = vweird.f32 %v2890
      %vm3166 = vweird.f32 %v3160
      %vm3167 = vmor %vm3165, %vm3166
      %v3168 = vsel %vm3167, %v3160, %v3164
      %v3169 = vand.u32 2147483647, %v2890
      %vm3170 = vcmp.eq.f32.partialorder %v3169, 8.507059e+37
      %v3171 = vand.u32 %v2890, 2147483648
      %v3172 = vor.u32 1.1754944e-38, %v3171
      %v3173 = vsel %vm3170, %v3172, %v3168
      %v3174 = vmul.f32 1.0, %v3173
      %v3175 = vrcp.pop %v2891
      %v3176 = vmul.f32 %v2891, %v3175
      %v3177 = vsub.f32 1.0, %v3176
      %v3178 = vmul.f32 %v3175, %v3177
      %v3179 = vadd.f32 %v3175, %v3178
      %vm3180 = vweird.f32 %v2891
      %vm3181 = vweird.f32 %v3175
      %vm3182 = vmor %vm3180, %vm3181
      %v3183 = vsel %vm3182, %v3175, %v3179
      %v3184 = vand.u32 2147483647, %v2891
      %vm3185 = vcmp.eq.f32.partialorder %v3184, 8.507059e+37
      %v3186 = vand.u32 %v2891, 2147483648
      %v3187 = vor.u32 1.1754944e-38, %v3186
      %v3188 = vsel %vm3185, %v3187, %v3183
      %v3189 = vmul.f32 1.0, %v3188
      %v3190 = vrcp.pop %v2892
      %v3191 = vmul.f32 %v2892, %v3190
      %v3192 = vsub.f32 1.0, %v3191
      %v3193 = vmul.f32 %v3190, %v3192
      %v3194 = vadd.f32 %v3190, %v3193
      %vm3195 = vweird.f32 %v2892
      %vm3196 = vweird.f32 %v3190
      %vm3197 = vmor %vm3195, %vm3196
      %v3198 = vsel %vm3197, %v3190, %v3194
      %v3199 = vand.u32 2147483647, %v2892
      %vm3200 = vcmp.eq.f32.partialorder %v3199, 8.507059e+37
      %v3201 = vand.u32 %v2892, 2147483648
      %v3202 = vor.u32 1.1754944e-38, %v3201
      %v3203 = vsel %vm3200, %v3202, %v3198
      %v3204 = vmul.f32 1.0, %v3203
      %v3205 = vrcp.pop %v2893
      %v3206 = vmul.f32 %v2893, %v3205
      %v3207 = vsub.f32 1.0, %v3206
      %v3208 = vmul.f32 %v3205, %v3207
      %v3209 = vadd.f32 %v3205, %v3208
      %vm3210 = vweird.f32 %v2893
      %vm3211 = vweird.f32 %v3205
      %vm3212 = vmor %vm3210, %vm3211
      %v3213 = vsel %vm3212, %v3205, %v3209
      %v3214 = vand.u32 2147483647, %v2893
      %vm3215 = vcmp.eq.f32.partialorder %v3214, 8.507059e+37
      %v3216 = vand.u32 %v2893, 2147483648
      %v3217 = vor.u32 1.1754944e-38, %v3216
      %v3218 = vsel %vm3215, %v3217, %v3213
      %v3219 = vmul.f32 1.0, %v3218
      %v3220 = vrcp.pop %v2894
      %v3221 = vmul.f32 %v2894, %v3220
      %v3222 = vsub.f32 1.0, %v3221
      %v3223 = vmul.f32 %v3220, %v3222
      %v3224 = vadd.f32 %v3220, %v3223
      %vm3225 = vweird.f32 %v2894
      %vm3226 = vweird.f32 %v3220
      %vm3227 = vmor %vm3225, %vm3226
      %v3228 = vsel %vm3227, %v3220, %v3224
      %v3229 = vand.u32 2147483647, %v2894
      %vm3230 = vcmp.eq.f32.partialorder %v3229, 8.507059e+37
      %v3231 = vand.u32 %v2894, 2147483648
      %v3232 = vor.u32 1.1754944e-38, %v3231
      %v3233 = vsel %vm3230, %v3232, %v3228
      %v3234 = vmul.f32 1.0, %v3233
      %v3235 = vrcp.pop %v2895
      %v3236 = vmul.f32 %v2895, %v3235
      %v3237 = vsub.f32 1.0, %v3236
      %v3238 = vmul.f32 %v3235, %v3237
      %v3239 = vadd.f32 %v3235, %v3238
      %vm3240 = vweird.f32 %v2895
      %vm3241 = vweird.f32 %v3235
      %vm3242 = vmor %vm3240, %vm3241
      %v3243 = vsel %vm3242, %v3235, %v3239
      %v3244 = vand.u32 2147483647, %v2895
      %vm3245 = vcmp.eq.f32.partialorder %v3244, 8.507059e+37
      %v3246 = vand.u32 %v2895, 2147483648
      %v3247 = vor.u32 1.1754944e-38, %v3246
      %v3248 = vsel %vm3245, %v3247, %v3243
      %v3249 = vmul.f32 1.0, %v3248
      %v3250 = vrcp.pop %v2896
      %v3251 = vmul.f32 %v2896, %v3250
      %v3252 = vsub.f32 1.0, %v3251
      %v3253 = vmul.f32 %v3250, %v3252
      %v3254 = vadd.f32 %v3250, %v3253
      %vm3255 = vweird.f32 %v2896
      %vm3256 = vweird.f32 %v3250
      %vm3257 = vmor %vm3255, %vm3256
      %v3258 = vsel %vm3257, %v3250, %v3254
      %v3259 = vand.u32 2147483647, %v2896
      %vm3260 = vcmp.eq.f32.partialorder %v3259, 8.507059e+37
      %v3261 = vand.u32 %v2896, 2147483648
      %v3262 = vor.u32 1.1754944e-38, %v3261
      %v3263 = vsel %vm3260, %v3262, %v3258
      %v3264 = vmul.f32 1.0, %v3263
      %v3265 = vrcp.pop %v2897
      %v3266 = vmul.f32 %v2897, %v3265
      %v3267 = vsub.f32 1.0, %v3266
      %v3268 = vmul.f32 %v3265, %v3267
      %v3269 = vadd.f32 %v3265, %v3268
      %vm3270 = vweird.f32 %v2897
      %vm3271 = vweird.f32 %v3265
      %vm3272 = vmor %vm3270, %vm3271
      %v3273 = vsel %vm3272, %v3265, %v3269
      %v3274 = vand.u32 2147483647, %v2897
      %vm3275 = vcmp.eq.f32.partialorder %v3274, 8.507059e+37
      %v3276 = vand.u32 %v2897, 2147483648
      %v3277 = vor.u32 1.1754944e-38, %v3276
      %v3278 = vsel %vm3275, %v3277, %v3273
      %v3279 = vmul.f32 1.0, %v3278
      %v3280 = vrcp.pop %v2898
      %v3281 = vmul.f32 %v2898, %v3280
      %v3282 = vsub.f32 1.0, %v3281
      %v3283 = vmul.f32 %v3280, %v3282
      %v3284 = vadd.f32 %v3280, %v3283
      %vm3285 = vweird.f32 %v2898
      %vm3286 = vweird.f32 %v3280
      %vm3287 = vmor %vm3285, %vm3286
      %v3288 = vsel %vm3287, %v3280, %v3284
      %v3289 = vand.u32 2147483647, %v2898
      %vm3290 = vcmp.eq.f32.partialorder %v3289, 8.507059e+37
      %v3291 = vand.u32 %v2898, 2147483648
      %v3292 = vor.u32 1.1754944e-38, %v3291
      %v3293 = vsel %vm3290, %v3292, %v3288
      %v3294 = vmul.f32 1.0, %v3293
      %v3295 = vrcp.pop %v2899
      %v3296 = vmul.f32 %v2899, %v3295
      %v3297 = vsub.f32 1.0, %v3296
      %v3298 = vmul.f32 %v3295, %v3297
      %v3299 = vadd.f32 %v3295, %v3298
      %vm3300 = vweird.f32 %v2899
      %vm3301 = vweird.f32 %v3295
      %vm3302 = vmor %vm3300, %vm3301
      %v3303 = vsel %vm3302, %v3295, %v3299
      %v3304 = vand.u32 2147483647, %v2899
      %vm3305 = vcmp.eq.f32.partialorder %v3304, 8.507059e+37
      %v3306 = vand.u32 %v2899, 2147483648
      %v3307 = vor.u32 1.1754944e-38, %v3306
      %v3308 = vsel %vm3305, %v3307, %v3303
      %v3309 = vmul.f32 1.0, %v3308
      %v3310 = vrcp.pop %v2900
      %v3311 = vmul.f32 %v2900, %v3310
      %v3312 = vsub.f32 1.0, %v3311
      %v3313 = vmul.f32 %v3310, %v3312
      %v3314 = vadd.f32 %v3310, %v3313
      %vm3315 = vweird.f32 %v2900
      %vm3316 = vweird.f32 %v3310
      %vm3317 = vmor %vm3315, %vm3316
      %v3318 = vsel %vm3317, %v3310, %v3314
      %v3319 = vand.u32 2147483647, %v2900
      %vm3320 = vcmp.eq.f32.partialorder %v3319, 8.507059e+37
      %v3321 = vand.u32 %v2900, 2147483648
      %v3322 = vor.u32 1.1754944e-38, %v3321
      %v3323 = vsel %vm3320, %v3322, %v3318
      %v3324 = vmul.f32 1.0, %v3323
      %v3325 = vrcp.pop %v2901
      %v3326 = vmul.f32 %v2901, %v3325
      %v3327 = vsub.f32 1.0, %v3326
      %v3328 = vmul.f32 %v3325, %v3327
      %v3329 = vadd.f32 %v3325, %v3328
      %vm3330 = vweird.f32 %v2901
      %vm3331 = vweird.f32 %v3325
      %vm3332 = vmor %vm3330, %vm3331
      %v3333 = vsel %vm3332, %v3325, %v3329
      %v3334 = vand.u32 2147483647, %v2901
      %vm3335 = vcmp.eq.f32.partialorder %v3334, 8.507059e+37
      %v3336 = vand.u32 %v2901, 2147483648
      %v3337 = vor.u32 1.1754944e-38, %v3336
      %v3338 = vsel %vm3335, %v3337, %v3333
      %v3339 = vmul.f32 1.0, %v3338
      %v3340 = vrcp.pop %v2902
      %v3341 = vmul.f32 %v2902, %v3340
      %v3342 = vsub.f32 1.0, %v3341
      %v3343 = vmul.f32 %v3340, %v3342
      %v3344 = vadd.f32 %v3340, %v3343
      %vm3345 = vweird.f32 %v2902
      %vm3346 = vweird.f32 %v3340
      %vm3347 = vmor %vm3345, %vm3346
      %v3348 = vsel %vm3347, %v3340, %v3344
      %v3349 = vand.u32 2147483647, %v2902
      %vm3350 = vcmp.eq.f32.partialorder %v3349, 8.507059e+37
      %v3351 = vand.u32 %v2902, 2147483648
      %v3352 = vor.u32 1.1754944e-38, %v3351
      %v3353 = vsel %vm3350, %v3352, %v3348
      %v3354 = vmul.f32 1.0, %v3353
      %v3355 = vrcp.pop %v2903
      %v3356 = vmul.f32 %v2903, %v3355
      %v3357 = vsub.f32 1.0, %v3356
      %v3358 = vmul.f32 %v3355, %v3357
      %v3359 = vadd.f32 %v3355, %v3358
      %vm3360 = vweird.f32 %v2903
      %vm3361 = vweird.f32 %v3355
      %vm3362 = vmor %vm3360, %vm3361
      %v3363 = vsel %vm3362, %v3355, %v3359
      %v3364 = vand.u32 2147483647, %v2903
      %vm3365 = vcmp.eq.f32.partialorder %v3364, 8.507059e+37
      %v3366 = vand.u32 %v2903, 2147483648
      %v3367 = vor.u32 1.1754944e-38, %v3366
      %v3368 = vsel %vm3365, %v3367, %v3363
      %v3369 = vmul.f32 1.0, %v3368
      %v3370 = vrcp.pop %v2904
      %v3371 = vmul.f32 %v2904, %v3370
      %v3372 = vsub.f32 1.0, %v3371
      %v3373 = vmul.f32 %v3370, %v3372
      %v3374 = vadd.f32 %v3370, %v3373
      %vm3375 = vweird.f32 %v2904
      %vm3376 = vweird.f32 %v3370
      %vm3377 = vmor %vm3375, %vm3376
      %v3378 = vsel %vm3377, %v3370, %v3374
      %v3379 = vand.u32 2147483647, %v2904
      %vm3380 = vcmp.eq.f32.partialorder %v3379, 8.507059e+37
      %v3381 = vand.u32 %v2904, 2147483648
      %v3382 = vor.u32 1.1754944e-38, %v3381
      %v3383 = vsel %vm3380, %v3382, %v3378
      %v3384 = vmul.f32 1.0, %v3383
      %v3385 = vmul.f32 %v2745, %v2919
      %v3386 = vmul.f32 %v2746, %v2934
      %v3387 = vmul.f32 %v2747, %v2949
      %v3388 = vmul.f32 %v2748, %v2964
      %v3389 = vmul.f32 %v2749, %v2979
      %v3390 = vmul.f32 %v2750, %v2994
      %v3391 = vmul.f32 %v2751, %v3009
      %v3392 = vmul.f32 %v2752, %v3024
      %v3393 = vmul.f32 %v2753, %v3039
      %v3394 = vmul.f32 %v2754, %v3054
      %v3395 = vmul.f32 %v2755, %v3069
      %v3396 = vmul.f32 %v2756, %v3084
      %v3397 = vmul.f32 %v2757, %v3099
      %v3398 = vmul.f32 %v2758, %v3114
      %v3399 = vmul.f32 %v2759, %v3129
      %v3400 = vmul.f32 %v2760, %v3144
      %v3401 = vmul.f32 %v2761, %v3159
      %v3402 = vmul.f32 %v2762, %v3174
      %v3403 = vmul.f32 %v2763, %v3189
      %v3404 = vmul.f32 %v2764, %v3204
      %v3405 = vmul.f32 %v2765, %v3219
      %v3406 = vmul.f32 %v2766, %v3234
      %v3407 = vmul.f32 %v2767, %v3249
      %v3408 = vmul.f32 %v2768, %v3264
      %v3409 = vmul.f32 %v2769, %v3279
      %v3410 = vmul.f32 %v2770, %v3294
      %v3411 = vmul.f32 %v2771, %v3309
      %v3412 = vmul.f32 %v2772, %v3324
      %v3413 = vmul.f32 %v2773, %v3339
      %v3414 = vmul.f32 %v2774, %v3354
      %v3415 = vmul.f32 %v2775, %v3369
      %v3416 = vmul.f32 %v2776, %v3384
      %v3417 = vld [vmem:[%s6] sm:$0x3]
      %v3418 = vpack.c.bf16 %v3386, %v3385
      %v3419 = vpack.c.bf16 %v3388, %v3387
      %v3420 = vpack.c.bf16 %v3390, %v3389
      %v3421 = vpack.c.bf16 %v3392, %v3391
      %v3422 = vpack.c.bf16 %v3394, %v3393
      %v3423 = vpack.c.bf16 %v3396, %v3395
      %v3424 = vpack.c.bf16 %v3398, %v3397
      %v3425 = vpack.c.bf16 %v3400, %v3399
      %v3426 = vpack.c.bf16 %v3402, %v3401
      %v3427 = vpack.c.bf16 %v3404, %v3403
      %v3428 = vpack.c.bf16 %v3406, %v3405
      %v3429 = vpack.c.bf16 %v3408, %v3407
      %v3430 = vpack.c.bf16 %v3410, %v3409
      %v3431 = vpack.c.bf16 %v3412, %v3411
      %v3432 = vpack.c.bf16 %v3414, %v3413
      %v3433 = vpack.c.bf16 %v3416, %v3415
      %v3434 = vld [vmem:[%s7] sm:$0xf]
      %3436 = vset.pattern.permute.xlu0 0
      %3437 = vperm.xlu0 %3436, %v3434
      %v3438 = vpop.permute.xlu0 %3437
      %v3441 = vsel %vm1678, %v3417, 0
      %v3444 = vsel %vm1678, %v3418, 0
      %v3447 = vsel %vm1678, %v3419, 0
      %v3450 = vsel %vm1678, %v3420, 0
      %v3453 = vsel %vm1678, %v3421, 0
      %v3456 = vsel %vm1678, %v3422, 0
      %v3459 = vsel %vm1678, %v3423, 0
      %v3462 = vsel %vm1678, %v3424, 0
      %v3465 = vsel %vm1678, %v3425, 0
      %v3468 = vsel %vm1678, %v3426, 0
      %v3471 = vsel %vm1678, %v3427, 0
      %v3474 = vsel %vm1678, %v3428, 0
      %v3477 = vsel %vm1678, %v3429, 0
      %v3480 = vsel %vm1678, %v3430, 0
      %v3483 = vsel %vm1678, %v3431, 0
      %v3486 = vsel %vm1678, %v3432, 0
      %v3489 = vsel %vm1678, %v3433, 0
      %3491 = vmatpush.bf16.xpose.msra.mxu0 %v3465
      %3492 = vmatpush.bf16.xpose.msra.mxu0 %v3462
      %3493 = vmatpush.bf16.xpose.msra.mxu0 %v3459
      %3494 = vmatpush.bf16.xpose.msra.mxu0 %v3456
      %3495 = vmatpush.bf16.xpose.msra.mxu0 %v3453
      %3496 = vmatpush.bf16.xpose.msra.mxu0 %v3450
      %3497 = vmatpush.bf16.xpose.msra.mxu0 %v3447
      %3498 = vmatpush.bf16.xpose.msra.mxu0 %v3444
      %3499 = vmatmul.bf16.gmra.mxu0 %v3441
      %v3500 = vpop.f32.mrf.mxu0
      %v3501 = vadd.f32 %v3438, %v3500
      %v3502 = vpop.f32.mrf.mxu0
      %3503 = vdwg.mxu0
      %3504 = vmatpush.bf16.xpose.msra.mxu0 %v3489
      %3505 = vmatpush.bf16.xpose.msra.mxu0 %v3486
      %3506 = vmatpush.bf16.xpose.msra.mxu0 %v3483
      %3507 = vmatpush.bf16.xpose.msra.mxu0 %v3480
      %3508 = vmatpush.bf16.xpose.msra.mxu0 %v3477
      %3509 = vmatpush.bf16.xpose.msra.mxu0 %v3474
      %3510 = vmatpush.bf16.xpose.msra.mxu0 %v3471
      %3511 = vmatpush.bf16.xpose.msra.mxu0 %v3468
      %3512 = vmatmul.bf16.gmra.mxu0 %v3441
      %v3513 = vpop.f32.mrf.mxu0
      %v3514 = vadd.f32 %v3438, %v3513
      %v3515 = vpop.f32.mrf.mxu0
      %3516 = vdwg.mxu0
      %v3519 = vrot.slane %v3514, 4
      %vm3520 = vcmask 1043456
      %v3521 = vsel %vm3520, %v3501, %v3519
      %3523 = vst [vmem:[%s325] sm:$0xff] %v3521
      %p3524 = scmp.lt.s32.totalorder %s19, 1
      %s3525 = scalar_select %p3524, %s19, 1
      %s3526 = smul.addr %s3525, 2
      %s3527 = smul.addr %s3526, 4
      %s3528 = scalar_lea.vmem %s8, %s3527
      // Predicated region
      $region53: #{decoder_forward.3} parent=51 // pred_check
        %p3529 = pneg %p215
      $region54: #{decoder_forward.3} parent=51 // pred_check_branch
        %3531 = sbr.rel (%p3529) target = $region56
      $region55: #{decoder_forward.3} parent=51 // pred_region
        _
      $region56: #{decoder_forward.3} parent=51 // pred_fallthru
        _
    $region52: #{decoder_forward.3} parent=5 // pred_fallthru
      _
    %p3532 = scmp.le.s32.totalorder 2, %s14
    // Predicated region
    $region57: #{decoder_forward.3} parent=5 // pred_check
      %p3533 = pneg %p3532
    $region58: #{decoder_forward.3} parent=5 // pred_check_branch
      %3535 = sbr.rel (%p3533) target = $region60
    $region59: #{decoder_forward.3} parent=5 // pred_region
      %s3536 = ssub.s32 %s14, 2
      // Predicated region
      $region61: #{decoder_forward.3} parent=59 // pred_check
        %p3537 = pneg %p221
      $region62: #{decoder_forward.3} parent=59 // pred_check_branch
        %3539 = sbr.rel (%p3537) target = $region64
      $region63: #{decoder_forward.3} parent=59 // pred_region
        %p3540 = scmp.lt.s32.totalorder %s20, 1
        %s3541 = scalar_select %p3540, %s20, 1
        %s3542 = smul.addr %s3541, 2
        %s3543 = smul.addr %s3542, 4
        %s3544 = scalar_lea.vmem %s8, %s3543
      $region64: #{decoder_forward.3} parent=59 // pred_fallthru
        _
    $region60: #{decoder_forward.3} parent=5 // pred_fallthru
      _
  $region6: #{decoder_forward.3} parent=0 // loop_footer
    %s18 = sadd.s32 1, %s14
  $region7: #{decoder_forward.3} parent=0 // loop_footer_branch
    %13 = sbr.rel target = $region3
  $region8: #{decoder_forward.3} parent=0 // loop_exit
    _

</llo_original>
